<compile_context>
chip_gen: v7x
topology: tpu7x:2x2x1
jax: 0.10.0
libtpu: 0.0.40
codegen_flags: <defaults>
</compile_context>

<pallas_src>
from functools import partial

import jax
import jax.numpy as jnp
from jax.experimental import pallas as pl
from jax.experimental.pallas import tpu as pltpu


# ---------------------------------------------------------------------------- kernel

def mlpmixer_kernel(xt_ref, vecs_ref, w1a_ref, w1b_ref, w2a_ref, w2b_ref, out_ref,
                    *, reduction="mean"):
    Bt, D, S = xt_ref.shape                   # x block, transposed layout (Bt, D, S)
    H1 = w1a_ref.shape[1]
    H2 = w2a_ref.shape[1]
    cdt = w1a_ref.dtype                       # matmul-operand dtype (bf16 by default)
    eps = 1e-5

    xt = xt_ref[...]                          # (Bt, D, S) f32
    vecs = vecs_ref[...]                      # (8+D, P) packed f32 vectors

    gamma = vecs[0:1, :D]                     # (1, D)   row layout  (LayerNorm #2)
    beta = vecs[1:2, :D]                      # (1, D)
    b1a = vecs[2:3, :H1]                      # (1, H1)
    b1b = vecs[3:4, :S]                       # (1, S)
    b2a = vecs[4:5, :H2]                      # (1, H2)
    b2b = vecs[5:6, :D]                       # (1, D)
    gamma_c = vecs[8:8 + D, 0:1].reshape(1, D, 1)   # column layout (LayerNorm #1), no relayout
    beta_c = vecs[8:8 + D, 1:2].reshape(1, D, 1)

    # ---- LayerNorm over D, computed directly in the transposed (Bt, D, S) layout ----
    mu = jnp.mean(xt, axis=1, keepdims=True)                          # (Bt, 1, S)
    var = jnp.mean((xt - mu) ** 2, axis=1, keepdims=True)             # biased, matches torch
    n1_t = (xt - mu) * jax.lax.rsqrt(var + eps) * gamma_c + beta_c    # (Bt, D, S) f32

    # ---- token-mixing MLP (S -> H1 -> S), M = Bt*D (leading-dim merge, layout-preserving) ----
    n1_2d = n1_t.reshape(Bt * D, S)
    h = jnp.dot(n1_2d.astype(cdt), w1a_ref[...],
                preferred_element_type=jnp.float32) + b1a             # (Bt*D, H1)
    h = jnp.maximum(h, 0.0)                                           # ReLU
    t2 = jnp.dot(h.astype(cdt), w1b_ref[...],
                 preferred_element_type=jnp.float32) + b1b            # (Bt*D, S)
    skip_t = t2.reshape(Bt, D, S) + xt                                # residual, transposed layout

    # ---- the single in-kernel transpose back to token-major layout ----
    skip = jnp.swapaxes(skip_t, 1, 2).reshape(Bt * S, D)              # (Bt*S, D) f32

    # ---- LayerNorm over D (natural lane reduce), same shared parameters ----
    mu2 = jnp.mean(skip, axis=-1, keepdims=True)
    var2 = jnp.mean((skip - mu2) ** 2, axis=-1, keepdims=True)
    n2 = (skip - mu2) * jax.lax.rsqrt(var2 + eps) * gamma + beta      # (Bt*S, D)

    # ---- channel-mixing MLP (D -> H2 -> D), M = Bt*S ----
    h2 = jnp.dot(n2.astype(cdt), w2a_ref[...],
                 preferred_element_type=jnp.float32) + b2a            # (Bt*S, H2)
    h2 = jnp.maximum(h2, 0.0)                                         # ReLU
    o = jnp.dot(h2.astype(cdt), w2b_ref[...],
                preferred_element_type=jnp.float32) + b2b             # (Bt*S, D)
    final = (o + skip).reshape(Bt, S, D)                              # f32

    # ---- reduction over the token axis ----
    if reduction == "mean":
        red = jnp.mean(final, axis=1)
    elif reduction == "max":
        red = jnp.max(final, axis=1)
    elif reduction == "min":
        red = jnp.min(final, axis=1)
    else:
        # TODO(synk): reduction_method values other than mean/max/min return the unreduced
        # (B, S, D) tensor in the PyTorch module; not supported by this fixed-shape kernel.
        raise NotImplementedError(f"unsupported reduction_method: {reduction}")
    out_ref[...] = red                                                # (Bt, D)


# ---------------------------------------------------------------------------- sizing helpers

def _step_vmem_bytes(Bt, S, D, H1, H2, P, wbytes):
    """Rough per-grid-step VMEM footprint: double-buffered I/O blocks, (default
    double-buffered) parameter blocks, and the live f32 intermediates the kernel creates."""
    blk_in = Bt * D * S * 4
    blk_out = Bt * D * 4
    params = (S * H1 + H1 * S + D * H2 + H2 * D) * wbytes + (8 + D) * P * 4
    # Live intermediates: several (Bt*S*D)-sized f32 arrays (n1_t, skip_t, skip, n2, final),
    # the two hidden activations, plus the matmul-dtype operand copies.  Counted generously.
    inter = (4 * Bt * (5 * S * D + D * H1 + S * H2)
             + wbytes * Bt * (S * D + D * H1 + S * H2))
    return 2 * (blk_in + blk_out) + 2 * params + inter


def _vmem_budget_bytes():
    """Per-generation scoped-VMEM budget: ~3/4 of physical VMEM (~48 MiB on v7x's 64 MiB,
    ~96 MiB on v5e/v6e's 128 MiB), clamped to a sane range."""
    cap = 64 << 20                         # conservative default: v7x per-core VMEM
    try:
        info = pltpu.get_tpu_info()
        cap = int(getattr(info, "vmem_capacity_bytes", cap) or cap)
    except Exception:
        pass
    return max(16 << 20, min((3 * cap) // 4, 100 << 20))


def _pick_batch_block(B, S, D, H1, H2, P, wbytes, budget):
    """Largest batch block dividing B that fits the VMEM budget (counting intermediates).

    Defaults to a SINGLE grid step (Bt = B): v5e/v6e have one TensorCore, so extra grid
    steps are pure per-step pipeline overhead on this latency-bound kernel.  On v7x, pass
    batch_block=B//2 explicitly if a 2-step 'parallel' grid is confirmed (via a trace) to
    shard across both TensorCores."""
    if _step_vmem_bytes(B, S, D, H1, H2, P, wbytes) <= budget:
        return B
    # Sub-batch blocks keep the (Bt, D) output block sublane-aligned (multiple of 8).
    divisors = [b for b in range(8, B, 8) if B % b == 0]
    fitting = [b for b in divisors if _step_vmem_bytes(b, S, D, H1, H2, P, wbytes) <= budget]
    if fitting:
        return max(fitting)
    return min(divisors) if divisors else B          # best effort


def _vmem_limit_bytes(Bt, S, D, H1, H2, P, wbytes, budget):
    need = _step_vmem_bytes(Bt, S, D, H1, H2, P, wbytes) + (4 << 20)   # relayout headroom
    return int(min(max(need, 16 << 20), budget))


# ---------------------------------------------------------------------------- wrapper

def mlpmixer_forward(x, params, *, matmul_dtype=jnp.bfloat16, batch_block=None,
                     reduction="mean"):
    B, S, D = x.shape
    (gamma, beta, w1a, b1a, w1b, b1b, w2a, b2a, w2b, b2b) = params
    H1, H2 = w1a.shape[1], w2a.shape[1]

    # One wrapper-side (XLA) transpose replaces two in-kernel XLU transposes per grid step.
    x_t = jnp.transpose(x, (0, 2, 1)).astype(jnp.float32)             # (B, D, S)

    # Cast the four weight matrices once: halves weight DMA bytes and uses the bf16 MXU path.
    # Pass matmul_dtype=jnp.float32 for exact parity with the f32 PyTorch forward.
    w1a_c, w1b_c, w2a_c, w2b_c = (w.astype(matmul_dtype) for w in (w1a, w1b, w2a, w2b))

    # Pack the six tiny f32 vectors into one padded tile -> one DMA, one BlockSpec.
    # Rows 0..5: gamma, beta, b1a, b1b, b2a, b2b (row layout).  Rows 8..8+D-1, cols 0..1:
    # gamma/beta in column layout for the transposed LayerNorm (avoids in-kernel relayout).
    P = ((max(D, H1, H2, S) + 127) // 128) * 128
    vecs = jnp.zeros((8 + D, P), jnp.float32)
    vecs = vecs.at[0, :D].set(gamma.reshape(-1))
    vecs = vecs.at[1, :D].set(beta.reshape(-1))
    vecs = vecs.at[2, :H1].set(b1a.reshape(-1))
    vecs = vecs.at[3, :S].set(b1b.reshape(-1))
    vecs = vecs.at[4, :H2].set(b2a.reshape(-1))
    vecs = vecs.at[5, :D].set(b2b.reshape(-1))
    vecs = vecs.at[8:8 + D, 0].set(gamma.reshape(-1))
    vecs = vecs.at[8:8 + D, 1].set(beta.reshape(-1))

    wbytes = jnp.dtype(matmul_dtype).itemsize
    budget = _vmem_budget_bytes()
    Bt = (batch_block if batch_block is not None
          else _pick_batch_block(B, S, D, H1, H2, P, wbytes, budget))
    assert B % Bt == 0, "batch block must divide the batch (no padding path)"
    G = B // Bt

    cost = pl.CostEstimate(
        flops=4 * B * S * D * (H1 + H2),                  # two matmuls per mixing MLP
        transcendentals=2 * B * S,                        # two rsqrt per (b, s) row
        bytes_accessed=((B * S * D + B * D) * 4
                        + (S * H1 + H1 * S + D * H2 + H2 * D) * wbytes
                        + (8 + D) * P * 4))

    out = pl.pallas_call(
        partial(mlpmixer_kernel, reduction=reduction),
        out_shape=jax.ShapeDtypeStruct((B, D), jnp.float32),
        grid=(G,),
        in_specs=[
            pl.BlockSpec((Bt, D, S), lambda g: (g, 0, 0)),      # x, transposed layout
            pl.BlockSpec((8 + D, P), lambda g: (0, 0)),         # packed gamma/beta/biases
            pl.BlockSpec((S, H1), lambda g: (0, 0)),            # constant index maps:
            pl.BlockSpec((H1, S), lambda g: (0, 0)),            # weights fetched once
            pl.BlockSpec((D, H2), lambda g: (0, 0)),
            pl.BlockSpec((H2, D), lambda g: (0, 0)),
        ],
        out_specs=pl.BlockSpec((Bt, D), lambda g: (g, 0)),
        compiler_params=pltpu.CompilerParams(
            dimension_semantics=("parallel",),
            vmem_limit_bytes=_vmem_limit_bytes(Bt, S, D, H1, H2, P, wbytes, budget)),
        cost_estimate=cost,
    )(x_t, vecs, w1a_c, w1b_c, w2a_c, w2b_c)
    return out                                                 # (B, D)


# ---------------------------------------------------------------------------- reference / demo

def _layernorm(x, gamma, beta, eps=1e-5):
    mean = jnp.mean(x, axis=-1, keepdims=True)
    var = jnp.mean((x - mean) ** 2, axis=-1, keepdims=True)
    return (x - mean) * jax.lax.rsqrt(var + eps) * gamma + beta


def make_params(key, S, D, H1, H2):
    ks = jax.random.split(key, 10)
    scale = 0.05
    gamma = 1.0 + 0.1 * jax.random.normal(ks[0], (1, D), jnp.float32)
    beta = 0.1 * jax.random.normal(ks[1], (1, D), jnp.float32)
    w1a = scale * jax.random.normal(ks[2], (S, H1), jnp.float32)   # mlp_one Linear(S,H1).weight^T
    b1a = scale * jax.random.normal(ks[3], (1, H1), jnp.float32)
    w1b = scale * jax.random.normal(ks[4], (H1, S), jnp.float32)   # mlp_one Linear(H1,S).weight^T
    b1b = scale * jax.random.normal(ks[5], (1, S), jnp.float32)
    w2a = scale * jax.random.normal(ks[6], (D, H2), jnp.float32)   # mlp_two Linear(D,H2).weight^T
    b2a = scale * jax.random.normal(ks[7], (1, H2), jnp.float32)
    w2b = scale * jax.random.normal(ks[8], (H2, D), jnp.float32)   # mlp_two Linear(H2,D).weight^T
    b2b = scale * jax.random.normal(ks[9], (1, D), jnp.float32)
    return (gamma, beta, w1a, b1a, w1b, b1b, w2a, b2a, w2b, b2b)


def reference_forward(x, params, matmul_dtype=jnp.float32):
    """Pure-JAX reference mirroring the PyTorch forward (eval mode, mean reduction)."""
    (gamma, beta, w1a, b1a, w1b, b1b, w2a, b2a, w2b, b2b) = params
    c = lambda a: a.astype(matmul_dtype)
    n1 = _layernorm(x, gamma, beta)                                        # (B,S,D)
    t = jnp.swapaxes(n1, 1, 2)                                             # (B,D,S)
    h = jnp.einsum('bds,sh->bdh', c(t), c(w1a),
                   preferred_element_type=jnp.float32) + b1a
    h = jnp.maximum(h, 0.0)
    t2 = jnp.einsum('bdh,hs->bds', c(h), c(w1b),
                    preferred_element_type=jnp.float32) + b1b
    skip = jnp.swapaxes(t2, 1, 2) + x                                      # (B,S,D)
    n2 = _layernorm(skip, gamma, beta)
    h2 = jnp.einsum('bsd,dk->bsk', c(n2), c(w2a),
                    preferred_element_type=jnp.float32) + b2a
    h2 = jnp.maximum(h2, 0.0)
    o = jnp.einsum('bsk,kd->bsd', c(h2), c(w2b),
                   preferred_element_type=jnp.float32) + b2b
    final = o + skip
    return jnp.mean(final, axis=1)                                         # (B, D)


if __name__ == "__main__":
    # Small, deterministic demo shapes.  Default tiling: one grid step (batch folded into
    # the matmul M dimension), all weights VMEM-resident for the whole call.
    B, S, D = 16, 8, 32       # batch, tokens, dim
    H1, H2 = 16, 64           # inner dims of mlp_one / mlp_two

    key = jax.random.PRNGKey(0)
    kx, kp = jax.random.split(key)
    x = jax.random.normal(kx, (B, S, D), jnp.float32)
    params = make_params(kp, S, D, H1, H2)

    out = jax.block_until_ready(mlpmixer_forward(x, params))
    assert out.shape == (B, D)

    # Structural check against a reference using the same bf16 matmul-operand precision.
    ref_bf16 = reference_forward(x, params, matmul_dtype=jnp.bfloat16)
    assert jnp.allclose(out, ref_bf16, atol=3e-3, rtol=3e-3), \
        float(jnp.max(jnp.abs(out - ref_bf16)))
    # Precision-loss bound against the pure-f32, PyTorch-equivalent forward.
    ref_f32 = reference_forward(x, params, matmul_dtype=jnp.float32)
    assert jnp.allclose(out, ref_f32, atol=2e-2, rtol=2e-2), \
        float(jnp.max(jnp.abs(out - ref_f32)))

    print("KERNEL_OK")
</pallas_src>

<mosaic_0001>
module attributes {stable_mosaic.version = 11 : i64} {
  func.func @mlpmixer_kernel(%arg0: i32, %arg1: memref<16x32x8xf32, #tpu.memory_space<vmem>>, %arg2: memref<40x128xf32, #tpu.memory_space<vmem>>, %arg3: memref<8x16xbf16, #tpu.memory_space<vmem>>, %arg4: memref<16x8xbf16, #tpu.memory_space<vmem>>, %arg5: memref<32x64xbf16, #tpu.memory_space<vmem>>, %arg6: memref<64x32xbf16, #tpu.memory_space<vmem>>, %arg7: memref<16x32xf32, #tpu.memory_space<vmem>>) attributes {dimension_semantics = [#tpu.dimension_semantics<parallel>], iteration_bounds = array<i64: 1>, scalar_prefetch = 0 : i64, scratch_operands = 0 : i64, tpu.core_type = #tpu.core_type<tc>, window_params = [{transform_indices = @transform_0, window_bounds = array<i64: 16, 32, 8>}, {pipeline_mode = #tpu.pipeline_mode<synchronous>, transform_indices = @transform_1, window_bounds = array<i64: 40, 128>}, {pipeline_mode = #tpu.pipeline_mode<synchronous>, transform_indices = @transform_2, window_bounds = array<i64: 8, 16>}, {pipeline_mode = #tpu.pipeline_mode<synchronous>, transform_indices = @transform_3, window_bounds = array<i64: 16, 8>}, {pipeline_mode = #tpu.pipeline_mode<synchronous>, transform_indices = @transform_4, window_bounds = array<i64: 32, 64>}, {pipeline_mode = #tpu.pipeline_mode<synchronous>, transform_indices = @transform_5, window_bounds = array<i64: 64, 32>}, {transform_indices = @transform_6, window_bounds = array<i64: 16, 32>}]} {
    %c0 = arith.constant 0 : index
    %c0_0 = arith.constant 0 : index
    %c0_1 = arith.constant 0 : index
    %0 = vector.load %arg1[%c0, %c0_0, %c0_1] : memref<16x32x8xf32, #tpu.memory_space<vmem>>, vector<16x32x8xf32>
    %c0_2 = arith.constant 0 : index
    %c0_3 = arith.constant 0 : index
    %1 = vector.load %arg2[%c0_2, %c0_3] : memref<40x128xf32, #tpu.memory_space<vmem>>, vector<40x128xf32>
    %2 = vector.extract_strided_slice %1 {offsets = [0, 0], sizes = [1, 32], strides = [1, 1]} : vector<40x128xf32> to vector<1x32xf32>
    %3 = vector.extract_strided_slice %1 {offsets = [1, 0], sizes = [1, 32], strides = [1, 1]} : vector<40x128xf32> to vector<1x32xf32>
    %4 = vector.extract_strided_slice %1 {offsets = [2, 0], sizes = [1, 16], strides = [1, 1]} : vector<40x128xf32> to vector<1x16xf32>
    %5 = vector.extract_strided_slice %1 {offsets = [3, 0], sizes = [1, 8], strides = [1, 1]} : vector<40x128xf32> to vector<1x8xf32>
    %6 = vector.extract_strided_slice %1 {offsets = [4, 0], sizes = [1, 64], strides = [1, 1]} : vector<40x128xf32> to vector<1x64xf32>
    %7 = vector.extract_strided_slice %1 {offsets = [5, 0], sizes = [1, 32], strides = [1, 1]} : vector<40x128xf32> to vector<1x32xf32>
    %8 = vector.extract_strided_slice %1 {offsets = [8, 0], sizes = [32, 1], strides = [1, 1]} : vector<40x128xf32> to vector<32x1xf32>
    %9 = vector.shape_cast %8 : vector<32x1xf32> to vector<1x32x1xf32>
    %10 = vector.extract_strided_slice %1 {offsets = [8, 1], sizes = [32, 1], strides = [1, 1]} : vector<40x128xf32> to vector<32x1xf32>
    %11 = vector.shape_cast %10 : vector<32x1xf32> to vector<1x32x1xf32>
    %cst = arith.constant dense<0.000000e+00> : vector<16x8xf32>
    %12 = vector.multi_reduction <add>, %0, %cst [1] : vector<16x32x8xf32> to vector<16x8xf32>
    %13 = vector.shape_cast %12 : vector<16x8xf32> to vector<16x1x8xf32>
    %cst_4 = arith.constant 3.200000e+01 : f32
    %14 = vector.broadcast %cst_4 : f32 to vector<16x1x8xf32>
    %15 = arith.divf %13, %14 : vector<16x1x8xf32>
    %16 = vector.broadcast %15 : vector<16x1x8xf32> to vector<16x32x8xf32>
    %17 = arith.subf %0, %16 : vector<16x32x8xf32>
    %18 = arith.mulf %17, %17 : vector<16x32x8xf32>
    %cst_5 = arith.constant dense<0.000000e+00> : vector<16x8xf32>
    %19 = vector.multi_reduction <add>, %18, %cst_5 [1] : vector<16x32x8xf32> to vector<16x8xf32>
    %20 = vector.shape_cast %19 : vector<16x8xf32> to vector<16x1x8xf32>
    %cst_6 = arith.constant 3.200000e+01 : f32
    %21 = vector.broadcast %cst_6 : f32 to vector<16x1x8xf32>
    %22 = arith.divf %20, %21 : vector<16x1x8xf32>
    %23 = vector.broadcast %15 : vector<16x1x8xf32> to vector<16x32x8xf32>
    %24 = arith.subf %0, %23 : vector<16x32x8xf32>
    %cst_7 = arith.constant 9.99999974E-6 : f32
    %25 = vector.broadcast %cst_7 : f32 to vector<16x1x8xf32>
    %26 = arith.addf %22, %25 : vector<16x1x8xf32>
    %27 = math.rsqrt %26 : vector<16x1x8xf32>
    %28 = vector.broadcast %27 : vector<16x1x8xf32> to vector<16x32x8xf32>
    %29 = arith.mulf %24, %28 : vector<16x32x8xf32>
    %30 = vector.broadcast %9 : vector<1x32x1xf32> to vector<16x32x8xf32>
    %31 = arith.mulf %29, %30 : vector<16x32x8xf32>
    %32 = vector.broadcast %11 : vector<1x32x1xf32> to vector<16x32x8xf32>
    %33 = arith.addf %31, %32 : vector<16x32x8xf32>
    %34 = vector.shape_cast %33 : vector<16x32x8xf32> to vector<512x8xf32>
    %35 = arith.truncf %34 : vector<512x8xf32> to vector<512x8xbf16>
    %c0_8 = arith.constant 0 : index
    %c0_9 = arith.constant 0 : index
    %36 = vector.load %arg3[%c0_8, %c0_9] : memref<8x16xbf16, #tpu.memory_space<vmem>>, vector<8x16xbf16>
    %cst_10 = arith.constant dense<0.000000e+00> : vector<512x16xf32>
    %37 = tpu.matmul %35, %36, %cst_10 {dimension_numbers = #tpu.dot_dimension_numbers<[1], [0], [0], [1], [0, 0, 1, 1], [], []>} : vector<512x8xbf16>, vector<8x16xbf16>, vector<512x16xf32> -> vector<512x16xf32>
    %38 = vector.broadcast %4 : vector<1x16xf32> to vector<512x16xf32>
    %39 = arith.addf %37, %38 : vector<512x16xf32>
    %cst_11 = arith.constant 0.000000e+00 : f32
    %40 = vector.broadcast %cst_11 : f32 to vector<512x16xf32>
    %41 = arith.maximumf %39, %40 : vector<512x16xf32>
    %42 = arith.truncf %41 : vector<512x16xf32> to vector<512x16xbf16>
    %c0_12 = arith.constant 0 : index
    %c0_13 = arith.constant 0 : index
    %43 = vector.load %arg4[%c0_12, %c0_13] : memref<16x8xbf16, #tpu.memory_space<vmem>>, vector<16x8xbf16>
    %cst_14 = arith.constant dense<0.000000e+00> : vector<512x8xf32>
    %44 = tpu.matmul %42, %43, %cst_14 {dimension_numbers = #tpu.dot_dimension_numbers<[1], [0], [0], [1], [0, 0, 1, 1], [], []>} : vector<512x16xbf16>, vector<16x8xbf16>, vector<512x8xf32> -> vector<512x8xf32>
    %45 = vector.broadcast %5 : vector<1x8xf32> to vector<512x8xf32>
    %46 = arith.addf %44, %45 : vector<512x8xf32>
    %47 = vector.shape_cast %46 : vector<512x8xf32> to vector<16x32x8xf32>
    %48 = arith.addf %47, %0 : vector<16x32x8xf32>
    %49 = tpu.transpose %48, [0, 2, 1] : vector<16x32x8xf32> -> vector<16x8x32xf32>
    %50 = vector.shape_cast %49 : vector<16x8x32xf32> to vector<128x32xf32>
    %cst_15 = arith.constant dense<0.000000e+00> : vector<128xf32>
    %51 = vector.multi_reduction <add>, %50, %cst_15 [1] : vector<128x32xf32> to vector<128xf32>
    %52 = vector.shape_cast %51 : vector<128xf32> to vector<128x1xf32>
    %cst_16 = arith.constant 3.200000e+01 : f32
    %53 = vector.broadcast %cst_16 : f32 to vector<128x1xf32>
    %54 = arith.divf %52, %53 : vector<128x1xf32>
    %55 = vector.broadcast %54 : vector<128x1xf32> to vector<128x32xf32>
    %56 = arith.subf %50, %55 : vector<128x32xf32>
    %57 = arith.mulf %56, %56 : vector<128x32xf32>
    %cst_17 = arith.constant dense<0.000000e+00> : vector<128xf32>
    %58 = vector.multi_reduction <add>, %57, %cst_17 [1] : vector<128x32xf32> to vector<128xf32>
    %59 = vector.shape_cast %58 : vector<128xf32> to vector<128x1xf32>
    %cst_18 = arith.constant 3.200000e+01 : f32
    %60 = vector.broadcast %cst_18 : f32 to vector<128x1xf32>
    %61 = arith.divf %59, %60 : vector<128x1xf32>
    %62 = vector.broadcast %54 : vector<128x1xf32> to vector<128x32xf32>
    %63 = arith.subf %50, %62 : vector<128x32xf32>
    %cst_19 = arith.constant 9.99999974E-6 : f32
    %64 = vector.broadcast %cst_19 : f32 to vector<128x1xf32>
    %65 = arith.addf %61, %64 : vector<128x1xf32>
    %66 = math.rsqrt %65 : vector<128x1xf32>
    %67 = vector.broadcast %66 : vector<128x1xf32> to vector<128x32xf32>
    %68 = arith.mulf %63, %67 : vector<128x32xf32>
    %69 = vector.broadcast %2 : vector<1x32xf32> to vector<128x32xf32>
    %70 = arith.mulf %68, %69 : vector<128x32xf32>
    %71 = vector.broadcast %3 : vector<1x32xf32> to vector<128x32xf32>
    %72 = arith.addf %70, %71 : vector<128x32xf32>
    %73 = arith.truncf %72 : vector<128x32xf32> to vector<128x32xbf16>
    %c0_20 = arith.constant 0 : index
    %c0_21 = arith.constant 0 : index
    %74 = vector.load %arg5[%c0_20, %c0_21] : memref<32x64xbf16, #tpu.memory_space<vmem>>, vector<32x64xbf16>
    %cst_22 = arith.constant dense<0.000000e+00> : vector<128x64xf32>
    %75 = tpu.matmul %73, %74, %cst_22 {dimension_numbers = #tpu.dot_dimension_numbers<[1], [0], [0], [1], [0, 0, 1, 1], [], []>} : vector<128x32xbf16>, vector<32x64xbf16>, vector<128x64xf32> -> vector<128x64xf32>
    %76 = vector.broadcast %6 : vector<1x64xf32> to vector<128x64xf32>
    %77 = arith.addf %75, %76 : vector<128x64xf32>
    %cst_23 = arith.constant 0.000000e+00 : f32
    %78 = vector.broadcast %cst_23 : f32 to vector<128x64xf32>
    %79 = arith.maximumf %77, %78 : vector<128x64xf32>
    %80 = arith.truncf %79 : vector<128x64xf32> to vector<128x64xbf16>
    %c0_24 = arith.constant 0 : index
    %c0_25 = arith.constant 0 : index
    %81 = vector.load %arg6[%c0_24, %c0_25] : memref<64x32xbf16, #tpu.memory_space<vmem>>, vector<64x32xbf16>
    %cst_26 = arith.constant dense<0.000000e+00> : vector<128x32xf32>
    %82 = tpu.matmul %80, %81, %cst_26 {dimension_numbers = #tpu.dot_dimension_numbers<[1], [0], [0], [1], [0, 0, 1, 1], [], []>} : vector<128x64xbf16>, vector<64x32xbf16>, vector<128x32xf32> -> vector<128x32xf32>
    %83 = vector.broadcast %7 : vector<1x32xf32> to vector<128x32xf32>
    %84 = arith.addf %82, %83 : vector<128x32xf32>
    %85 = arith.addf %84, %50 : vector<128x32xf32>
    %86 = vector.shape_cast %85 : vector<128x32xf32> to vector<16x8x32xf32>
    %cst_27 = arith.constant dense<0.000000e+00> : vector<16x32xf32>
    %87 = vector.multi_reduction <add>, %86, %cst_27 [1] : vector<16x8x32xf32> to vector<16x32xf32>
    %cst_28 = arith.constant 8.000000e+00 : f32
    %88 = vector.broadcast %cst_28 : f32 to vector<16x32xf32>
    %89 = arith.divf %87, %88 : vector<16x32xf32>
    %c0_29 = arith.constant 0 : index
    %c0_30 = arith.constant 0 : index
    %90 = vector.load %arg7[%c0_29, %c0_30] : memref<16x32xf32, #tpu.memory_space<vmem>>, vector<16x32xf32>
    tpu.vector_store %arg7[%c0_29, %c0_30], %89 {strides = array<i32>} : memref<16x32xf32, #tpu.memory_space<vmem>>, vector<16x32xf32>,
    return
  }
  func.func @transform_0(%arg0: i32) -> (i32, i32, i32) {
    %c0_i32 = arith.constant 0 : i32
    %c0_i32_0 = arith.constant 0 : i32
    %c0_i32_1 = arith.constant 0 : i32
    return %arg0, %c0_i32, %c0_i32_0 : i32, i32, i32
  }
  func.func @transform_1(%arg0: i32) -> (i32, i32) {
    %c0_i32 = arith.constant 0 : i32
    %c0_i32_0 = arith.constant 0 : i32
    %c0_i32_1 = arith.constant 0 : i32
    return %c0_i32, %c0_i32_0 : i32, i32
  }
  func.func @transform_2(%arg0: i32) -> (i32, i32) {
    %c0_i32 = arith.constant 0 : i32
    %c0_i32_0 = arith.constant 0 : i32
    %c0_i32_1 = arith.constant 0 : i32
    return %c0_i32, %c0_i32_0 : i32, i32
  }
  func.func @transform_3(%arg0: i32) -> (i32, i32) {
    %c0_i32 = arith.constant 0 : i32
    %c0_i32_0 = arith.constant 0 : i32
    %c0_i32_1 = arith.constant 0 : i32
    return %c0_i32, %c0_i32_0 : i32, i32
  }
  func.func @transform_4(%arg0: i32) -> (i32, i32) {
    %c0_i32 = arith.constant 0 : i32
    %c0_i32_0 = arith.constant 0 : i32
    %c0_i32_1 = arith.constant 0 : i32
    return %c0_i32, %c0_i32_0 : i32, i32
  }
  func.func @transform_5(%arg0: i32) -> (i32, i32) {
    %c0_i32 = arith.constant 0 : i32
    %c0_i32_0 = arith.constant 0 : i32
    %c0_i32_1 = arith.constant 0 : i32
    return %c0_i32, %c0_i32_0 : i32, i32
  }
  func.func @transform_6(%arg0: i32) -> (i32, i32) {
    %c0_i32 = arith.constant 0 : i32
    %c0_i32_0 = arith.constant 0 : i32
    return %arg0, %c0_i32 : i32, i32
  }
}

</mosaic_0001>

<llo_original>
// kernel: tpu_custom_call.1
$region0: #{tpu_custom_call.1}
  #allocation0 [shape = 'u32[]', space=smem, size = 0x4, offset = 0x4, fixed_abs, tag = 'smem constant byte address 0x4 - core index']
  #allocation1 [shape = 'u32[144,128]{1,0:T(1,128)}', space=vmem, size = 0x12000, scoped, tag = 'internal scratch']
  %s0 = inlined_call_operand.vmem [shape: f32[16,32,8], index: 0, kind: input, shape index: {}]
  %s1 = inlined_call_operand.vmem [shape: f32[40,128], index: 1, kind: input, shape index: {}]
  %s2 = inlined_call_operand.vmem [shape: bf16[8,16], index: 2, kind: input, shape index: {}]
  %s3 = inlined_call_operand.vmem [shape: bf16[16,8], index: 3, kind: input, shape index: {}]
  %s4 = inlined_call_operand.vmem [shape: bf16[32,64], index: 4, kind: input, shape index: {}]
  %s5 = inlined_call_operand.vmem [shape: bf16[64,32], index: 5, kind: input, shape index: {}]
  %s6 = inlined_call_operand.hbm [shape: f32[16,32], index: 6, kind: output, shape index: {}]
  %s7 = sld [smem:[#allocation0]]
  $region34: #{tpu_custom_call.1} parent=0
    _
  %s9 = ssub.s32 1, %s7
  %s10 = scalar_select 0, %s9, %s7
  $region1: #{tpu_custom_call.1} parent=0
    #allocation2 [shape = 'u8[8192]{0}', space=vmem, size = 0x2000, scoped, tag = 'output window, operand 0, single buffered']
    #allocation3 [shape = 's32[1]{0}', space=sflag, size = 0x4, scoped, tag = 'scoped memory for tpu_custom_call.1']
    %11 = vsyncpa [#allocation3], 0
    // Predicated region
    $region2: #{tpu_custom_call.1} parent=1 // pred_check
      _
    $region3: #{tpu_custom_call.1} parent=1 // pred_check_branch
      %13 = sbr.rel (0) target = $region5
    $region4: #{tpu_custom_call.1} parent=1 // pred_region
      _
    $region5: #{tpu_custom_call.1} parent=1 // pred_fallthru
      _
    // Predicated region
    $region6: #{tpu_custom_call.1} parent=1 // pred_check
      _
    $region7: #{tpu_custom_call.1} parent=1 // pred_check_branch
      %15 = sbr.rel (0) target = $region9
    $region8: #{tpu_custom_call.1} parent=1 // pred_region
      _
    $region9: #{tpu_custom_call.1} parent=1 // pred_fallthru
      _
    // Predicated region
    $region10: #{tpu_custom_call.1} parent=1 // pred_check
      _
    $region11: #{tpu_custom_call.1} parent=1 // pred_check_branch
      %17 = sbr.rel (0) target = $region13
    $region12: #{tpu_custom_call.1} parent=1 // pred_region
      _
    $region13: #{tpu_custom_call.1} parent=1 // pred_fallthru
      _
    // Predicated region
    $region14: #{tpu_custom_call.1} parent=1 // pred_check
      _
    $region15: #{tpu_custom_call.1} parent=1 // pred_check_branch
      %19 = sbr.rel (0) target = $region17
    $region16: #{tpu_custom_call.1} parent=1 // pred_region
      _
    $region17: #{tpu_custom_call.1} parent=1 // pred_fallthru
      _
    // Predicated region
    $region18: #{tpu_custom_call.1} parent=1 // pred_check
      _
    $region19: #{tpu_custom_call.1} parent=1 // pred_check_branch
      %21 = sbr.rel (0) target = $region21
    $region20: #{tpu_custom_call.1} parent=1 // pred_region
      _
    $region21: #{tpu_custom_call.1} parent=1 // pred_fallthru
      _
    // Predicated region
    $region22: #{tpu_custom_call.1} parent=1 // pred_check
      _
    $region23: #{tpu_custom_call.1} parent=1 // pred_check_branch
      %23 = sbr.rel (0) target = $region25
    $region24: #{tpu_custom_call.1} parent=1 // pred_region
      _
    $region25: #{tpu_custom_call.1} parent=1 // pred_fallthru
      _
    %v25 = vld [vmem:[%s0] sm:$0xff]
    %v26 = vld [vmem:[%s0 + $0x8] sm:$0xff]
    %v27 = vld [vmem:[%s0 + $0x10] sm:$0xff]
    %v28 = vld [vmem:[%s0 + $0x18] sm:$0xff]
    %v29 = vld [vmem:[%s0 + $0x20] sm:$0xff]
    %v30 = vld [vmem:[%s0 + $0x28] sm:$0xff]
    %v31 = vld [vmem:[%s0 + $0x30] sm:$0xff]
    %v32 = vld [vmem:[%s0 + $0x38] sm:$0xff]
    %v33 = vld [vmem:[%s0 + $0x40] sm:$0xff]
    %v34 = vld [vmem:[%s0 + $0x48] sm:$0xff]
    %v35 = vld [vmem:[%s0 + $0x50] sm:$0xff]
    %v36 = vld [vmem:[%s0 + $0x58] sm:$0xff]
    %v37 = vld [vmem:[%s0 + $0x60] sm:$0xff]
    %v38 = vld [vmem:[%s0 + $0x68] sm:$0xff]
    %v39 = vld [vmem:[%s0 + $0x70] sm:$0xff]
    %v40 = vld [vmem:[%s0 + $0x78] sm:$0xff]
    %v41 = vld [vmem:[%s0 + $0x80] sm:$0xff]
    %v42 = vld [vmem:[%s0 + $0x88] sm:$0xff]
    %v43 = vld [vmem:[%s0 + $0x90] sm:$0xff]
    %v44 = vld [vmem:[%s0 + $0x98] sm:$0xff]
    %v45 = vld [vmem:[%s0 + $0xa0] sm:$0xff]
    %v46 = vld [vmem:[%s0 + $0xa8] sm:$0xff]
    %v47 = vld [vmem:[%s0 + $0xb0] sm:$0xff]
    %v48 = vld [vmem:[%s0 + $0xb8] sm:$0xff]
    %v49 = vld [vmem:[%s0 + $0xc0] sm:$0xff]
    %v50 = vld [vmem:[%s0 + $0xc8] sm:$0xff]
    %v51 = vld [vmem:[%s0 + $0xd0] sm:$0xff]
    %v52 = vld [vmem:[%s0 + $0xd8] sm:$0xff]
    %v53 = vld [vmem:[%s0 + $0xe0] sm:$0xff]
    %v54 = vld [vmem:[%s0 + $0xe8] sm:$0xff]
    %v55 = vld [vmem:[%s0 + $0xf0] sm:$0xff]
    %v56 = vld [vmem:[%s0 + $0xf8] sm:$0xff]
    %v57 = vld [vmem:[%s0 + $0x100] sm:$0xff]
    %v58 = vld [vmem:[%s0 + $0x108] sm:$0xff]
    %v59 = vld [vmem:[%s0 + $0x110] sm:$0xff]
    %v60 = vld [vmem:[%s0 + $0x118] sm:$0xff]
    %v61 = vld [vmem:[%s0 + $0x120] sm:$0xff]
    %v62 = vld [vmem:[%s0 + $0x128] sm:$0xff]
    %v63 = vld [vmem:[%s0 + $0x130] sm:$0xff]
    %v64 = vld [vmem:[%s0 + $0x138] sm:$0xff]
    %v65 = vld [vmem:[%s0 + $0x140] sm:$0xff]
    %v66 = vld [vmem:[%s0 + $0x148] sm:$0xff]
    %v67 = vld [vmem:[%s0 + $0x150] sm:$0xff]
    %v68 = vld [vmem:[%s0 + $0x158] sm:$0xff]
    %v69 = vld [vmem:[%s0 + $0x160] sm:$0xff]
    %v70 = vld [vmem:[%s0 + $0x168] sm:$0xff]
    %v71 = vld [vmem:[%s0 + $0x170] sm:$0xff]
    %v72 = vld [vmem:[%s0 + $0x178] sm:$0xff]
    %v73 = vld [vmem:[%s0 + $0x180] sm:$0xff]
    %v74 = vld [vmem:[%s0 + $0x188] sm:$0xff]
    %v75 = vld [vmem:[%s0 + $0x190] sm:$0xff]
    %v76 = vld [vmem:[%s0 + $0x198] sm:$0xff]
    %v77 = vld [vmem:[%s0 + $0x1a0] sm:$0xff]
    %v78 = vld [vmem:[%s0 + $0x1a8] sm:$0xff]
    %v79 = vld [vmem:[%s0 + $0x1b0] sm:$0xff]
    %v80 = vld [vmem:[%s0 + $0x1b8] sm:$0xff]
    %v81 = vld [vmem:[%s0 + $0x1c0] sm:$0xff]
    %v82 = vld [vmem:[%s0 + $0x1c8] sm:$0xff]
    %v83 = vld [vmem:[%s0 + $0x1d0] sm:$0xff]
    %v84 = vld [vmem:[%s0 + $0x1d8] sm:$0xff]
    %v85 = vld [vmem:[%s0 + $0x1e0] sm:$0xff]
    %v86 = vld [vmem:[%s0 + $0x1e8] sm:$0xff]
    %v87 = vld [vmem:[%s0 + $0x1f0] sm:$0xff]
    %v88 = vld [vmem:[%s0 + $0x1f8] sm:$0xff]
    %v89 = vld [vmem:[%s1] sm:$0xff]
    %v90 = vld [vmem:[%s1 + $0x8] sm:$0xff]
    %v91 = vld [vmem:[%s1 + $0x10] sm:$0xff]
    %v92 = vld [vmem:[%s1 + $0x18] sm:$0xff]
    %v93 = vld [vmem:[%s1 + $0x20] sm:$0xff]
    %vm94 = vcmask 64512
    %v95 = vsel %vm94, %v25, 0.0
    %v96 = vsel %vm94, %v26, 0.0
    %v97 = vadd.f32 %v95, %v96
    %v98 = vsel %vm94, %v27, 0.0
    %v99 = vadd.f32 %v97, %v98
    %v100 = vsel %vm94, %v28, 0.0
    %v101 = vadd.f32 %v99, %v100
    %v102 = vrot.slane %v101, 4
    %v103 = vadd.f32 %v101, %v102
    %v104 = vrot.slane %v103, 2
    %v105 = vadd.f32 %v103, %v104
    %v106 = vrot.slane %v105, 1
    %v107 = vadd.f32 %v105, %v106
    %v108 = vsel %vm94, %v29, 0.0
    %v109 = vsel %vm94, %v30, 0.0
    %v110 = vadd.f32 %v108, %v109
    %v111 = vsel %vm94, %v31, 0.0
    %v112 = vadd.f32 %v110, %v111
    %v113 = vsel %vm94, %v32, 0.0
    %v114 = vadd.f32 %v112, %v113
    %v115 = vrot.slane %v114, 4
    %v116 = vadd.f32 %v114, %v115
    %v117 = vrot.slane %v116, 2
    %v118 = vadd.f32 %v116, %v117
    %v119 = vrot.slane %v118, 1
    %v120 = vadd.f32 %v118, %v119
    %v121 = vsel %vm94, %v33, 0.0
    %v122 = vsel %vm94, %v34, 0.0
    %v123 = vadd.f32 %v121, %v122
    %v124 = vsel %vm94, %v35, 0.0
    %v125 = vadd.f32 %v123, %v124
    %v126 = vsel %vm94, %v36, 0.0
    %v127 = vadd.f32 %v125, %v126
    %v128 = vrot.slane %v127, 4
    %v129 = vadd.f32 %v127, %v128
    %v130 = vrot.slane %v129, 2
    %v131 = vadd.f32 %v129, %v130
    %v132 = vrot.slane %v131, 1
    %v133 = vadd.f32 %v131, %v132
    %v134 = vsel %vm94, %v37, 0.0
    %v135 = vsel %vm94, %v38, 0.0
    %v136 = vadd.f32 %v134, %v135
    %v137 = vsel %vm94, %v39, 0.0
    %v138 = vadd.f32 %v136, %v137
    %v139 = vsel %vm94, %v40, 0.0
    %v140 = vadd.f32 %v138, %v139
    %v141 = vrot.slane %v140, 4
    %v142 = vadd.f32 %v140, %v141
    %v143 = vrot.slane %v142, 2
    %v144 = vadd.f32 %v142, %v143
    %v145 = vrot.slane %v144, 1
    %v146 = vadd.f32 %v144, %v145
    %v147 = vsel %vm94, %v41, 0.0
    %v148 = vsel %vm94, %v42, 0.0
    %v149 = vadd.f32 %v147, %v148
    %v150 = vsel %vm94, %v43, 0.0
    %v151 = vadd.f32 %v149, %v150
    %v152 = vsel %vm94, %v44, 0.0
    %v153 = vadd.f32 %v151, %v152
    %v154 = vrot.slane %v153, 4
    %v155 = vadd.f32 %v153, %v154
    %v156 = vrot.slane %v155, 2
    %v157 = vadd.f32 %v155, %v156
    %v158 = vrot.slane %v157, 1
    %v159 = vadd.f32 %v157, %v158
    %v160 = vsel %vm94, %v45, 0.0
    %v161 = vsel %vm94, %v46, 0.0
    %v162 = vadd.f32 %v160, %v161
    %v163 = vsel %vm94, %v47, 0.0
    %v164 = vadd.f32 %v162, %v163
    %v165 = vsel %vm94, %v48, 0.0
    %v166 = vadd.f32 %v164, %v165
    %v167 = vrot.slane %v166, 4
    %v168 = vadd.f32 %v166, %v167
    %v169 = vrot.slane %v168, 2
    %v170 = vadd.f32 %v168, %v169
    %v171 = vrot.slane %v170, 1
    %v172 = vadd.f32 %v170, %v171
    %v173 = vsel %vm94, %v49, 0.0
    %v174 = vsel %vm94, %v50, 0.0
    %v175 = vadd.f32 %v173, %v174
    %v176 = vsel %vm94, %v51, 0.0
    %v177 = vadd.f32 %v175, %v176
    %v178 = vsel %vm94, %v52, 0.0
    %v179 = vadd.f32 %v177, %v178
    %v180 = vrot.slane %v179, 4
    %v181 = vadd.f32 %v179, %v180
    %v182 = vrot.slane %v181, 2
    %v183 = vadd.f32 %v181, %v182
    %v184 = vrot.slane %v183, 1
    %v185 = vadd.f32 %v183, %v184
    %v186 = vsel %vm94, %v53, 0.0
    %v187 = vsel %vm94, %v54, 0.0
    %v188 = vadd.f32 %v186, %v187
    %v189 = vsel %vm94, %v55, 0.0
    %v190 = vadd.f32 %v188, %v189
    %v191 = vsel %vm94, %v56, 0.0
    %v192 = vadd.f32 %v190, %v191
    %v193 = vrot.slane %v192, 4
    %v194 = vadd.f32 %v192, %v193
    %v195 = vrot.slane %v194, 2
    %v196 = vadd.f32 %v194, %v195
    %v197 = vrot.slane %v196, 1
    %v198 = vadd.f32 %v196, %v197
    %v199 = vsel %vm94, %v57, 0.0
    %v200 = vsel %vm94, %v58, 0.0
    %v201 = vadd.f32 %v199, %v200
    %v202 = vsel %vm94, %v59, 0.0
    %v203 = vadd.f32 %v201, %v202
    %v204 = vsel %vm94, %v60, 0.0
    %v205 = vadd.f32 %v203, %v204
    %v206 = vrot.slane %v205, 4
    %v207 = vadd.f32 %v205, %v206
    %v208 = vrot.slane %v207, 2
    %v209 = vadd.f32 %v207, %v208
    %v210 = vrot.slane %v209, 1
    %v211 = vadd.f32 %v209, %v210
    %v212 = vsel %vm94, %v61, 0.0
    %v213 = vsel %vm94, %v62, 0.0
    %v214 = vadd.f32 %v212, %v213
    %v215 = vsel %vm94, %v63, 0.0
    %v216 = vadd.f32 %v214, %v215
    %v217 = vsel %vm94, %v64, 0.0
    %v218 = vadd.f32 %v216, %v217
    %v219 = vrot.slane %v218, 4
    %v220 = vadd.f32 %v218, %v219
    %v221 = vrot.slane %v220, 2
    %v222 = vadd.f32 %v220, %v221
    %v223 = vrot.slane %v222, 1
    %v224 = vadd.f32 %v222, %v223
    %v225 = vsel %vm94, %v65, 0.0
    %v226 = vsel %vm94, %v66, 0.0
    %v227 = vadd.f32 %v225, %v226
    %v228 = vsel %vm94, %v67, 0.0
    %v229 = vadd.f32 %v227, %v228
    %v230 = vsel %vm94, %v68, 0.0
    %v231 = vadd.f32 %v229, %v230
    %v232 = vrot.slane %v231, 4
    %v233 = vadd.f32 %v231, %v232
    %v234 = vrot.slane %v233, 2
    %v235 = vadd.f32 %v233, %v234
    %v236 = vrot.slane %v235, 1
    %v237 = vadd.f32 %v235, %v236
    %v238 = vsel %vm94, %v69, 0.0
    %v239 = vsel %vm94, %v70, 0.0
    %v240 = vadd.f32 %v238, %v239
    %v241 = vsel %vm94, %v71, 0.0
    %v242 = vadd.f32 %v240, %v241
    %v243 = vsel %vm94, %v72, 0.0
    %v244 = vadd.f32 %v242, %v243
    %v245 = vrot.slane %v244, 4
    %v246 = vadd.f32 %v244, %v245
    %v247 = vrot.slane %v246, 2
    %v248 = vadd.f32 %v246, %v247
    %v249 = vrot.slane %v248, 1
    %v250 = vadd.f32 %v248, %v249
    %v251 = vsel %vm94, %v73, 0.0
    %v252 = vsel %vm94, %v74, 0.0
    %v253 = vadd.f32 %v251, %v252
    %v254 = vsel %vm94, %v75, 0.0
    %v255 = vadd.f32 %v253, %v254
    %v256 = vsel %vm94, %v76, 0.0
    %v257 = vadd.f32 %v255, %v256
    %v258 = vrot.slane %v257, 4
    %v259 = vadd.f32 %v257, %v258
    %v260 = vrot.slane %v259, 2
    %v261 = vadd.f32 %v259, %v260
    %v262 = vrot.slane %v261, 1
    %v263 = vadd.f32 %v261, %v262
    %v264 = vsel %vm94, %v77, 0.0
    %v265 = vsel %vm94, %v78, 0.0
    %v266 = vadd.f32 %v264, %v265
    %v267 = vsel %vm94, %v79, 0.0
    %v268 = vadd.f32 %v266, %v267
    %v269 = vsel %vm94, %v80, 0.0
    %v270 = vadd.f32 %v268, %v269
    %v271 = vrot.slane %v270, 4
    %v272 = vadd.f32 %v270, %v271
    %v273 = vrot.slane %v272, 2
    %v274 = vadd.f32 %v272, %v273
    %v275 = vrot.slane %v274, 1
    %v276 = vadd.f32 %v274, %v275
    %v277 = vsel %vm94, %v81, 0.0
    %v278 = vsel %vm94, %v82, 0.0
    %v279 = vadd.f32 %v277, %v278
    %v280 = vsel %vm94, %v83, 0.0
    %v281 = vadd.f32 %v279, %v280
    %v282 = vsel %vm94, %v84, 0.0
    %v283 = vadd.f32 %v281, %v282
    %v284 = vrot.slane %v283, 4
    %v285 = vadd.f32 %v283, %v284
    %v286 = vrot.slane %v285, 2
    %v287 = vadd.f32 %v285, %v286
    %v288 = vrot.slane %v287, 1
    %v289 = vadd.f32 %v287, %v288
    %v290 = vsel %vm94, %v85, 0.0
    %v291 = vsel %vm94, %v86, 0.0
    %v292 = vadd.f32 %v290, %v291
    %v293 = vsel %vm94, %v87, 0.0
    %v294 = vadd.f32 %v292, %v293
    %v295 = vsel %vm94, %v88, 0.0
    %v296 = vadd.f32 %v294, %v295
    %v297 = vrot.slane %v296, 4
    %v298 = vadd.f32 %v296, %v297
    %v299 = vrot.slane %v298, 2
    %v300 = vadd.f32 %v298, %v299
    %v301 = vrot.slane %v300, 1
    %v302 = vadd.f32 %v300, %v301
    %v303 = vrcp.pop 32.0
    %v304 = vmul.f32 %v107, %v303
    %v305 = vmul.f32 %v120, %v303
    %v306 = vmul.f32 %v133, %v303
    %v307 = vmul.f32 %v146, %v303
    %v308 = vmul.f32 %v159, %v303
    %v309 = vmul.f32 %v172, %v303
    %v310 = vmul.f32 %v185, %v303
    %v311 = vmul.f32 %v198, %v303
    %v312 = vmul.f32 %v211, %v303
    %v313 = vmul.f32 %v224, %v303
    %v314 = vmul.f32 %v237, %v303
    %v315 = vmul.f32 %v250, %v303
    %v316 = vmul.f32 %v263, %v303
    %v317 = vmul.f32 %v276, %v303
    %v318 = vmul.f32 %v289, %v303
    %v319 = vmul.f32 %v302, %v303
    %v320 = vsub.f32 %v25, %v304
    %v321 = vsub.f32 %v26, %v304
    %v322 = vsub.f32 %v27, %v304
    %v323 = vsub.f32 %v28, %v304
    %v324 = vsub.f32 %v29, %v305
    %v325 = vsub.f32 %v30, %v305
    %v326 = vsub.f32 %v31, %v305
    %v327 = vsub.f32 %v32, %v305
    %v328 = vsub.f32 %v33, %v306
    %v329 = vsub.f32 %v34, %v306
    %v330 = vsub.f32 %v35, %v306
    %v331 = vsub.f32 %v36, %v306
    %v332 = vsub.f32 %v37, %v307
    %v333 = vsub.f32 %v38, %v307
    %v334 = vsub.f32 %v39, %v307
    %v335 = vsub.f32 %v40, %v307
    %v336 = vsub.f32 %v41, %v308
    %v337 = vsub.f32 %v42, %v308
    %v338 = vsub.f32 %v43, %v308
    %v339 = vsub.f32 %v44, %v308
    %v340 = vsub.f32 %v45, %v309
    %v341 = vsub.f32 %v46, %v309
    %v342 = vsub.f32 %v47, %v309
    %v343 = vsub.f32 %v48, %v309
    %v344 = vsub.f32 %v49, %v310
    %v345 = vsub.f32 %v50, %v310
    %v346 = vsub.f32 %v51, %v310
    %v347 = vsub.f32 %v52, %v310
    %v348 = vsub.f32 %v53, %v311
    %v349 = vsub.f32 %v54, %v311
    %v350 = vsub.f32 %v55, %v311
    %v351 = vsub.f32 %v56, %v311
    %v352 = vsub.f32 %v57, %v312
    %v353 = vsub.f32 %v58, %v312
    %v354 = vsub.f32 %v59, %v312
    %v355 = vsub.f32 %v60, %v312
    %v356 = vsub.f32 %v61, %v313
    %v357 = vsub.f32 %v62, %v313
    %v358 = vsub.f32 %v63, %v313
    %v359 = vsub.f32 %v64, %v313
    %v360 = vsub.f32 %v65, %v314
    %v361 = vsub.f32 %v66, %v314
    %v362 = vsub.f32 %v67, %v314
    %v363 = vsub.f32 %v68, %v314
    %v364 = vsub.f32 %v69, %v315
    %v365 = vsub.f32 %v70, %v315
    %v366 = vsub.f32 %v71, %v315
    %v367 = vsub.f32 %v72, %v315
    %v368 = vsub.f32 %v73, %v316
    %v369 = vsub.f32 %v74, %v316
    %v370 = vsub.f32 %v75, %v316
    %v371 = vsub.f32 %v76, %v316
    %v372 = vsub.f32 %v77, %v317
    %v373 = vsub.f32 %v78, %v317
    %v374 = vsub.f32 %v79, %v317
    %v375 = vsub.f32 %v80, %v317
    %v376 = vsub.f32 %v81, %v318
    %v377 = vsub.f32 %v82, %v318
    %v378 = vsub.f32 %v83, %v318
    %v379 = vsub.f32 %v84, %v318
    %v380 = vsub.f32 %v85, %v319
    %v381 = vsub.f32 %v86, %v319
    %v382 = vsub.f32 %v87, %v319
    %v383 = vsub.f32 %v88, %v319
    %v384 = vmul.f32 %v320, %v320
    %v385 = vmul.f32 %v321, %v321
    %v386 = vmul.f32 %v322, %v322
    %v387 = vmul.f32 %v323, %v323
    %v388 = vmul.f32 %v324, %v324
    %v389 = vmul.f32 %v325, %v325
    %v390 = vmul.f32 %v326, %v326
    %v391 = vmul.f32 %v327, %v327
    %v392 = vmul.f32 %v328, %v328
    %v393 = vmul.f32 %v329, %v329
    %v394 = vmul.f32 %v330, %v330
    %v395 = vmul.f32 %v331, %v331
    %v396 = vmul.f32 %v332, %v332
    %v397 = vmul.f32 %v333, %v333
    %v398 = vmul.f32 %v334, %v334
    %v399 = vmul.f32 %v335, %v335
    %v400 = vmul.f32 %v336, %v336
    %v401 = vmul.f32 %v337, %v337
    %v402 = vmul.f32 %v338, %v338
    %v403 = vmul.f32 %v339, %v339
    %v404 = vmul.f32 %v340, %v340
    %v405 = vmul.f32 %v341, %v341
    %v406 = vmul.f32 %v342, %v342
    %v407 = vmul.f32 %v343, %v343
    %v408 = vmul.f32 %v344, %v344
    %v409 = vmul.f32 %v345, %v345
    %v410 = vmul.f32 %v346, %v346
    %v411 = vmul.f32 %v347, %v347
    %v412 = vmul.f32 %v348, %v348
    %v413 = vmul.f32 %v349, %v349
    %v414 = vmul.f32 %v350, %v350
    %v415 = vmul.f32 %v351, %v351
    %v416 = vmul.f32 %v352, %v352
    %v417 = vmul.f32 %v353, %v353
    %v418 = vmul.f32 %v354, %v354
    %v419 = vmul.f32 %v355, %v355
    %v420 = vmul.f32 %v356, %v356
    %v421 = vmul.f32 %v357, %v357
    %v422 = vmul.f32 %v358, %v358
    %v423 = vmul.f32 %v359, %v359
    %v424 = vmul.f32 %v360, %v360
    %v425 = vmul.f32 %v361, %v361
    %v426 = vmul.f32 %v362, %v362
    %v427 = vmul.f32 %v363, %v363
    %v428 = vmul.f32 %v364, %v364
    %v429 = vmul.f32 %v365, %v365
    %v430 = vmul.f32 %v366, %v366
    %v431 = vmul.f32 %v367, %v367
    %v432 = vmul.f32 %v368, %v368
    %v433 = vmul.f32 %v369, %v369
    %v434 = vmul.f32 %v370, %v370
    %v435 = vmul.f32 %v371, %v371
    %v436 = vmul.f32 %v372, %v372
    %v437 = vmul.f32 %v373, %v373
    %v438 = vmul.f32 %v374, %v374
    %v439 = vmul.f32 %v375, %v375
    %v440 = vmul.f32 %v376, %v376
    %v441 = vmul.f32 %v377, %v377
    %v442 = vmul.f32 %v378, %v378
    %v443 = vmul.f32 %v379, %v379
    %v444 = vmul.f32 %v380, %v380
    %v445 = vmul.f32 %v381, %v381
    %v446 = vmul.f32 %v382, %v382
    %v447 = vmul.f32 %v383, %v383
    %v448 = vsel %vm94, %v384, 0.0
    %v449 = vsel %vm94, %v385, 0.0
    %v450 = vadd.f32 %v448, %v449
    %v451 = vsel %vm94, %v386, 0.0
    %v452 = vadd.f32 %v450, %v451
    %v453 = vsel %vm94, %v387, 0.0
    %v454 = vadd.f32 %v452, %v453
    %v455 = vrot.slane %v454, 4
    %v456 = vadd.f32 %v454, %v455
    %v457 = vrot.slane %v456, 2
    %v458 = vadd.f32 %v456, %v457
    %v459 = vrot.slane %v458, 1
    %v460 = vadd.f32 %v458, %v459
    %v461 = vsel %vm94, %v388, 0.0
    %v462 = vsel %vm94, %v389, 0.0
    %v463 = vadd.f32 %v461, %v462
    %v464 = vsel %vm94, %v390, 0.0
    %v465 = vadd.f32 %v463, %v464
    %v466 = vsel %vm94, %v391, 0.0
    %v467 = vadd.f32 %v465, %v466
    %v468 = vrot.slane %v467, 4
    %v469 = vadd.f32 %v467, %v468
    %v470 = vrot.slane %v469, 2
    %v471 = vadd.f32 %v469, %v470
    %v472 = vrot.slane %v471, 1
    %v473 = vadd.f32 %v471, %v472
    %v474 = vsel %vm94, %v392, 0.0
    %v475 = vsel %vm94, %v393, 0.0
    %v476 = vadd.f32 %v474, %v475
    %v477 = vsel %vm94, %v394, 0.0
    %v478 = vadd.f32 %v476, %v477
    %v479 = vsel %vm94, %v395, 0.0
    %v480 = vadd.f32 %v478, %v479
    %v481 = vrot.slane %v480, 4
    %v482 = vadd.f32 %v480, %v481
    %v483 = vrot.slane %v482, 2
    %v484 = vadd.f32 %v482, %v483
    %v485 = vrot.slane %v484, 1
    %v486 = vadd.f32 %v484, %v485
    %v487 = vsel %vm94, %v396, 0.0
    %v488 = vsel %vm94, %v397, 0.0
    %v489 = vadd.f32 %v487, %v488
    %v490 = vsel %vm94, %v398, 0.0
    %v491 = vadd.f32 %v489, %v490
    %v492 = vsel %vm94, %v399, 0.0
    %v493 = vadd.f32 %v491, %v492
    %v494 = vrot.slane %v493, 4
    %v495 = vadd.f32 %v493, %v494
    %v496 = vrot.slane %v495, 2
    %v497 = vadd.f32 %v495, %v496
    %v498 = vrot.slane %v497, 1
    %v499 = vadd.f32 %v497, %v498
    %v500 = vsel %vm94, %v400, 0.0
    %v501 = vsel %vm94, %v401, 0.0
    %v502 = vadd.f32 %v500, %v501
    %v503 = vsel %vm94, %v402, 0.0
    %v504 = vadd.f32 %v502, %v503
    %v505 = vsel %vm94, %v403, 0.0
    %v506 = vadd.f32 %v504, %v505
    %v507 = vrot.slane %v506, 4
    %v508 = vadd.f32 %v506, %v507
    %v509 = vrot.slane %v508, 2
    %v510 = vadd.f32 %v508, %v509
    %v511 = vrot.slane %v510, 1
    %v512 = vadd.f32 %v510, %v511
    %v513 = vsel %vm94, %v404, 0.0
    %v514 = vsel %vm94, %v405, 0.0
    %v515 = vadd.f32 %v513, %v514
    %v516 = vsel %vm94, %v406, 0.0
    %v517 = vadd.f32 %v515, %v516
    %v518 = vsel %vm94, %v407, 0.0
    %v519 = vadd.f32 %v517, %v518
    %v520 = vrot.slane %v519, 4
    %v521 = vadd.f32 %v519, %v520
    %v522 = vrot.slane %v521, 2
    %v523 = vadd.f32 %v521, %v522
    %v524 = vrot.slane %v523, 1
    %v525 = vadd.f32 %v523, %v524
    %v526 = vsel %vm94, %v408, 0.0
    %v527 = vsel %vm94, %v409, 0.0
    %v528 = vadd.f32 %v526, %v527
    %v529 = vsel %vm94, %v410, 0.0
    %v530 = vadd.f32 %v528, %v529
    %v531 = vsel %vm94, %v411, 0.0
    %v532 = vadd.f32 %v530, %v531
    %v533 = vrot.slane %v532, 4
    %v534 = vadd.f32 %v532, %v533
    %v535 = vrot.slane %v534, 2
    %v536 = vadd.f32 %v534, %v535
    %v537 = vrot.slane %v536, 1
    %v538 = vadd.f32 %v536, %v537
    %v539 = vsel %vm94, %v412, 0.0
    %v540 = vsel %vm94, %v413, 0.0
    %v541 = vadd.f32 %v539, %v540
    %v542 = vsel %vm94, %v414, 0.0
    %v543 = vadd.f32 %v541, %v542
    %v544 = vsel %vm94, %v415, 0.0
    %v545 = vadd.f32 %v543, %v544
    %v546 = vrot.slane %v545, 4
    %v547 = vadd.f32 %v545, %v546
    %v548 = vrot.slane %v547, 2
    %v549 = vadd.f32 %v547, %v548
    %v550 = vrot.slane %v549, 1
    %v551 = vadd.f32 %v549, %v550
    %v552 = vsel %vm94, %v416, 0.0
    %v553 = vsel %vm94, %v417, 0.0
    %v554 = vadd.f32 %v552, %v553
    %v555 = vsel %vm94, %v418, 0.0
    %v556 = vadd.f32 %v554, %v555
    %v557 = vsel %vm94, %v419, 0.0
    %v558 = vadd.f32 %v556, %v557
    %v559 = vrot.slane %v558, 4
    %v560 = vadd.f32 %v558, %v559
    %v561 = vrot.slane %v560, 2
    %v562 = vadd.f32 %v560, %v561
    %v563 = vrot.slane %v562, 1
    %v564 = vadd.f32 %v562, %v563
    %v565 = vsel %vm94, %v420, 0.0
    %v566 = vsel %vm94, %v421, 0.0
    %v567 = vadd.f32 %v565, %v566
    %v568 = vsel %vm94, %v422, 0.0
    %v569 = vadd.f32 %v567, %v568
    %v570 = vsel %vm94, %v423, 0.0
    %v571 = vadd.f32 %v569, %v570
    %v572 = vrot.slane %v571, 4
    %v573 = vadd.f32 %v571, %v572
    %v574 = vrot.slane %v573, 2
    %v575 = vadd.f32 %v573, %v574
    %v576 = vrot.slane %v575, 1
    %v577 = vadd.f32 %v575, %v576
    %v578 = vsel %vm94, %v424, 0.0
    %v579 = vsel %vm94, %v425, 0.0
    %v580 = vadd.f32 %v578, %v579
    %v581 = vsel %vm94, %v426, 0.0
    %v582 = vadd.f32 %v580, %v581
    %v583 = vsel %vm94, %v427, 0.0
    %v584 = vadd.f32 %v582, %v583
    %v585 = vrot.slane %v584, 4
    %v586 = vadd.f32 %v584, %v585
    %v587 = vrot.slane %v586, 2
    %v588 = vadd.f32 %v586, %v587
    %v589 = vrot.slane %v588, 1
    %v590 = vadd.f32 %v588, %v589
    %v591 = vsel %vm94, %v428, 0.0
    %v592 = vsel %vm94, %v429, 0.0
    %v593 = vadd.f32 %v591, %v592
    %v594 = vsel %vm94, %v430, 0.0
    %v595 = vadd.f32 %v593, %v594
    %v596 = vsel %vm94, %v431, 0.0
    %v597 = vadd.f32 %v595, %v596
    %v598 = vrot.slane %v597, 4
    %v599 = vadd.f32 %v597, %v598
    %v600 = vrot.slane %v599, 2
    %v601 = vadd.f32 %v599, %v600
    %v602 = vrot.slane %v601, 1
    %v603 = vadd.f32 %v601, %v602
    %v604 = vsel %vm94, %v432, 0.0
    %v605 = vsel %vm94, %v433, 0.0
    %v606 = vadd.f32 %v604, %v605
    %v607 = vsel %vm94, %v434, 0.0
    %v608 = vadd.f32 %v606, %v607
    %v609 = vsel %vm94, %v435, 0.0
    %v610 = vadd.f32 %v608, %v609
    %v611 = vrot.slane %v610, 4
    %v612 = vadd.f32 %v610, %v611
    %v613 = vrot.slane %v612, 2
    %v614 = vadd.f32 %v612, %v613
    %v615 = vrot.slane %v614, 1
    %v616 = vadd.f32 %v614, %v615
    %v617 = vsel %vm94, %v436, 0.0
    %v618 = vsel %vm94, %v437, 0.0
    %v619 = vadd.f32 %v617, %v618
    %v620 = vsel %vm94, %v438, 0.0
    %v621 = vadd.f32 %v619, %v620
    %v622 = vsel %vm94, %v439, 0.0
    %v623 = vadd.f32 %v621, %v622
    %v624 = vrot.slane %v623, 4
    %v625 = vadd.f32 %v623, %v624
    %v626 = vrot.slane %v625, 2
    %v627 = vadd.f32 %v625, %v626
    %v628 = vrot.slane %v627, 1
    %v629 = vadd.f32 %v627, %v628
    %v630 = vsel %vm94, %v440, 0.0
    %v631 = vsel %vm94, %v441, 0.0
    %v632 = vadd.f32 %v630, %v631
    %v633 = vsel %vm94, %v442, 0.0
    %v634 = vadd.f32 %v632, %v633
    %v635 = vsel %vm94, %v443, 0.0
    %v636 = vadd.f32 %v634, %v635
    %v637 = vrot.slane %v636, 4
    %v638 = vadd.f32 %v636, %v637
    %v639 = vrot.slane %v638, 2
    %v640 = vadd.f32 %v638, %v639
    %v641 = vrot.slane %v640, 1
    %v642 = vadd.f32 %v640, %v641
    %v643 = vsel %vm94, %v444, 0.0
    %v644 = vsel %vm94, %v445, 0.0
    %v645 = vadd.f32 %v643, %v644
    %v646 = vsel %vm94, %v446, 0.0
    %v647 = vadd.f32 %v645, %v646
    %v648 = vsel %vm94, %v447, 0.0
    %v649 = vadd.f32 %v647, %v648
    %v650 = vrot.slane %v649, 4
    %v651 = vadd.f32 %v649, %v650
    %v652 = vrot.slane %v651, 2
    %v653 = vadd.f32 %v651, %v652
    %v654 = vrot.slane %v653, 1
    %v655 = vadd.f32 %v653, %v654
    %v656 = vmul.f32 %v460, %v303
    %v657 = vmul.f32 %v473, %v303
    %v658 = vmul.f32 %v486, %v303
    %v659 = vmul.f32 %v499, %v303
    %v660 = vmul.f32 %v512, %v303
    %v661 = vmul.f32 %v525, %v303
    %v662 = vmul.f32 %v538, %v303
    %v663 = vmul.f32 %v551, %v303
    %v664 = vmul.f32 %v564, %v303
    %v665 = vmul.f32 %v577, %v303
    %v666 = vmul.f32 %v590, %v303
    %v667 = vmul.f32 %v603, %v303
    %v668 = vmul.f32 %v616, %v303
    %v669 = vmul.f32 %v629, %v303
    %v670 = vmul.f32 %v642, %v303
    %v671 = vmul.f32 %v655, %v303
    %v672 = vadd.f32 %v656, 1e-05
    %v673 = vadd.f32 %v657, 1e-05
    %v674 = vadd.f32 %v658, 1e-05
    %v675 = vadd.f32 %v659, 1e-05
    %v676 = vadd.f32 %v660, 1e-05
    %v677 = vadd.f32 %v661, 1e-05
    %v678 = vadd.f32 %v662, 1e-05
    %v679 = vadd.f32 %v663, 1e-05
    %v680 = vadd.f32 %v664, 1e-05
    %v681 = vadd.f32 %v665, 1e-05
    %v682 = vadd.f32 %v666, 1e-05
    %v683 = vadd.f32 %v667, 1e-05
    %v684 = vadd.f32 %v668, 1e-05
    %v685 = vadd.f32 %v669, 1e-05
    %v686 = vadd.f32 %v670, 1e-05
    %v687 = vadd.f32 %v671, 1e-05
    %v688 = vrsqrt.pop %v672
    %v689 = vrsqrt.pop %v673
    %v690 = vrsqrt.pop %v674
    %v691 = vrsqrt.pop %v675
    %v692 = vrsqrt.pop %v676
    %v693 = vrsqrt.pop %v677
    %v694 = vrsqrt.pop %v678
    %v695 = vrsqrt.pop %v679
    %v696 = vrsqrt.pop %v680
    %v697 = vrsqrt.pop %v681
    %v698 = vrsqrt.pop %v682
    %v699 = vrsqrt.pop %v683
    %v700 = vrsqrt.pop %v684
    %v701 = vrsqrt.pop %v685
    %v702 = vrsqrt.pop %v686
    %v703 = vrsqrt.pop %v687
    %v704 = vmul.f32 %v320, %v688
    %v705 = vmul.f32 %v321, %v688
    %v706 = vmul.f32 %v322, %v688
    %v707 = vmul.f32 %v323, %v688
    %v708 = vmul.f32 %v324, %v689
    %v709 = vmul.f32 %v325, %v689
    %v710 = vmul.f32 %v326, %v689
    %v711 = vmul.f32 %v327, %v689
    %v712 = vmul.f32 %v328, %v690
    %v713 = vmul.f32 %v329, %v690
    %v714 = vmul.f32 %v330, %v690
    %v715 = vmul.f32 %v331, %v690
    %v716 = vmul.f32 %v332, %v691
    %v717 = vmul.f32 %v333, %v691
    %v718 = vmul.f32 %v334, %v691
    %v719 = vmul.f32 %v335, %v691
    %v720 = vmul.f32 %v336, %v692
    %v721 = vmul.f32 %v337, %v692
    %v722 = vmul.f32 %v338, %v692
    %v723 = vmul.f32 %v339, %v692
    %v724 = vmul.f32 %v340, %v693
    %v725 = vmul.f32 %v341, %v693
    %v726 = vmul.f32 %v342, %v693
    %v727 = vmul.f32 %v343, %v693
    %v728 = vmul.f32 %v344, %v694
    %v729 = vmul.f32 %v345, %v694
    %v730 = vmul.f32 %v346, %v694
    %v731 = vmul.f32 %v347, %v694
    %v732 = vmul.f32 %v348, %v695
    %v733 = vmul.f32 %v349, %v695
    %v734 = vmul.f32 %v350, %v695
    %v735 = vmul.f32 %v351, %v695
    %v736 = vmul.f32 %v352, %v696
    %v737 = vmul.f32 %v353, %v696
    %v738 = vmul.f32 %v354, %v696
    %v739 = vmul.f32 %v355, %v696
    %v740 = vmul.f32 %v356, %v697
    %v741 = vmul.f32 %v357, %v697
    %v742 = vmul.f32 %v358, %v697
    %v743 = vmul.f32 %v359, %v697
    %v744 = vmul.f32 %v360, %v698
    %v745 = vmul.f32 %v361, %v698
    %v746 = vmul.f32 %v362, %v698
    %v747 = vmul.f32 %v363, %v698
    %v748 = vmul.f32 %v364, %v699
    %v749 = vmul.f32 %v365, %v699
    %v750 = vmul.f32 %v366, %v699
    %v751 = vmul.f32 %v367, %v699
    %v752 = vmul.f32 %v368, %v700
    %v753 = vmul.f32 %v369, %v700
    %v754 = vmul.f32 %v370, %v700
    %v755 = vmul.f32 %v371, %v700
    %v756 = vmul.f32 %v372, %v701
    %v757 = vmul.f32 %v373, %v701
    %v758 = vmul.f32 %v374, %v701
    %v759 = vmul.f32 %v375, %v701
    %v760 = vmul.f32 %v376, %v702
    %v761 = vmul.f32 %v377, %v702
    %v762 = vmul.f32 %v378, %v702
    %v763 = vmul.f32 %v379, %v702
    %v764 = vmul.f32 %v380, %v703
    %v765 = vmul.f32 %v381, %v703
    %v766 = vmul.f32 %v382, %v703
    %v767 = vmul.f32 %v383, %v703
    %769 = vset.pattern.permute.xlu0 0
    %770 = vperm.xlu0 %769, %v90
    %v771 = vpop.permute.xlu0 %770
    %774 = vset.pattern.permute.xlu0 0
    %775 = vperm.xlu0 %774, %v91
    %v776 = vpop.permute.xlu0 %775
    %779 = vset.pattern.permute.xlu0 0
    %780 = vperm.xlu0 %779, %v92
    %v781 = vpop.permute.xlu0 %780
    %784 = vset.pattern.permute.xlu0 0
    %785 = vperm.xlu0 %784, %v93
    %v786 = vpop.permute.xlu0 %785
    %v788 = vmul.f32 %v704, %v771
    %v789 = vmul.f32 %v705, %v776
    %v790 = vmul.f32 %v706, %v781
    %v791 = vmul.f32 %v707, %v786
    %v792 = vmul.f32 %v708, %v771
    %v793 = vmul.f32 %v709, %v776
    %v794 = vmul.f32 %v710, %v781
    %v795 = vmul.f32 %v711, %v786
    %v796 = vmul.f32 %v712, %v771
    %v797 = vmul.f32 %v713, %v776
    %v798 = vmul.f32 %v714, %v781
    %v799 = vmul.f32 %v715, %v786
    %v800 = vmul.f32 %v716, %v771
    %v801 = vmul.f32 %v717, %v776
    %v802 = vmul.f32 %v718, %v781
    %v803 = vmul.f32 %v719, %v786
    %v804 = vmul.f32 %v720, %v771
    %v805 = vmul.f32 %v721, %v776
    %v806 = vmul.f32 %v722, %v781
    %v807 = vmul.f32 %v723, %v786
    %v808 = vmul.f32 %v724, %v771
    %v809 = vmul.f32 %v725, %v776
    %v810 = vmul.f32 %v726, %v781
    %v811 = vmul.f32 %v727, %v786
    %v812 = vmul.f32 %v728, %v771
    %v813 = vmul.f32 %v729, %v776
    %v814 = vmul.f32 %v730, %v781
    %v815 = vmul.f32 %v731, %v786
    %v816 = vmul.f32 %v732, %v771
    %v817 = vmul.f32 %v733, %v776
    %v818 = vmul.f32 %v734, %v781
    %v819 = vmul.f32 %v735, %v786
    %v820 = vmul.f32 %v736, %v771
    %v821 = vmul.f32 %v737, %v776
    %v822 = vmul.f32 %v738, %v781
    %v823 = vmul.f32 %v739, %v786
    %v824 = vmul.f32 %v740, %v771
    %v825 = vmul.f32 %v741, %v776
    %v826 = vmul.f32 %v742, %v781
    %v827 = vmul.f32 %v743, %v786
    %v828 = vmul.f32 %v744, %v771
    %v829 = vmul.f32 %v745, %v776
    %v830 = vmul.f32 %v746, %v781
    %v831 = vmul.f32 %v747, %v786
    %v832 = vmul.f32 %v748, %v771
    %v833 = vmul.f32 %v749, %v776
    %v834 = vmul.f32 %v750, %v781
    %v835 = vmul.f32 %v751, %v786
    %v836 = vmul.f32 %v752, %v771
    %v837 = vmul.f32 %v753, %v776
    %v838 = vmul.f32 %v754, %v781
    %v839 = vmul.f32 %v755, %v786
    %v840 = vmul.f32 %v756, %v771
    %v841 = vmul.f32 %v757, %v776
    %v842 = vmul.f32 %v758, %v781
    %v843 = vmul.f32 %v759, %v786
    %v844 = vmul.f32 %v760, %v771
    %v845 = vmul.f32 %v761, %v776
    %v846 = vmul.f32 %v762, %v781
    %v847 = vmul.f32 %v763, %v786
    %v848 = vmul.f32 %v764, %v771
    %v849 = vmul.f32 %v765, %v776
    %v850 = vmul.f32 %v766, %v781
    %v851 = vmul.f32 %v767, %v786
    %852 = vset.pattern.permute.xlu0 1
    %853 = vperm.xlu0 %852, %v90
    %v854 = vpop.permute.xlu0 %853
    %856 = vset.pattern.permute.xlu0 1
    %857 = vperm.xlu0 %856, %v91
    %v858 = vpop.permute.xlu0 %857
    %860 = vset.pattern.permute.xlu0 1
    %861 = vperm.xlu0 %860, %v92
    %v862 = vpop.permute.xlu0 %861
    %864 = vset.pattern.permute.xlu0 1
    %865 = vperm.xlu0 %864, %v93
    %v866 = vpop.permute.xlu0 %865
    %v868 = vadd.f32 %v788, %v854
    %v869 = vadd.f32 %v789, %v858
    %v870 = vadd.f32 %v790, %v862
    %v871 = vadd.f32 %v791, %v866
    %v872 = vadd.f32 %v792, %v854
    %v873 = vadd.f32 %v793, %v858
    %v874 = vadd.f32 %v794, %v862
    %v875 = vadd.f32 %v795, %v866
    %v876 = vadd.f32 %v796, %v854
    %v877 = vadd.f32 %v797, %v858
    %v878 = vadd.f32 %v798, %v862
    %v879 = vadd.f32 %v799, %v866
    %v880 = vadd.f32 %v800, %v854
    %v881 = vadd.f32 %v801, %v858
    %v882 = vadd.f32 %v802, %v862
    %v883 = vadd.f32 %v803, %v866
    %v884 = vadd.f32 %v804, %v854
    %v885 = vadd.f32 %v805, %v858
    %v886 = vadd.f32 %v806, %v862
    %v887 = vadd.f32 %v807, %v866
    %v888 = vadd.f32 %v808, %v854
    %v889 = vadd.f32 %v809, %v858
    %v890 = vadd.f32 %v810, %v862
    %v891 = vadd.f32 %v811, %v866
    %v892 = vadd.f32 %v812, %v854
    %v893 = vadd.f32 %v813, %v858
    %v894 = vadd.f32 %v814, %v862
    %v895 = vadd.f32 %v815, %v866
    %v896 = vadd.f32 %v816, %v854
    %v897 = vadd.f32 %v817, %v858
    %v898 = vadd.f32 %v818, %v862
    %v899 = vadd.f32 %v819, %v866
    %v900 = vadd.f32 %v820, %v854
    %v901 = vadd.f32 %v821, %v858
    %v902 = vadd.f32 %v822, %v862
    %v903 = vadd.f32 %v823, %v866
    %v904 = vadd.f32 %v824, %v854
    %v905 = vadd.f32 %v825, %v858
    %v906 = vadd.f32 %v826, %v862
    %v907 = vadd.f32 %v827, %v866
    %v908 = vadd.f32 %v828, %v854
    %v909 = vadd.f32 %v829, %v858
    %v910 = vadd.f32 %v830, %v862
    %v911 = vadd.f32 %v831, %v866
    %v912 = vadd.f32 %v832, %v854
    %v913 = vadd.f32 %v833, %v858
    %v914 = vadd.f32 %v834, %v862
    %v915 = vadd.f32 %v835, %v866
    %v916 = vadd.f32 %v836, %v854
    %v917 = vadd.f32 %v837, %v858
    %v918 = vadd.f32 %v838, %v862
    %v919 = vadd.f32 %v839, %v866
    %v920 = vadd.f32 %v840, %v854
    %v921 = vadd.f32 %v841, %v858
    %v922 = vadd.f32 %v842, %v862
    %v923 = vadd.f32 %v843, %v866
    %v924 = vadd.f32 %v844, %v854
    %v925 = vadd.f32 %v845, %v858
    %v926 = vadd.f32 %v846, %v862
    %v927 = vadd.f32 %v847, %v866
    %v928 = vadd.f32 %v848, %v854
    %v929 = vadd.f32 %v849, %v858
    %v930 = vadd.f32 %v850, %v862
    %v931 = vadd.f32 %v851, %v866
    %v932 = vpack.c.bf16 %v869, %v868
    %v933 = vpack.c.bf16 %v871, %v870
    %v934 = vpack.c.bf16 %v873, %v872
    %v935 = vpack.c.bf16 %v875, %v874
    %v936 = vpack.c.bf16 %v877, %v876
    %v937 = vpack.c.bf16 %v879, %v878
    %v938 = vpack.c.bf16 %v881, %v880
    %v939 = vpack.c.bf16 %v883, %v882
    %v940 = vpack.c.bf16 %v885, %v884
    %v941 = vpack.c.bf16 %v887, %v886
    %v942 = vpack.c.bf16 %v889, %v888
    %v943 = vpack.c.bf16 %v891, %v890
    %v944 = vpack.c.bf16 %v893, %v892
    %v945 = vpack.c.bf16 %v895, %v894
    %v946 = vpack.c.bf16 %v897, %v896
    %v947 = vpack.c.bf16 %v899, %v898
    %v948 = vpack.c.bf16 %v901, %v900
    %v949 = vpack.c.bf16 %v903, %v902
    %v950 = vpack.c.bf16 %v905, %v904
    %v951 = vpack.c.bf16 %v907, %v906
    %v952 = vpack.c.bf16 %v909, %v908
    %v953 = vpack.c.bf16 %v911, %v910
    %v954 = vpack.c.bf16 %v913, %v912
    %v955 = vpack.c.bf16 %v915, %v914
    %v956 = vpack.c.bf16 %v917, %v916
    %v957 = vpack.c.bf16 %v919, %v918
    %v958 = vpack.c.bf16 %v921, %v920
    %v959 = vpack.c.bf16 %v923, %v922
    %v960 = vpack.c.bf16 %v925, %v924
    %v961 = vpack.c.bf16 %v927, %v926
    %v962 = vpack.c.bf16 %v929, %v928
    %v963 = vpack.c.bf16 %v931, %v930
    %v964 = vld [vmem:[%s2] sm:$0xf]
    %v965 = vlaneseq
    %v966 = vshrl.u32 %v965, 7
    %v967 = vsub.s32 2, %v966
    %v968 = vrot.slane %v89, %v967
    %v970 = vsel %vm94, %v932, 0
    %v973 = vsel %vm94, %v933, 0
    %v976 = vsel %vm94, %v934, 0
    %v979 = vsel %vm94, %v935, 0
    %v982 = vsel %vm94, %v936, 0
    %v985 = vsel %vm94, %v937, 0
    %v988 = vsel %vm94, %v938, 0
    %v991 = vsel %vm94, %v939, 0
    %v994 = vsel %vm94, %v940, 0
    %v997 = vsel %vm94, %v941, 0
    %v1000 = vsel %vm94, %v942, 0
    %v1003 = vsel %vm94, %v943, 0
    %v1006 = vsel %vm94, %v944, 0
    %v1009 = vsel %vm94, %v945, 0
    %v1012 = vsel %vm94, %v946, 0
    %v1015 = vsel %vm94, %v947, 0
    %v1018 = vsel %vm94, %v948, 0
    %v1021 = vsel %vm94, %v949, 0
    %v1024 = vsel %vm94, %v950, 0
    %v1027 = vsel %vm94, %v951, 0
    %v1030 = vsel %vm94, %v952, 0
    %v1033 = vsel %vm94, %v953, 0
    %v1036 = vsel %vm94, %v954, 0
    %v1039 = vsel %vm94, %v955, 0
    %v1042 = vsel %vm94, %v956, 0
    %v1045 = vsel %vm94, %v957, 0
    %v1048 = vsel %vm94, %v958, 0
    %v1051 = vsel %vm94, %v959, 0
    %v1054 = vsel %vm94, %v960, 0
    %v1057 = vsel %vm94, %v961, 0
    %v1060 = vsel %vm94, %v962, 0
    %v1063 = vsel %vm94, %v963, 0
    %vm1065 = vcmask 1043456
    %v1067 = vsel %vm1065, %v964, 0
    %1069 = vmatprep.subr.bf16.mxu0 0
    %1070 = vmatpush1.bf16.msra.mxu0 %v1067
    %1071 = vmatprep.subr.bf16.mxu0 0
    %1072 = vmatpush1.bf16.msra.mxu0 0
    %1073 = vmatprep.subr.bf16.mxu0 0
    %1074 = vmatpush1.bf16.msra.mxu0 0
    %1075 = vmatprep.subr.bf16.mxu0 0
    %1076 = vmatpush1.bf16.msra.mxu0 0
    %1077 = vmatprep.subr.bf16.mxu0 0
    %1078 = vmatpush1.bf16.msra.mxu0 0
    %1079 = vmatprep.subr.bf16.mxu0 0
    %1080 = vmatpush1.bf16.msra.mxu0 0
    %1081 = vmatprep.subr.bf16.mxu0 0
    %1082 = vmatpush1.bf16.msra.mxu0 0
    %1083 = vmatprep.subr.bf16.mxu0 0
    %1084 = vmatpush1.bf16.msra.mxu0 0
    %1085 = vmatprep.subr.bf16.mxu0 0
    %1086 = vmatpush1.bf16.msra.mxu0 0
    %1087 = vmatprep.subr.bf16.mxu0 0
    %1088 = vmatpush1.bf16.msra.mxu0 0
    %1089 = vmatprep.subr.bf16.mxu0 0
    %1090 = vmatpush1.bf16.msra.mxu0 0
    %1091 = vmatprep.subr.bf16.mxu0 0
    %1092 = vmatpush1.bf16.msra.mxu0 0
    %1093 = vmatprep.subr.bf16.mxu0 0
    %1094 = vmatpush1.bf16.msra.mxu0 0
    %1095 = vmatprep.subr.bf16.mxu0 0
    %1096 = vmatpush1.bf16.msra.mxu0 0
    %1097 = vmatprep.subr.bf16.mxu0 0
    %1098 = vmatpush1.bf16.msra.mxu0 0
    %1099 = vmatprep.subr.bf16.mxu0 0
    %1100 = vmatpush1.bf16.msra.mxu0 0
    %1101 = vmatprep.mubr.bf16.mxu0 0
    %1102 = vmatmul.mubr.bf16.gmra.mrb[0].mxu0 %v970
    %v1103 = vpop.f32.mrb[0].mxu0
    %v1104 = vadd.f32 %v968, %v1103
    %v1105 = vpop.f32.mrb[0].mxu0
    %v1106 = vpop.f32.mrb[0].mxu0
    %v1107 = vadd.f32 %v968, %v1106
    %v1108 = vpop.f32.mrb[0].mxu0
    %1109 = vmatprep.mubr.bf16.mxu0 0
    %1110 = vmatmul.mubr.bf16.gmra.mrb[0].mxu0 %v973
    %v1111 = vpop.f32.mrb[0].mxu0
    %v1112 = vadd.f32 %v968, %v1111
    %v1113 = vpop.f32.mrb[0].mxu0
    %v1114 = vpop.f32.mrb[0].mxu0
    %v1115 = vadd.f32 %v968, %v1114
    %v1116 = vpop.f32.mrb[0].mxu0
    %1117 = vmatprep.mubr.bf16.mxu0 0
    %1118 = vmatmul.mubr.bf16.gmra.mrb[0].mxu0 %v976
    %v1119 = vpop.f32.mrb[0].mxu0
    %v1120 = vadd.f32 %v968, %v1119
    %v1121 = vpop.f32.mrb[0].mxu0
    %v1122 = vpop.f32.mrb[0].mxu0
    %v1123 = vadd.f32 %v968, %v1122
    %v1124 = vpop.f32.mrb[0].mxu0
    %1125 = vmatprep.mubr.bf16.mxu0 0
    %1126 = vmatmul.mubr.bf16.gmra.mrb[0].mxu0 %v979
    %v1127 = vpop.f32.mrb[0].mxu0
    %v1128 = vadd.f32 %v968, %v1127
    %v1129 = vpop.f32.mrb[0].mxu0
    %v1130 = vpop.f32.mrb[0].mxu0
    %v1131 = vadd.f32 %v968, %v1130
    %v1132 = vpop.f32.mrb[0].mxu0
    %1133 = vmatprep.mubr.bf16.mxu0 0
    %1134 = vmatmul.mubr.bf16.gmra.mrb[0].mxu0 %v982
    %v1135 = vpop.f32.mrb[0].mxu0
    %v1136 = vadd.f32 %v968, %v1135
    %v1137 = vpop.f32.mrb[0].mxu0
    %v1138 = vpop.f32.mrb[0].mxu0
    %v1139 = vadd.f32 %v968, %v1138
    %v1140 = vpop.f32.mrb[0].mxu0
    %1141 = vmatprep.mubr.bf16.mxu0 0
    %1142 = vmatmul.mubr.bf16.gmra.mrb[0].mxu0 %v985
    %v1143 = vpop.f32.mrb[0].mxu0
    %v1144 = vadd.f32 %v968, %v1143
    %v1145 = vpop.f32.mrb[0].mxu0
    %v1146 = vpop.f32.mrb[0].mxu0
    %v1147 = vadd.f32 %v968, %v1146
    %v1148 = vpop.f32.mrb[0].mxu0
    %1149 = vmatprep.mubr.bf16.mxu0 0
    %1150 = vmatmul.mubr.bf16.gmra.mrb[0].mxu0 %v988
    %v1151 = vpop.f32.mrb[0].mxu0
    %v1152 = vadd.f32 %v968, %v1151
    %v1153 = vpop.f32.mrb[0].mxu0
    %v1154 = vpop.f32.mrb[0].mxu0
    %v1155 = vadd.f32 %v968, %v1154
    %v1156 = vpop.f32.mrb[0].mxu0
    %1157 = vmatprep.mubr.bf16.mxu0 0
    %1158 = vmatmul.mubr.bf16.gmra.mrb[0].mxu0 %v991
    %v1159 = vpop.f32.mrb[0].mxu0
    %v1160 = vadd.f32 %v968, %v1159
    %v1161 = vpop.f32.mrb[0].mxu0
    %v1162 = vpop.f32.mrb[0].mxu0
    %v1163 = vadd.f32 %v968, %v1162
    %v1164 = vpop.f32.mrb[0].mxu0
    %1165 = vmatprep.mubr.bf16.mxu0 0
    %1166 = vmatmul.mubr.bf16.gmra.mrb[0].mxu0 %v994
    %v1167 = vpop.f32.mrb[0].mxu0
    %v1168 = vadd.f32 %v968, %v1167
    %v1169 = vpop.f32.mrb[0].mxu0
    %v1170 = vpop.f32.mrb[0].mxu0
    %v1171 = vadd.f32 %v968, %v1170
    %v1172 = vpop.f32.mrb[0].mxu0
    %1173 = vmatprep.mubr.bf16.mxu0 0
    %1174 = vmatmul.mubr.bf16.gmra.mrb[0].mxu0 %v997
    %v1175 = vpop.f32.mrb[0].mxu0
    %v1176 = vadd.f32 %v968, %v1175
    %v1177 = vpop.f32.mrb[0].mxu0
    %v1178 = vpop.f32.mrb[0].mxu0
    %v1179 = vadd.f32 %v968, %v1178
    %v1180 = vpop.f32.mrb[0].mxu0
    %1181 = vmatprep.mubr.bf16.mxu0 0
    %1182 = vmatmul.mubr.bf16.gmra.mrb[0].mxu0 %v1000
    %v1183 = vpop.f32.mrb[0].mxu0
    %v1184 = vadd.f32 %v968, %v1183
    %v1185 = vpop.f32.mrb[0].mxu0
    %v1186 = vpop.f32.mrb[0].mxu0
    %v1187 = vadd.f32 %v968, %v1186
    %v1188 = vpop.f32.mrb[0].mxu0
    %1189 = vmatprep.mubr.bf16.mxu0 0
    %1190 = vmatmul.mubr.bf16.gmra.mrb[0].mxu0 %v1003
    %v1191 = vpop.f32.mrb[0].mxu0
    %v1192 = vadd.f32 %v968, %v1191
    %v1193 = vpop.f32.mrb[0].mxu0
    %v1194 = vpop.f32.mrb[0].mxu0
    %v1195 = vadd.f32 %v968, %v1194
    %v1196 = vpop.f32.mrb[0].mxu0
    %1197 = vmatprep.mubr.bf16.mxu0 0
    %1198 = vmatmul.mubr.bf16.gmra.mrb[0].mxu0 %v1006
    %v1199 = vpop.f32.mrb[0].mxu0
    %v1200 = vadd.f32 %v968, %v1199
    %v1201 = vpop.f32.mrb[0].mxu0
    %v1202 = vpop.f32.mrb[0].mxu0
    %v1203 = vadd.f32 %v968, %v1202
    %v1204 = vpop.f32.mrb[0].mxu0
    %1205 = vmatprep.mubr.bf16.mxu0 0
    %1206 = vmatmul.mubr.bf16.gmra.mrb[0].mxu0 %v1009
    %v1207 = vpop.f32.mrb[0].mxu0
    %v1208 = vadd.f32 %v968, %v1207
    %v1209 = vpop.f32.mrb[0].mxu0
    %v1210 = vpop.f32.mrb[0].mxu0
    %v1211 = vadd.f32 %v968, %v1210
    %v1212 = vpop.f32.mrb[0].mxu0
    %1213 = vmatprep.mubr.bf16.mxu0 0
    %1214 = vmatmul.mubr.bf16.gmra.mrb[0].mxu0 %v1012
    %v1215 = vpop.f32.mrb[0].mxu0
    %v1216 = vadd.f32 %v968, %v1215
    %v1217 = vpop.f32.mrb[0].mxu0
    %v1218 = vpop.f32.mrb[0].mxu0
    %v1219 = vadd.f32 %v968, %v1218
    %v1220 = vpop.f32.mrb[0].mxu0
    %1221 = vmatprep.mubr.bf16.mxu0 0
    %1222 = vmatmul.mubr.bf16.gmra.mrb[0].mxu0 %v1015
    %v1223 = vpop.f32.mrb[0].mxu0
    %v1224 = vadd.f32 %v968, %v1223
    %v1225 = vpop.f32.mrb[0].mxu0
    %v1226 = vpop.f32.mrb[0].mxu0
    %v1227 = vadd.f32 %v968, %v1226
    %v1228 = vpop.f32.mrb[0].mxu0
    %1229 = vmatprep.mubr.bf16.mxu0 0
    %1230 = vmatmul.mubr.bf16.gmra.mrb[0].mxu0 %v1018
    %v1231 = vpop.f32.mrb[0].mxu0
    %v1232 = vadd.f32 %v968, %v1231
    %v1233 = vpop.f32.mrb[0].mxu0
    %v1234 = vpop.f32.mrb[0].mxu0
    %v1235 = vadd.f32 %v968, %v1234
    %v1236 = vpop.f32.mrb[0].mxu0
    %1237 = vmatprep.mubr.bf16.mxu0 0
    %1238 = vmatmul.mubr.bf16.gmra.mrb[0].mxu0 %v1021
    %v1239 = vpop.f32.mrb[0].mxu0
    %v1240 = vadd.f32 %v968, %v1239
    %v1241 = vpop.f32.mrb[0].mxu0
    %v1242 = vpop.f32.mrb[0].mxu0
    %v1243 = vadd.f32 %v968, %v1242
    %v1244 = vpop.f32.mrb[0].mxu0
    %1245 = vmatprep.mubr.bf16.mxu0 0
    %1246 = vmatmul.mubr.bf16.gmra.mrb[0].mxu0 %v1024
    %v1247 = vpop.f32.mrb[0].mxu0
    %v1248 = vadd.f32 %v968, %v1247
    %v1249 = vpop.f32.mrb[0].mxu0
    %v1250 = vpop.f32.mrb[0].mxu0
    %v1251 = vadd.f32 %v968, %v1250
    %v1252 = vpop.f32.mrb[0].mxu0
    %1253 = vmatprep.mubr.bf16.mxu0 0
    %1254 = vmatmul.mubr.bf16.gmra.mrb[0].mxu0 %v1027
    %v1255 = vpop.f32.mrb[0].mxu0
    %v1256 = vadd.f32 %v968, %v1255
    %v1257 = vpop.f32.mrb[0].mxu0
    %v1258 = vpop.f32.mrb[0].mxu0
    %v1259 = vadd.f32 %v968, %v1258
    %v1260 = vpop.f32.mrb[0].mxu0
    %1261 = vmatprep.mubr.bf16.mxu0 0
    %1262 = vmatmul.mubr.bf16.gmra.mrb[0].mxu0 %v1030
    %v1263 = vpop.f32.mrb[0].mxu0
    %v1264 = vadd.f32 %v968, %v1263
    %v1265 = vpop.f32.mrb[0].mxu0
    %v1266 = vpop.f32.mrb[0].mxu0
    %v1267 = vadd.f32 %v968, %v1266
    %v1268 = vpop.f32.mrb[0].mxu0
    %1269 = vmatprep.mubr.bf16.mxu0 0
    %1270 = vmatmul.mubr.bf16.gmra.mrb[0].mxu0 %v1033
    %v1271 = vpop.f32.mrb[0].mxu0
    %v1272 = vadd.f32 %v968, %v1271
    %v1273 = vpop.f32.mrb[0].mxu0
    %v1274 = vpop.f32.mrb[0].mxu0
    %v1275 = vadd.f32 %v968, %v1274
    %v1276 = vpop.f32.mrb[0].mxu0
    %1277 = vmatprep.mubr.bf16.mxu0 0
    %1278 = vmatmul.mubr.bf16.gmra.mrb[0].mxu0 %v1036
    %v1279 = vpop.f32.mrb[0].mxu0
    %v1280 = vadd.f32 %v968, %v1279
    %v1281 = vpop.f32.mrb[0].mxu0
    %v1282 = vpop.f32.mrb[0].mxu0
    %v1283 = vadd.f32 %v968, %v1282
    %v1284 = vpop.f32.mrb[0].mxu0
    %1285 = vmatprep.mubr.bf16.mxu0 0
    %1286 = vmatmul.mubr.bf16.gmra.mrb[0].mxu0 %v1039
    %v1287 = vpop.f32.mrb[0].mxu0
    %v1288 = vadd.f32 %v968, %v1287
    %v1289 = vpop.f32.mrb[0].mxu0
    %v1290 = vpop.f32.mrb[0].mxu0
    %v1291 = vadd.f32 %v968, %v1290
    %v1292 = vpop.f32.mrb[0].mxu0
    %1293 = vmatprep.mubr.bf16.mxu0 0
    %1294 = vmatmul.mubr.bf16.gmra.mrb[0].mxu0 %v1042
    %v1295 = vpop.f32.mrb[0].mxu0
    %v1296 = vadd.f32 %v968, %v1295
    %v1297 = vpop.f32.mrb[0].mxu0
    %v1298 = vpop.f32.mrb[0].mxu0
    %v1299 = vadd.f32 %v968, %v1298
    %v1300 = vpop.f32.mrb[0].mxu0
    %1301 = vmatprep.mubr.bf16.mxu0 0
    %1302 = vmatmul.mubr.bf16.gmra.mrb[0].mxu0 %v1045
    %v1303 = vpop.f32.mrb[0].mxu0
    %v1304 = vadd.f32 %v968, %v1303
    %v1305 = vpop.f32.mrb[0].mxu0
    %v1306 = vpop.f32.mrb[0].mxu0
    %v1307 = vadd.f32 %v968, %v1306
    %v1308 = vpop.f32.mrb[0].mxu0
    %1309 = vmatprep.mubr.bf16.mxu0 0
    %1310 = vmatmul.mubr.bf16.gmra.mrb[0].mxu0 %v1048
    %v1311 = vpop.f32.mrb[0].mxu0
    %v1312 = vadd.f32 %v968, %v1311
    %v1313 = vpop.f32.mrb[0].mxu0
    %v1314 = vpop.f32.mrb[0].mxu0
    %v1315 = vadd.f32 %v968, %v1314
    %v1316 = vpop.f32.mrb[0].mxu0
    %1317 = vmatprep.mubr.bf16.mxu0 0
    %1318 = vmatmul.mubr.bf16.gmra.mrb[0].mxu0 %v1051
    %v1319 = vpop.f32.mrb[0].mxu0
    %v1320 = vadd.f32 %v968, %v1319
    %v1321 = vpop.f32.mrb[0].mxu0
    %v1322 = vpop.f32.mrb[0].mxu0
    %v1323 = vadd.f32 %v968, %v1322
    %v1324 = vpop.f32.mrb[0].mxu0
    %1325 = vmatprep.mubr.bf16.mxu0 0
    %1326 = vmatmul.mubr.bf16.gmra.mrb[0].mxu0 %v1054
    %v1327 = vpop.f32.mrb[0].mxu0
    %v1328 = vadd.f32 %v968, %v1327
    %v1329 = vpop.f32.mrb[0].mxu0
    %v1330 = vpop.f32.mrb[0].mxu0
    %v1331 = vadd.f32 %v968, %v1330
    %v1332 = vpop.f32.mrb[0].mxu0
    %1333 = vmatprep.mubr.bf16.mxu0 0
    %1334 = vmatmul.mubr.bf16.gmra.mrb[0].mxu0 %v1057
    %v1335 = vpop.f32.mrb[0].mxu0
    %v1336 = vadd.f32 %v968, %v1335
    %v1337 = vpop.f32.mrb[0].mxu0
    %v1338 = vpop.f32.mrb[0].mxu0
    %v1339 = vadd.f32 %v968, %v1338
    %v1340 = vpop.f32.mrb[0].mxu0
    %1341 = vmatprep.mubr.bf16.mxu0 0
    %1342 = vmatmul.mubr.bf16.gmra.mrb[0].mxu0 %v1060
    %v1343 = vpop.f32.mrb[0].mxu0
    %v1344 = vadd.f32 %v968, %v1343
    %v1345 = vpop.f32.mrb[0].mxu0
    %v1346 = vpop.f32.mrb[0].mxu0
    %v1347 = vadd.f32 %v968, %v1346
    %v1348 = vpop.f32.mrb[0].mxu0
    %1349 = vmatprep.mubr.bf16.mxu0 0
    %1350 = vmatmul.mubr.bf16.gmra.mrb[0].mxu0 %v1063
    %v1351 = vpop.f32.mrb[0].mxu0
    %v1352 = vadd.f32 %v968, %v1351
    %v1353 = vpop.f32.mrb[0].mxu0
    %v1354 = vpop.f32.mrb[0].mxu0
    %v1355 = vadd.f32 %v968, %v1354
    %v1356 = vpop.f32.mrb[0].mxu0
    %1357 = vdwg.mxu0
    %v1358 = vmax.f32 %v1104, 0.0
    %v1359 = vmax.f32 %v1107, 0.0
    %v1360 = vmax.f32 %v1112, 0.0
    %v1361 = vmax.f32 %v1115, 0.0
    %v1362 = vmax.f32 %v1120, 0.0
    %v1363 = vmax.f32 %v1123, 0.0
    %v1364 = vmax.f32 %v1128, 0.0
    %v1365 = vmax.f32 %v1131, 0.0
    %v1366 = vmax.f32 %v1136, 0.0
    %v1367 = vmax.f32 %v1139, 0.0
    %v1368 = vmax.f32 %v1144, 0.0
    %v1369 = vmax.f32 %v1147, 0.0
    %v1370 = vmax.f32 %v1152, 0.0
    %v1371 = vmax.f32 %v1155, 0.0
    %v1372 = vmax.f32 %v1160, 0.0
    %v1373 = vmax.f32 %v1163, 0.0
    %v1374 = vmax.f32 %v1168, 0.0
    %v1375 = vmax.f32 %v1171, 0.0
    %v1376 = vmax.f32 %v1176, 0.0
    %v1377 = vmax.f32 %v1179, 0.0
    %v1378 = vmax.f32 %v1184, 0.0
    %v1379 = vmax.f32 %v1187, 0.0
    %v1380 = vmax.f32 %v1192, 0.0
    %v1381 = vmax.f32 %v1195, 0.0
    %v1382 = vmax.f32 %v1200, 0.0
    %v1383 = vmax.f32 %v1203, 0.0
    %v1384 = vmax.f32 %v1208, 0.0
    %v1385 = vmax.f32 %v1211, 0.0
    %v1386 = vmax.f32 %v1216, 0.0
    %v1387 = vmax.f32 %v1219, 0.0
    %v1388 = vmax.f32 %v1224, 0.0
    %v1389 = vmax.f32 %v1227, 0.0
    %v1390 = vmax.f32 %v1232, 0.0
    %v1391 = vmax.f32 %v1235, 0.0
    %v1392 = vmax.f32 %v1240, 0.0
    %v1393 = vmax.f32 %v1243, 0.0
    %v1394 = vmax.f32 %v1248, 0.0
    %v1395 = vmax.f32 %v1251, 0.0
    %v1396 = vmax.f32 %v1256, 0.0
    %v1397 = vmax.f32 %v1259, 0.0
    %v1398 = vmax.f32 %v1264, 0.0
    %v1399 = vmax.f32 %v1267, 0.0
    %v1400 = vmax.f32 %v1272, 0.0
    %v1401 = vmax.f32 %v1275, 0.0
    %v1402 = vmax.f32 %v1280, 0.0
    %v1403 = vmax.f32 %v1283, 0.0
    %v1404 = vmax.f32 %v1288, 0.0
    %v1405 = vmax.f32 %v1291, 0.0
    %v1406 = vmax.f32 %v1296, 0.0
    %v1407 = vmax.f32 %v1299, 0.0
    %v1408 = vmax.f32 %v1304, 0.0
    %v1409 = vmax.f32 %v1307, 0.0
    %v1410 = vmax.f32 %v1312, 0.0
    %v1411 = vmax.f32 %v1315, 0.0
    %v1412 = vmax.f32 %v1320, 0.0
    %v1413 = vmax.f32 %v1323, 0.0
    %v1414 = vmax.f32 %v1328, 0.0
    %v1415 = vmax.f32 %v1331, 0.0
    %v1416 = vmax.f32 %v1336, 0.0
    %v1417 = vmax.f32 %v1339, 0.0
    %v1418 = vmax.f32 %v1344, 0.0
    %v1419 = vmax.f32 %v1347, 0.0
    %v1420 = vmax.f32 %v1352, 0.0
    %v1421 = vmax.f32 %v1355, 0.0
    %v1422 = vpack.c.bf16 %v1359, %v1358
    %v1423 = vpack.c.bf16 %v1361, %v1360
    %v1424 = vpack.c.bf16 %v1363, %v1362
    %v1425 = vpack.c.bf16 %v1365, %v1364
    %v1426 = vpack.c.bf16 %v1367, %v1366
    %v1427 = vpack.c.bf16 %v1369, %v1368
    %v1428 = vpack.c.bf16 %v1371, %v1370
    %v1429 = vpack.c.bf16 %v1373, %v1372
    %v1430 = vpack.c.bf16 %v1375, %v1374
    %v1431 = vpack.c.bf16 %v1377, %v1376
    %v1432 = vpack.c.bf16 %v1379, %v1378
    %v1433 = vpack.c.bf16 %v1381, %v1380
    %v1434 = vpack.c.bf16 %v1383, %v1382
    %v1435 = vpack.c.bf16 %v1385, %v1384
    %v1436 = vpack.c.bf16 %v1387, %v1386
    %v1437 = vpack.c.bf16 %v1389, %v1388
    %v1438 = vpack.c.bf16 %v1391, %v1390
    %v1439 = vpack.c.bf16 %v1393, %v1392
    %v1440 = vpack.c.bf16 %v1395, %v1394
    %v1441 = vpack.c.bf16 %v1397, %v1396
    %v1442 = vpack.c.bf16 %v1399, %v1398
    %v1443 = vpack.c.bf16 %v1401, %v1400
    %v1444 = vpack.c.bf16 %v1403, %v1402
    %v1445 = vpack.c.bf16 %v1405, %v1404
    %v1446 = vpack.c.bf16 %v1407, %v1406
    %v1447 = vpack.c.bf16 %v1409, %v1408
    %v1448 = vpack.c.bf16 %v1411, %v1410
    %v1449 = vpack.c.bf16 %v1413, %v1412
    %v1450 = vpack.c.bf16 %v1415, %v1414
    %v1451 = vpack.c.bf16 %v1417, %v1416
    %v1452 = vpack.c.bf16 %v1419, %v1418
    %v1453 = vpack.c.bf16 %v1421, %v1420
    %v1454 = vld [vmem:[%s3] sm:$0xf]
    %v1455 = vld [vmem:[%s3 + $0x4] sm:$0xf]
    %v1456 = vlaneseq
    %v1457 = vshrl.u32 %v1456, 7
    %v1458 = vsub.s32 3, %v1457
    %v1459 = vrot.slane %v89, %v1458
    %v1462 = vunpack.c.l.b16 %v1454
    %v1463 = vunpack.c.l.b16 %v1455
    %v1464 = vpack.c.b16 %v1463, %v1462
    %vm1466 = vcmask 130048
    %v1468 = vsel %vm1466, %v1422, 0
    %v1471 = vsel %vm1466, %v1423, 0
    %v1474 = vsel %vm1466, %v1424, 0
    %v1477 = vsel %vm1466, %v1425, 0
    %v1480 = vsel %vm1466, %v1426, 0
    %v1483 = vsel %vm1466, %v1427, 0
    %v1486 = vsel %vm1466, %v1428, 0
    %v1489 = vsel %vm1466, %v1429, 0
    %v1492 = vsel %vm1466, %v1430, 0
    %v1495 = vsel %vm1466, %v1431, 0
    %v1498 = vsel %vm1466, %v1432, 0
    %v1501 = vsel %vm1466, %v1433, 0
    %v1504 = vsel %vm1466, %v1434, 0
    %v1507 = vsel %vm1466, %v1435, 0
    %v1510 = vsel %vm1466, %v1436, 0
    %v1513 = vsel %vm1466, %v1437, 0
    %v1516 = vsel %vm1466, %v1438, 0
    %v1519 = vsel %vm1466, %v1439, 0
    %v1522 = vsel %vm1466, %v1440, 0
    %v1525 = vsel %vm1466, %v1441, 0
    %v1528 = vsel %vm1466, %v1442, 0
    %v1531 = vsel %vm1466, %v1443, 0
    %v1534 = vsel %vm1466, %v1444, 0
    %v1537 = vsel %vm1466, %v1445, 0
    %v1540 = vsel %vm1466, %v1446, 0
    %v1543 = vsel %vm1466, %v1447, 0
    %v1546 = vsel %vm1466, %v1448, 0
    %v1549 = vsel %vm1466, %v1449, 0
    %v1552 = vsel %vm1466, %v1450, 0
    %v1555 = vsel %vm1466, %v1451, 0
    %v1558 = vsel %vm1466, %v1452, 0
    %v1561 = vsel %vm1466, %v1453, 0
    %1563 = vmatprep.subr.bf16.mxu0 0
    %1564 = vmatpush1.bf16.msra.mxu0 %v1464
    %1565 = vmatprep.subr.bf16.mxu0 0
    %1566 = vmatpush1.bf16.msra.mxu0 0
    %1567 = vmatprep.subr.bf16.mxu0 0
    %1568 = vmatpush1.bf16.msra.mxu0 0
    %1569 = vmatprep.subr.bf16.mxu0 0
    %1570 = vmatpush1.bf16.msra.mxu0 0
    %1571 = vmatprep.subr.bf16.mxu0 0
    %1572 = vmatpush1.bf16.msra.mxu0 0
    %1573 = vmatprep.subr.bf16.mxu0 0
    %1574 = vmatpush1.bf16.msra.mxu0 0
    %1575 = vmatprep.subr.bf16.mxu0 0
    %1576 = vmatpush1.bf16.msra.mxu0 0
    %1577 = vmatprep.subr.bf16.mxu0 0
    %1578 = vmatpush1.bf16.msra.mxu0 0
    %1579 = vmatprep.subr.bf16.mxu0 0
    %1580 = vmatpush1.bf16.msra.mxu0 0
    %1581 = vmatprep.subr.bf16.mxu0 0
    %1582 = vmatpush1.bf16.msra.mxu0 0
    %1583 = vmatprep.subr.bf16.mxu0 0
    %1584 = vmatpush1.bf16.msra.mxu0 0
    %1585 = vmatprep.subr.bf16.mxu0 0
    %1586 = vmatpush1.bf16.msra.mxu0 0
    %1587 = vmatprep.subr.bf16.mxu0 0
    %1588 = vmatpush1.bf16.msra.mxu0 0
    %1589 = vmatprep.subr.bf16.mxu0 0
    %1590 = vmatpush1.bf16.msra.mxu0 0
    %1591 = vmatprep.subr.bf16.mxu0 0
    %1592 = vmatpush1.bf16.msra.mxu0 0
    %1593 = vmatprep.subr.bf16.mxu0 0
    %1594 = vmatpush1.bf16.msra.mxu0 0
    %1595 = vmatprep.mubr.bf16.mxu0 0
    %1596 = vmatmul.mubr.bf16.gmra.mrb[0].mxu0 %v1468
    %v1597 = vpop.f32.mrb[0].mxu0
    %v1598 = vadd.f32 %v1459, %v1597
    %v1599 = vpop.f32.mrb[0].mxu0
    %v1600 = vpop.f32.mrb[0].mxu0
    %v1601 = vadd.f32 %v1459, %v1600
    %v1602 = vpop.f32.mrb[0].mxu0
    %1603 = vmatprep.mubr.bf16.mxu0 0
    %1604 = vmatmul.mubr.bf16.gmra.mrb[0].mxu0 %v1471
    %v1605 = vpop.f32.mrb[0].mxu0
    %v1606 = vadd.f32 %v1459, %v1605
    %v1607 = vpop.f32.mrb[0].mxu0
    %v1608 = vpop.f32.mrb[0].mxu0
    %v1609 = vadd.f32 %v1459, %v1608
    %v1610 = vpop.f32.mrb[0].mxu0
    %1611 = vmatprep.mubr.bf16.mxu0 0
    %1612 = vmatmul.mubr.bf16.gmra.mrb[0].mxu0 %v1474
    %v1613 = vpop.f32.mrb[0].mxu0
    %v1614 = vadd.f32 %v1459, %v1613
    %v1615 = vpop.f32.mrb[0].mxu0
    %v1616 = vpop.f32.mrb[0].mxu0
    %v1617 = vadd.f32 %v1459, %v1616
    %v1618 = vpop.f32.mrb[0].mxu0
    %1619 = vmatprep.mubr.bf16.mxu0 0
    %1620 = vmatmul.mubr.bf16.gmra.mrb[0].mxu0 %v1477
    %v1621 = vpop.f32.mrb[0].mxu0
    %v1622 = vadd.f32 %v1459, %v1621
    %v1623 = vpop.f32.mrb[0].mxu0
    %v1624 = vpop.f32.mrb[0].mxu0
    %v1625 = vadd.f32 %v1459, %v1624
    %v1626 = vpop.f32.mrb[0].mxu0
    %1627 = vmatprep.mubr.bf16.mxu0 0
    %1628 = vmatmul.mubr.bf16.gmra.mrb[0].mxu0 %v1480
    %v1629 = vpop.f32.mrb[0].mxu0
    %v1630 = vadd.f32 %v1459, %v1629
    %v1631 = vpop.f32.mrb[0].mxu0
    %v1632 = vpop.f32.mrb[0].mxu0
    %v1633 = vadd.f32 %v1459, %v1632
    %v1634 = vpop.f32.mrb[0].mxu0
    %1635 = vmatprep.mubr.bf16.mxu0 0
    %1636 = vmatmul.mubr.bf16.gmra.mrb[0].mxu0 %v1483
    %v1637 = vpop.f32.mrb[0].mxu0
    %v1638 = vadd.f32 %v1459, %v1637
    %v1639 = vpop.f32.mrb[0].mxu0
    %v1640 = vpop.f32.mrb[0].mxu0
    %v1641 = vadd.f32 %v1459, %v1640
    %v1642 = vpop.f32.mrb[0].mxu0
    %1643 = vmatprep.mubr.bf16.mxu0 0
    %1644 = vmatmul.mubr.bf16.gmra.mrb[0].mxu0 %v1486
    %v1645 = vpop.f32.mrb[0].mxu0
    %v1646 = vadd.f32 %v1459, %v1645
    %v1647 = vpop.f32.mrb[0].mxu0
    %v1648 = vpop.f32.mrb[0].mxu0
    %v1649 = vadd.f32 %v1459, %v1648
    %v1650 = vpop.f32.mrb[0].mxu0
    %1651 = vmatprep.mubr.bf16.mxu0 0
    %1652 = vmatmul.mubr.bf16.gmra.mrb[0].mxu0 %v1489
    %v1653 = vpop.f32.mrb[0].mxu0
    %v1654 = vadd.f32 %v1459, %v1653
    %v1655 = vpop.f32.mrb[0].mxu0
    %v1656 = vpop.f32.mrb[0].mxu0
    %v1657 = vadd.f32 %v1459, %v1656
    %v1658 = vpop.f32.mrb[0].mxu0
    %1659 = vmatprep.mubr.bf16.mxu0 0
    %1660 = vmatmul.mubr.bf16.gmra.mrb[0].mxu0 %v1492
    %v1661 = vpop.f32.mrb[0].mxu0
    %v1662 = vadd.f32 %v1459, %v1661
    %v1663 = vpop.f32.mrb[0].mxu0
    %v1664 = vpop.f32.mrb[0].mxu0
    %v1665 = vadd.f32 %v1459, %v1664
    %v1666 = vpop.f32.mrb[0].mxu0
    %1667 = vmatprep.mubr.bf16.mxu0 0
    %1668 = vmatmul.mubr.bf16.gmra.mrb[0].mxu0 %v1495
    %v1669 = vpop.f32.mrb[0].mxu0
    %v1670 = vadd.f32 %v1459, %v1669
    %v1671 = vpop.f32.mrb[0].mxu0
    %v1672 = vpop.f32.mrb[0].mxu0
    %v1673 = vadd.f32 %v1459, %v1672
    %v1674 = vpop.f32.mrb[0].mxu0
    %1675 = vmatprep.mubr.bf16.mxu0 0
    %1676 = vmatmul.mubr.bf16.gmra.mrb[0].mxu0 %v1498
    %v1677 = vpop.f32.mrb[0].mxu0
    %v1678 = vadd.f32 %v1459, %v1677
    %v1679 = vpop.f32.mrb[0].mxu0
    %v1680 = vpop.f32.mrb[0].mxu0
    %v1681 = vadd.f32 %v1459, %v1680
    %v1682 = vpop.f32.mrb[0].mxu0
    %1683 = vmatprep.mubr.bf16.mxu0 0
    %1684 = vmatmul.mubr.bf16.gmra.mrb[0].mxu0 %v1501
    %v1685 = vpop.f32.mrb[0].mxu0
    %v1686 = vadd.f32 %v1459, %v1685
    %v1687 = vpop.f32.mrb[0].mxu0
    %v1688 = vpop.f32.mrb[0].mxu0
    %v1689 = vadd.f32 %v1459, %v1688
    %v1690 = vpop.f32.mrb[0].mxu0
    %1691 = vmatprep.mubr.bf16.mxu0 0
    %1692 = vmatmul.mubr.bf16.gmra.mrb[0].mxu0 %v1504
    %v1693 = vpop.f32.mrb[0].mxu0
    %v1694 = vadd.f32 %v1459, %v1693
    %v1695 = vpop.f32.mrb[0].mxu0
    %v1696 = vpop.f32.mrb[0].mxu0
    %v1697 = vadd.f32 %v1459, %v1696
    %v1698 = vpop.f32.mrb[0].mxu0
    %1699 = vmatprep.mubr.bf16.mxu0 0
    %1700 = vmatmul.mubr.bf16.gmra.mrb[0].mxu0 %v1507
    %v1701 = vpop.f32.mrb[0].mxu0
    %v1702 = vadd.f32 %v1459, %v1701
    %v1703 = vpop.f32.mrb[0].mxu0
    %v1704 = vpop.f32.mrb[0].mxu0
    %v1705 = vadd.f32 %v1459, %v1704
    %v1706 = vpop.f32.mrb[0].mxu0
    %1707 = vmatprep.mubr.bf16.mxu0 0
    %1708 = vmatmul.mubr.bf16.gmra.mrb[0].mxu0 %v1510
    %v1709 = vpop.f32.mrb[0].mxu0
    %v1710 = vadd.f32 %v1459, %v1709
    %v1711 = vpop.f32.mrb[0].mxu0
    %v1712 = vpop.f32.mrb[0].mxu0
    %v1713 = vadd.f32 %v1459, %v1712
    %v1714 = vpop.f32.mrb[0].mxu0
    %1715 = vmatprep.mubr.bf16.mxu0 0
    %1716 = vmatmul.mubr.bf16.gmra.mrb[0].mxu0 %v1513
    %v1717 = vpop.f32.mrb[0].mxu0
    %v1718 = vadd.f32 %v1459, %v1717
    %v1719 = vpop.f32.mrb[0].mxu0
    %v1720 = vpop.f32.mrb[0].mxu0
    %v1721 = vadd.f32 %v1459, %v1720
    %v1722 = vpop.f32.mrb[0].mxu0
    %1723 = vmatprep.mubr.bf16.mxu0 0
    %1724 = vmatmul.mubr.bf16.gmra.mrb[0].mxu0 %v1516
    %v1725 = vpop.f32.mrb[0].mxu0
    %v1726 = vadd.f32 %v1459, %v1725
    %v1727 = vpop.f32.mrb[0].mxu0
    %v1728 = vpop.f32.mrb[0].mxu0
    %v1729 = vadd.f32 %v1459, %v1728
    %v1730 = vpop.f32.mrb[0].mxu0
    %1731 = vmatprep.mubr.bf16.mxu0 0
    %1732 = vmatmul.mubr.bf16.gmra.mrb[0].mxu0 %v1519
    %v1733 = vpop.f32.mrb[0].mxu0
    %v1734 = vadd.f32 %v1459, %v1733
    %v1735 = vpop.f32.mrb[0].mxu0
    %v1736 = vpop.f32.mrb[0].mxu0
    %v1737 = vadd.f32 %v1459, %v1736
    %v1738 = vpop.f32.mrb[0].mxu0
    %1739 = vmatprep.mubr.bf16.mxu0 0
    %1740 = vmatmul.mubr.bf16.gmra.mrb[0].mxu0 %v1522
    %v1741 = vpop.f32.mrb[0].mxu0
    %v1742 = vadd.f32 %v1459, %v1741
    %v1743 = vpop.f32.mrb[0].mxu0
    %v1744 = vpop.f32.mrb[0].mxu0
    %v1745 = vadd.f32 %v1459, %v1744
    %v1746 = vpop.f32.mrb[0].mxu0
    %1747 = vmatprep.mubr.bf16.mxu0 0
    %1748 = vmatmul.mubr.bf16.gmra.mrb[0].mxu0 %v1525
    %v1749 = vpop.f32.mrb[0].mxu0
    %v1750 = vadd.f32 %v1459, %v1749
    %v1751 = vpop.f32.mrb[0].mxu0
    %v1752 = vpop.f32.mrb[0].mxu0
    %v1753 = vadd.f32 %v1459, %v1752
    %v1754 = vpop.f32.mrb[0].mxu0
    %1755 = vmatprep.mubr.bf16.mxu0 0
    %1756 = vmatmul.mubr.bf16.gmra.mrb[0].mxu0 %v1528
    %v1757 = vpop.f32.mrb[0].mxu0
    %v1758 = vadd.f32 %v1459, %v1757
    %v1759 = vpop.f32.mrb[0].mxu0
    %v1760 = vpop.f32.mrb[0].mxu0
    %v1761 = vadd.f32 %v1459, %v1760
    %v1762 = vpop.f32.mrb[0].mxu0
    %1763 = vmatprep.mubr.bf16.mxu0 0
    %1764 = vmatmul.mubr.bf16.gmra.mrb[0].mxu0 %v1531
    %v1765 = vpop.f32.mrb[0].mxu0
    %v1766 = vadd.f32 %v1459, %v1765
    %v1767 = vpop.f32.mrb[0].mxu0
    %v1768 = vpop.f32.mrb[0].mxu0
    %v1769 = vadd.f32 %v1459, %v1768
    %v1770 = vpop.f32.mrb[0].mxu0
    %1771 = vmatprep.mubr.bf16.mxu0 0
    %1772 = vmatmul.mubr.bf16.gmra.mrb[0].mxu0 %v1534
    %v1773 = vpop.f32.mrb[0].mxu0
    %v1774 = vadd.f32 %v1459, %v1773
    %v1775 = vpop.f32.mrb[0].mxu0
    %v1776 = vpop.f32.mrb[0].mxu0
    %v1777 = vadd.f32 %v1459, %v1776
    %v1778 = vpop.f32.mrb[0].mxu0
    %1779 = vmatprep.mubr.bf16.mxu0 0
    %1780 = vmatmul.mubr.bf16.gmra.mrb[0].mxu0 %v1537
    %v1781 = vpop.f32.mrb[0].mxu0
    %v1782 = vadd.f32 %v1459, %v1781
    %v1783 = vpop.f32.mrb[0].mxu0
    %v1784 = vpop.f32.mrb[0].mxu0
    %v1785 = vadd.f32 %v1459, %v1784
    %v1786 = vpop.f32.mrb[0].mxu0
    %1787 = vmatprep.mubr.bf16.mxu0 0
    %1788 = vmatmul.mubr.bf16.gmra.mrb[0].mxu0 %v1540
    %v1789 = vpop.f32.mrb[0].mxu0
    %v1790 = vadd.f32 %v1459, %v1789
    %v1791 = vpop.f32.mrb[0].mxu0
    %v1792 = vpop.f32.mrb[0].mxu0
    %v1793 = vadd.f32 %v1459, %v1792
    %v1794 = vpop.f32.mrb[0].mxu0
    %1795 = vmatprep.mubr.bf16.mxu0 0
    %1796 = vmatmul.mubr.bf16.gmra.mrb[0].mxu0 %v1543
    %v1797 = vpop.f32.mrb[0].mxu0
    %v1798 = vadd.f32 %v1459, %v1797
    %v1799 = vpop.f32.mrb[0].mxu0
    %v1800 = vpop.f32.mrb[0].mxu0
    %v1801 = vadd.f32 %v1459, %v1800
    %v1802 = vpop.f32.mrb[0].mxu0
    %1803 = vmatprep.mubr.bf16.mxu0 0
    %1804 = vmatmul.mubr.bf16.gmra.mrb[0].mxu0 %v1546
    %v1805 = vpop.f32.mrb[0].mxu0
    %v1806 = vadd.f32 %v1459, %v1805
    %v1807 = vpop.f32.mrb[0].mxu0
    %v1808 = vpop.f32.mrb[0].mxu0
    %v1809 = vadd.f32 %v1459, %v1808
    %v1810 = vpop.f32.mrb[0].mxu0
    %1811 = vmatprep.mubr.bf16.mxu0 0
    %1812 = vmatmul.mubr.bf16.gmra.mrb[0].mxu0 %v1549
    %v1813 = vpop.f32.mrb[0].mxu0
    %v1814 = vadd.f32 %v1459, %v1813
    %v1815 = vpop.f32.mrb[0].mxu0
    %v1816 = vpop.f32.mrb[0].mxu0
    %v1817 = vadd.f32 %v1459, %v1816
    %v1818 = vpop.f32.mrb[0].mxu0
    %1819 = vmatprep.mubr.bf16.mxu0 0
    %1820 = vmatmul.mubr.bf16.gmra.mrb[0].mxu0 %v1552
    %v1821 = vpop.f32.mrb[0].mxu0
    %v1822 = vadd.f32 %v1459, %v1821
    %v1823 = vpop.f32.mrb[0].mxu0
    %v1824 = vpop.f32.mrb[0].mxu0
    %v1825 = vadd.f32 %v1459, %v1824
    %v1826 = vpop.f32.mrb[0].mxu0
    %1827 = vmatprep.mubr.bf16.mxu0 0
    %1828 = vmatmul.mubr.bf16.gmra.mrb[0].mxu0 %v1555
    %v1829 = vpop.f32.mrb[0].mxu0
    %v1830 = vadd.f32 %v1459, %v1829
    %v1831 = vpop.f32.mrb[0].mxu0
    %v1832 = vpop.f32.mrb[0].mxu0
    %v1833 = vadd.f32 %v1459, %v1832
    %v1834 = vpop.f32.mrb[0].mxu0
    %1835 = vmatprep.mubr.bf16.mxu0 0
    %1836 = vmatmul.mubr.bf16.gmra.mrb[0].mxu0 %v1558
    %v1837 = vpop.f32.mrb[0].mxu0
    %v1838 = vadd.f32 %v1459, %v1837
    %v1839 = vpop.f32.mrb[0].mxu0
    %v1840 = vpop.f32.mrb[0].mxu0
    %v1841 = vadd.f32 %v1459, %v1840
    %v1842 = vpop.f32.mrb[0].mxu0
    %1843 = vmatprep.mubr.bf16.mxu0 0
    %1844 = vmatmul.mubr.bf16.gmra.mrb[0].mxu0 %v1561
    %v1845 = vpop.f32.mrb[0].mxu0
    %v1846 = vadd.f32 %v1459, %v1845
    %v1847 = vpop.f32.mrb[0].mxu0
    %v1848 = vpop.f32.mrb[0].mxu0
    %v1849 = vadd.f32 %v1459, %v1848
    %v1850 = vpop.f32.mrb[0].mxu0
    %1851 = vdwg.mxu0
    %v1852 = vadd.f32 %v1598, %v25
    %v1853 = vadd.f32 %v1601, %v26
    %v1854 = vadd.f32 %v1606, %v27
    %v1855 = vadd.f32 %v1609, %v28
    %v1856 = vadd.f32 %v1614, %v29
    %v1857 = vadd.f32 %v1617, %v30
    %v1858 = vadd.f32 %v1622, %v31
    %v1859 = vadd.f32 %v1625, %v32
    %v1860 = vadd.f32 %v1630, %v33
    %v1861 = vadd.f32 %v1633, %v34
    %v1862 = vadd.f32 %v1638, %v35
    %v1863 = vadd.f32 %v1641, %v36
    %v1864 = vadd.f32 %v1646, %v37
    %v1865 = vadd.f32 %v1649, %v38
    %v1866 = vadd.f32 %v1654, %v39
    %v1867 = vadd.f32 %v1657, %v40
    %v1868 = vadd.f32 %v1662, %v41
    %v1869 = vadd.f32 %v1665, %v42
    %v1870 = vadd.f32 %v1670, %v43
    %v1871 = vadd.f32 %v1673, %v44
    %v1872 = vadd.f32 %v1678, %v45
    %v1873 = vadd.f32 %v1681, %v46
    %v1874 = vadd.f32 %v1686, %v47
    %v1875 = vadd.f32 %v1689, %v48
    %v1876 = vadd.f32 %v1694, %v49
    %v1877 = vadd.f32 %v1697, %v50
    %v1878 = vadd.f32 %v1702, %v51
    %v1879 = vadd.f32 %v1705, %v52
    %v1880 = vadd.f32 %v1710, %v53
    %v1881 = vadd.f32 %v1713, %v54
    %v1882 = vadd.f32 %v1718, %v55
    %v1883 = vadd.f32 %v1721, %v56
    %v1884 = vadd.f32 %v1726, %v57
    %v1885 = vadd.f32 %v1729, %v58
    %v1886 = vadd.f32 %v1734, %v59
    %v1887 = vadd.f32 %v1737, %v60
    %v1888 = vadd.f32 %v1742, %v61
    %v1889 = vadd.f32 %v1745, %v62
    %v1890 = vadd.f32 %v1750, %v63
    %v1891 = vadd.f32 %v1753, %v64
    %v1892 = vadd.f32 %v1758, %v65
    %v1893 = vadd.f32 %v1761, %v66
    %v1894 = vadd.f32 %v1766, %v67
    %v1895 = vadd.f32 %v1769, %v68
    %v1896 = vadd.f32 %v1774, %v69
    %v1897 = vadd.f32 %v1777, %v70
    %v1898 = vadd.f32 %v1782, %v71
    %v1899 = vadd.f32 %v1785, %v72
    %v1900 = vadd.f32 %v1790, %v73
    %v1901 = vadd.f32 %v1793, %v74
    %v1902 = vadd.f32 %v1798, %v75
    %v1903 = vadd.f32 %v1801, %v76
    %v1904 = vadd.f32 %v1806, %v77
    %v1905 = vadd.f32 %v1809, %v78
    %v1906 = vadd.f32 %v1814, %v79
    %v1907 = vadd.f32 %v1817, %v80
    %v1908 = vadd.f32 %v1822, %v81
    %v1909 = vadd.f32 %v1825, %v82
    %v1910 = vadd.f32 %v1830, %v83
    %v1911 = vadd.f32 %v1833, %v84
    %v1912 = vadd.f32 %v1838, %v85
    %v1913 = vadd.f32 %v1841, %v86
    %v1914 = vadd.f32 %v1846, %v87
    %v1915 = vadd.f32 %v1849, %v88
    %1916 = vxpose.xlu0.b32.start [1/16] %v1852, 128
    %1917 = vxpose.xlu0.b32.cont [2/16] %v1853, 128
    %1918 = vxpose.xlu0.b32.cont [3/16] %v1854, 128
    %1919 = vxpose.xlu0.b32.cont [4/16] %v1855, 128
    %1920 = vxpose.xlu0.b32.cont [5/16] 0.0, 128
    %1921 = vxpose.xlu0.b32.cont [6/16] 0.0, 128
    %1922 = vxpose.xlu0.b32.cont [7/16] 0.0, 128
    %1923 = vxpose.xlu0.b32.cont [8/16] 0.0, 128
    %1924 = vxpose.xlu0.b32.cont [9/16] 0.0, 128
    %1925 = vxpose.xlu0.b32.cont [10/16] 0.0, 128
    %1926 = vxpose.xlu0.b32.cont [11/16] 0.0, 128
    %1927 = vxpose.xlu0.b32.cont [12/16] 0.0, 128
    %1928 = vxpose.xlu0.b32.cont [13/16] 0.0, 128
    %1929 = vxpose.xlu0.b32.cont [14/16] 0.0, 128
    %1930 = vxpose.xlu0.b32.cont [15/16] 0.0, 128
    %1931 = vxpose.xlu0.b32.end [16/16] 0.0, 128
    %v1932 = vpop.trf.xlu0
    %v1933 = vpop.trf.xlu0
    %v1934 = vpop.trf.xlu0
    %v1935 = vpop.trf.xlu0
    %v1936 = vpop.trf.xlu0
    %v1937 = vpop.trf.xlu0
    %v1938 = vpop.trf.xlu0
    %v1939 = vpop.trf.xlu0
    %v1940 = vpop.trf.xlu0
    %v1941 = vpop.trf.xlu0
    %v1942 = vpop.trf.xlu0
    %v1943 = vpop.trf.xlu0
    %v1944 = vpop.trf.xlu0
    %v1945 = vpop.trf.xlu0
    %v1946 = vpop.trf.xlu0
    %v1947 = vpop.trf.xlu0
    %1948 = vxpose.xlu0.b32.start [1/16] %v1856, 128
    %1949 = vxpose.xlu0.b32.cont [2/16] %v1857, 128
    %1950 = vxpose.xlu0.b32.cont [3/16] %v1858, 128
    %1951 = vxpose.xlu0.b32.cont [4/16] %v1859, 128
    %1952 = vxpose.xlu0.b32.cont [5/16] 0.0, 128
    %1953 = vxpose.xlu0.b32.cont [6/16] 0.0, 128
    %1954 = vxpose.xlu0.b32.cont [7/16] 0.0, 128
    %1955 = vxpose.xlu0.b32.cont [8/16] 0.0, 128
    %1956 = vxpose.xlu0.b32.cont [9/16] 0.0, 128
    %1957 = vxpose.xlu0.b32.cont [10/16] 0.0, 128
    %1958 = vxpose.xlu0.b32.cont [11/16] 0.0, 128
    %1959 = vxpose.xlu0.b32.cont [12/16] 0.0, 128
    %1960 = vxpose.xlu0.b32.cont [13/16] 0.0, 128
    %1961 = vxpose.xlu0.b32.cont [14/16] 0.0, 128
    %1962 = vxpose.xlu0.b32.cont [15/16] 0.0, 128
    %1963 = vxpose.xlu0.b32.end [16/16] 0.0, 128
    %v1964 = vpop.trf.xlu0
    %v1965 = vpop.trf.xlu0
    %v1966 = vpop.trf.xlu0
    %v1967 = vpop.trf.xlu0
    %v1968 = vpop.trf.xlu0
    %v1969 = vpop.trf.xlu0
    %v1970 = vpop.trf.xlu0
    %v1971 = vpop.trf.xlu0
    %v1972 = vpop.trf.xlu0
    %v1973 = vpop.trf.xlu0
    %v1974 = vpop.trf.xlu0
    %v1975 = vpop.trf.xlu0
    %v1976 = vpop.trf.xlu0
    %v1977 = vpop.trf.xlu0
    %v1978 = vpop.trf.xlu0
    %v1979 = vpop.trf.xlu0
    %1980 = vxpose.xlu0.b32.start [1/16] %v1860, 128
    %1981 = vxpose.xlu0.b32.cont [2/16] %v1861, 128
    %1982 = vxpose.xlu0.b32.cont [3/16] %v1862, 128
    %1983 = vxpose.xlu0.b32.cont [4/16] %v1863, 128
    %1984 = vxpose.xlu0.b32.cont [5/16] 0.0, 128
    %1985 = vxpose.xlu0.b32.cont [6/16] 0.0, 128
    %1986 = vxpose.xlu0.b32.cont [7/16] 0.0, 128
    %1987 = vxpose.xlu0.b32.cont [8/16] 0.0, 128
    %1988 = vxpose.xlu0.b32.cont [9/16] 0.0, 128
    %1989 = vxpose.xlu0.b32.cont [10/16] 0.0, 128
    %1990 = vxpose.xlu0.b32.cont [11/16] 0.0, 128
    %1991 = vxpose.xlu0.b32.cont [12/16] 0.0, 128
    %1992 = vxpose.xlu0.b32.cont [13/16] 0.0, 128
    %1993 = vxpose.xlu0.b32.cont [14/16] 0.0, 128
    %1994 = vxpose.xlu0.b32.cont [15/16] 0.0, 128
    %1995 = vxpose.xlu0.b32.end [16/16] 0.0, 128
    %v1996 = vpop.trf.xlu0
    %v1997 = vpop.trf.xlu0
    %v1998 = vpop.trf.xlu0
    %v1999 = vpop.trf.xlu0
    %v2000 = vpop.trf.xlu0
    %v2001 = vpop.trf.xlu0
    %v2002 = vpop.trf.xlu0
    %v2003 = vpop.trf.xlu0
    %v2004 = vpop.trf.xlu0
    %v2005 = vpop.trf.xlu0
    %v2006 = vpop.trf.xlu0
    %v2007 = vpop.trf.xlu0
    %v2008 = vpop.trf.xlu0
    %v2009 = vpop.trf.xlu0
    %v2010 = vpop.trf.xlu0
    %v2011 = vpop.trf.xlu0
    %2012 = vxpose.xlu0.b32.start [1/16] %v1864, 128
    %2013 = vxpose.xlu0.b32.cont [2/16] %v1865, 128
    %2014 = vxpose.xlu0.b32.cont [3/16] %v1866, 128
    %2015 = vxpose.xlu0.b32.cont [4/16] %v1867, 128
    %2016 = vxpose.xlu0.b32.cont [5/16] 0.0, 128
    %2017 = vxpose.xlu0.b32.cont [6/16] 0.0, 128
    %2018 = vxpose.xlu0.b32.cont [7/16] 0.0, 128
    %2019 = vxpose.xlu0.b32.cont [8/16] 0.0, 128
    %2020 = vxpose.xlu0.b32.cont [9/16] 0.0, 128
    %2021 = vxpose.xlu0.b32.cont [10/16] 0.0, 128
    %2022 = vxpose.xlu0.b32.cont [11/16] 0.0, 128
    %2023 = vxpose.xlu0.b32.cont [12/16] 0.0, 128
    %2024 = vxpose.xlu0.b32.cont [13/16] 0.0, 128
    %2025 = vxpose.xlu0.b32.cont [14/16] 0.0, 128
    %2026 = vxpose.xlu0.b32.cont [15/16] 0.0, 128
    %2027 = vxpose.xlu0.b32.end [16/16] 0.0, 128
    %v2028 = vpop.trf.xlu0
    %v2029 = vpop.trf.xlu0
    %v2030 = vpop.trf.xlu0
    %v2031 = vpop.trf.xlu0
    %v2032 = vpop.trf.xlu0
    %v2033 = vpop.trf.xlu0
    %v2034 = vpop.trf.xlu0
    %v2035 = vpop.trf.xlu0
    %v2036 = vpop.trf.xlu0
    %v2037 = vpop.trf.xlu0
    %v2038 = vpop.trf.xlu0
    %v2039 = vpop.trf.xlu0
    %v2040 = vpop.trf.xlu0
    %v2041 = vpop.trf.xlu0
    %v2042 = vpop.trf.xlu0
    %v2043 = vpop.trf.xlu0
    %2044 = vxpose.xlu0.b32.start [1/16] %v1868, 128
    %2045 = vxpose.xlu0.b32.cont [2/16] %v1869, 128
    %2046 = vxpose.xlu0.b32.cont [3/16] %v1870, 128
    %2047 = vxpose.xlu0.b32.cont [4/16] %v1871, 128
    %2048 = vxpose.xlu0.b32.cont [5/16] 0.0, 128
    %2049 = vxpose.xlu0.b32.cont [6/16] 0.0, 128
    %2050 = vxpose.xlu0.b32.cont [7/16] 0.0, 128
    %2051 = vxpose.xlu0.b32.cont [8/16] 0.0, 128
    %2052 = vxpose.xlu0.b32.cont [9/16] 0.0, 128
    %2053 = vxpose.xlu0.b32.cont [10/16] 0.0, 128
    %2054 = vxpose.xlu0.b32.cont [11/16] 0.0, 128
    %2055 = vxpose.xlu0.b32.cont [12/16] 0.0, 128
    %2056 = vxpose.xlu0.b32.cont [13/16] 0.0, 128
    %2057 = vxpose.xlu0.b32.cont [14/16] 0.0, 128
    %2058 = vxpose.xlu0.b32.cont [15/16] 0.0, 128
    %2059 = vxpose.xlu0.b32.end [16/16] 0.0, 128
    %v2060 = vpop.trf.xlu0
    %v2061 = vpop.trf.xlu0
    %v2062 = vpop.trf.xlu0
    %v2063 = vpop.trf.xlu0
    %v2064 = vpop.trf.xlu0
    %v2065 = vpop.trf.xlu0
    %v2066 = vpop.trf.xlu0
    %v2067 = vpop.trf.xlu0
    %v2068 = vpop.trf.xlu0
    %v2069 = vpop.trf.xlu0
    %v2070 = vpop.trf.xlu0
    %v2071 = vpop.trf.xlu0
    %v2072 = vpop.trf.xlu0
    %v2073 = vpop.trf.xlu0
    %v2074 = vpop.trf.xlu0
    %v2075 = vpop.trf.xlu0
    %2076 = vxpose.xlu0.b32.start [1/16] %v1872, 128
    %2077 = vxpose.xlu0.b32.cont [2/16] %v1873, 128
    %2078 = vxpose.xlu0.b32.cont [3/16] %v1874, 128
    %2079 = vxpose.xlu0.b32.cont [4/16] %v1875, 128
    %2080 = vxpose.xlu0.b32.cont [5/16] 0.0, 128
    %2081 = vxpose.xlu0.b32.cont [6/16] 0.0, 128
    %2082 = vxpose.xlu0.b32.cont [7/16] 0.0, 128
    %2083 = vxpose.xlu0.b32.cont [8/16] 0.0, 128
    %2084 = vxpose.xlu0.b32.cont [9/16] 0.0, 128
    %2085 = vxpose.xlu0.b32.cont [10/16] 0.0, 128
    %2086 = vxpose.xlu0.b32.cont [11/16] 0.0, 128
    %2087 = vxpose.xlu0.b32.cont [12/16] 0.0, 128
    %2088 = vxpose.xlu0.b32.cont [13/16] 0.0, 128
    %2089 = vxpose.xlu0.b32.cont [14/16] 0.0, 128
    %2090 = vxpose.xlu0.b32.cont [15/16] 0.0, 128
    %2091 = vxpose.xlu0.b32.end [16/16] 0.0, 128
    %v2092 = vpop.trf.xlu0
    %v2093 = vpop.trf.xlu0
    %v2094 = vpop.trf.xlu0
    %v2095 = vpop.trf.xlu0
    %v2096 = vpop.trf.xlu0
    %v2097 = vpop.trf.xlu0
    %v2098 = vpop.trf.xlu0
    %v2099 = vpop.trf.xlu0
    %v2100 = vpop.trf.xlu0
    %v2101 = vpop.trf.xlu0
    %v2102 = vpop.trf.xlu0
    %v2103 = vpop.trf.xlu0
    %v2104 = vpop.trf.xlu0
    %v2105 = vpop.trf.xlu0
    %v2106 = vpop.trf.xlu0
    %v2107 = vpop.trf.xlu0
    %2108 = vxpose.xlu0.b32.start [1/16] %v1876, 128
    %2109 = vxpose.xlu0.b32.cont [2/16] %v1877, 128
    %2110 = vxpose.xlu0.b32.cont [3/16] %v1878, 128
    %2111 = vxpose.xlu0.b32.cont [4/16] %v1879, 128
    %2112 = vxpose.xlu0.b32.cont [5/16] 0.0, 128
    %2113 = vxpose.xlu0.b32.cont [6/16] 0.0, 128
    %2114 = vxpose.xlu0.b32.cont [7/16] 0.0, 128
    %2115 = vxpose.xlu0.b32.cont [8/16] 0.0, 128
    %2116 = vxpose.xlu0.b32.cont [9/16] 0.0, 128
    %2117 = vxpose.xlu0.b32.cont [10/16] 0.0, 128
    %2118 = vxpose.xlu0.b32.cont [11/16] 0.0, 128
    %2119 = vxpose.xlu0.b32.cont [12/16] 0.0, 128
    %2120 = vxpose.xlu0.b32.cont [13/16] 0.0, 128
    %2121 = vxpose.xlu0.b32.cont [14/16] 0.0, 128
    %2122 = vxpose.xlu0.b32.cont [15/16] 0.0, 128
    %2123 = vxpose.xlu0.b32.end [16/16] 0.0, 128
    %v2124 = vpop.trf.xlu0
    %v2125 = vpop.trf.xlu0
    %v2126 = vpop.trf.xlu0
    %v2127 = vpop.trf.xlu0
    %v2128 = vpop.trf.xlu0
    %v2129 = vpop.trf.xlu0
    %v2130 = vpop.trf.xlu0
    %v2131 = vpop.trf.xlu0
    %v2132 = vpop.trf.xlu0
    %v2133 = vpop.trf.xlu0
    %v2134 = vpop.trf.xlu0
    %v2135 = vpop.trf.xlu0
    %v2136 = vpop.trf.xlu0
    %v2137 = vpop.trf.xlu0
    %v2138 = vpop.trf.xlu0
    %v2139 = vpop.trf.xlu0
    %2140 = vxpose.xlu0.b32.start [1/16] %v1880, 128
    %2141 = vxpose.xlu0.b32.cont [2/16] %v1881, 128
    %2142 = vxpose.xlu0.b32.cont [3/16] %v1882, 128
    %2143 = vxpose.xlu0.b32.cont [4/16] %v1883, 128
    %2144 = vxpose.xlu0.b32.cont [5/16] 0.0, 128
    %2145 = vxpose.xlu0.b32.cont [6/16] 0.0, 128
    %2146 = vxpose.xlu0.b32.cont [7/16] 0.0, 128
    %2147 = vxpose.xlu0.b32.cont [8/16] 0.0, 128
    %2148 = vxpose.xlu0.b32.cont [9/16] 0.0, 128
    %2149 = vxpose.xlu0.b32.cont [10/16] 0.0, 128
    %2150 = vxpose.xlu0.b32.cont [11/16] 0.0, 128
    %2151 = vxpose.xlu0.b32.cont [12/16] 0.0, 128
    %2152 = vxpose.xlu0.b32.cont [13/16] 0.0, 128
    %2153 = vxpose.xlu0.b32.cont [14/16] 0.0, 128
    %2154 = vxpose.xlu0.b32.cont [15/16] 0.0, 128
    %2155 = vxpose.xlu0.b32.end [16/16] 0.0, 128
    %v2156 = vpop.trf.xlu0
    %v2157 = vpop.trf.xlu0
    %v2158 = vpop.trf.xlu0
    %v2159 = vpop.trf.xlu0
    %v2160 = vpop.trf.xlu0
    %v2161 = vpop.trf.xlu0
    %v2162 = vpop.trf.xlu0
    %v2163 = vpop.trf.xlu0
    %v2164 = vpop.trf.xlu0
    %v2165 = vpop.trf.xlu0
    %v2166 = vpop.trf.xlu0
    %v2167 = vpop.trf.xlu0
    %v2168 = vpop.trf.xlu0
    %v2169 = vpop.trf.xlu0
    %v2170 = vpop.trf.xlu0
    %v2171 = vpop.trf.xlu0
    %2172 = vxpose.xlu0.b32.start [1/16] %v1884, 128
    %2173 = vxpose.xlu0.b32.cont [2/16] %v1885, 128
    %2174 = vxpose.xlu0.b32.cont [3/16] %v1886, 128
    %2175 = vxpose.xlu0.b32.cont [4/16] %v1887, 128
    %2176 = vxpose.xlu0.b32.cont [5/16] 0.0, 128
    %2177 = vxpose.xlu0.b32.cont [6/16] 0.0, 128
    %2178 = vxpose.xlu0.b32.cont [7/16] 0.0, 128
    %2179 = vxpose.xlu0.b32.cont [8/16] 0.0, 128
    %2180 = vxpose.xlu0.b32.cont [9/16] 0.0, 128
    %2181 = vxpose.xlu0.b32.cont [10/16] 0.0, 128
    %2182 = vxpose.xlu0.b32.cont [11/16] 0.0, 128
    %2183 = vxpose.xlu0.b32.cont [12/16] 0.0, 128
    %2184 = vxpose.xlu0.b32.cont [13/16] 0.0, 128
    %2185 = vxpose.xlu0.b32.cont [14/16] 0.0, 128
    %2186 = vxpose.xlu0.b32.cont [15/16] 0.0, 128
    %2187 = vxpose.xlu0.b32.end [16/16] 0.0, 128
    %v2188 = vpop.trf.xlu0
    %v2189 = vpop.trf.xlu0
    %v2190 = vpop.trf.xlu0
    %v2191 = vpop.trf.xlu0
    %v2192 = vpop.trf.xlu0
    %v2193 = vpop.trf.xlu0
    %v2194 = vpop.trf.xlu0
    %v2195 = vpop.trf.xlu0
    %v2196 = vpop.trf.xlu0
    %v2197 = vpop.trf.xlu0
    %v2198 = vpop.trf.xlu0
    %v2199 = vpop.trf.xlu0
    %v2200 = vpop.trf.xlu0
    %v2201 = vpop.trf.xlu0
    %v2202 = vpop.trf.xlu0
    %v2203 = vpop.trf.xlu0
    %2204 = vxpose.xlu0.b32.start [1/16] %v1888, 128
    %2205 = vxpose.xlu0.b32.cont [2/16] %v1889, 128
    %2206 = vxpose.xlu0.b32.cont [3/16] %v1890, 128
    %2207 = vxpose.xlu0.b32.cont [4/16] %v1891, 128
    %2208 = vxpose.xlu0.b32.cont [5/16] 0.0, 128
    %2209 = vxpose.xlu0.b32.cont [6/16] 0.0, 128
    %2210 = vxpose.xlu0.b32.cont [7/16] 0.0, 128
    %2211 = vxpose.xlu0.b32.cont [8/16] 0.0, 128
    %2212 = vxpose.xlu0.b32.cont [9/16] 0.0, 128
    %2213 = vxpose.xlu0.b32.cont [10/16] 0.0, 128
    %2214 = vxpose.xlu0.b32.cont [11/16] 0.0, 128
    %2215 = vxpose.xlu0.b32.cont [12/16] 0.0, 128
    %2216 = vxpose.xlu0.b32.cont [13/16] 0.0, 128
    %2217 = vxpose.xlu0.b32.cont [14/16] 0.0, 128
    %2218 = vxpose.xlu0.b32.cont [15/16] 0.0, 128
    %2219 = vxpose.xlu0.b32.end [16/16] 0.0, 128
    %v2220 = vpop.trf.xlu0
    %v2221 = vpop.trf.xlu0
    %v2222 = vpop.trf.xlu0
    %v2223 = vpop.trf.xlu0
    %v2224 = vpop.trf.xlu0
    %v2225 = vpop.trf.xlu0
    %v2226 = vpop.trf.xlu0
    %v2227 = vpop.trf.xlu0
    %v2228 = vpop.trf.xlu0
    %v2229 = vpop.trf.xlu0
    %v2230 = vpop.trf.xlu0
    %v2231 = vpop.trf.xlu0
    %v2232 = vpop.trf.xlu0
    %v2233 = vpop.trf.xlu0
    %v2234 = vpop.trf.xlu0
    %v2235 = vpop.trf.xlu0
    %2236 = vxpose.xlu0.b32.start [1/16] %v1892, 128
    %2237 = vxpose.xlu0.b32.cont [2/16] %v1893, 128
    %2238 = vxpose.xlu0.b32.cont [3/16] %v1894, 128
    %2239 = vxpose.xlu0.b32.cont [4/16] %v1895, 128
    %2240 = vxpose.xlu0.b32.cont [5/16] 0.0, 128
    %2241 = vxpose.xlu0.b32.cont [6/16] 0.0, 128
    %2242 = vxpose.xlu0.b32.cont [7/16] 0.0, 128
    %2243 = vxpose.xlu0.b32.cont [8/16] 0.0, 128
    %2244 = vxpose.xlu0.b32.cont [9/16] 0.0, 128
    %2245 = vxpose.xlu0.b32.cont [10/16] 0.0, 128
    %2246 = vxpose.xlu0.b32.cont [11/16] 0.0, 128
    %2247 = vxpose.xlu0.b32.cont [12/16] 0.0, 128
    %2248 = vxpose.xlu0.b32.cont [13/16] 0.0, 128
    %2249 = vxpose.xlu0.b32.cont [14/16] 0.0, 128
    %2250 = vxpose.xlu0.b32.cont [15/16] 0.0, 128
    %2251 = vxpose.xlu0.b32.end [16/16] 0.0, 128
    %v2252 = vpop.trf.xlu0
    %v2253 = vpop.trf.xlu0
    %v2254 = vpop.trf.xlu0
    %v2255 = vpop.trf.xlu0
    %v2256 = vpop.trf.xlu0
    %v2257 = vpop.trf.xlu0
    %v2258 = vpop.trf.xlu0
    %v2259 = vpop.trf.xlu0
    %v2260 = vpop.trf.xlu0
    %v2261 = vpop.trf.xlu0
    %v2262 = vpop.trf.xlu0
    %v2263 = vpop.trf.xlu0
    %v2264 = vpop.trf.xlu0
    %v2265 = vpop.trf.xlu0
    %v2266 = vpop.trf.xlu0
    %v2267 = vpop.trf.xlu0
    %2268 = vxpose.xlu0.b32.start [1/16] %v1896, 128
    %2269 = vxpose.xlu0.b32.cont [2/16] %v1897, 128
    %2270 = vxpose.xlu0.b32.cont [3/16] %v1898, 128
    %2271 = vxpose.xlu0.b32.cont [4/16] %v1899, 128
    %2272 = vxpose.xlu0.b32.cont [5/16] 0.0, 128
    %2273 = vxpose.xlu0.b32.cont [6/16] 0.0, 128
    %2274 = vxpose.xlu0.b32.cont [7/16] 0.0, 128
    %2275 = vxpose.xlu0.b32.cont [8/16] 0.0, 128
    %2276 = vxpose.xlu0.b32.cont [9/16] 0.0, 128
    %2277 = vxpose.xlu0.b32.cont [10/16] 0.0, 128
    %2278 = vxpose.xlu0.b32.cont [11/16] 0.0, 128
    %2279 = vxpose.xlu0.b32.cont [12/16] 0.0, 128
    %2280 = vxpose.xlu0.b32.cont [13/16] 0.0, 128
    %2281 = vxpose.xlu0.b32.cont [14/16] 0.0, 128
    %2282 = vxpose.xlu0.b32.cont [15/16] 0.0, 128
    %2283 = vxpose.xlu0.b32.end [16/16] 0.0, 128
    %v2284 = vpop.trf.xlu0
    %v2285 = vpop.trf.xlu0
    %v2286 = vpop.trf.xlu0
    %v2287 = vpop.trf.xlu0
    %v2288 = vpop.trf.xlu0
    %v2289 = vpop.trf.xlu0
    %v2290 = vpop.trf.xlu0
    %v2291 = vpop.trf.xlu0
    %v2292 = vpop.trf.xlu0
    %v2293 = vpop.trf.xlu0
    %v2294 = vpop.trf.xlu0
    %v2295 = vpop.trf.xlu0
    %v2296 = vpop.trf.xlu0
    %v2297 = vpop.trf.xlu0
    %v2298 = vpop.trf.xlu0
    %v2299 = vpop.trf.xlu0
    %2300 = vxpose.xlu0.b32.start [1/16] %v1900, 128
    %2301 = vxpose.xlu0.b32.cont [2/16] %v1901, 128
    %2302 = vxpose.xlu0.b32.cont [3/16] %v1902, 128
    %2303 = vxpose.xlu0.b32.cont [4/16] %v1903, 128
    %2304 = vxpose.xlu0.b32.cont [5/16] 0.0, 128
    %2305 = vxpose.xlu0.b32.cont [6/16] 0.0, 128
    %2306 = vxpose.xlu0.b32.cont [7/16] 0.0, 128
    %2307 = vxpose.xlu0.b32.cont [8/16] 0.0, 128
    %2308 = vxpose.xlu0.b32.cont [9/16] 0.0, 128
    %2309 = vxpose.xlu0.b32.cont [10/16] 0.0, 128
    %2310 = vxpose.xlu0.b32.cont [11/16] 0.0, 128
    %2311 = vxpose.xlu0.b32.cont [12/16] 0.0, 128
    %2312 = vxpose.xlu0.b32.cont [13/16] 0.0, 128
    %2313 = vxpose.xlu0.b32.cont [14/16] 0.0, 128
    %2314 = vxpose.xlu0.b32.cont [15/16] 0.0, 128
    %2315 = vxpose.xlu0.b32.end [16/16] 0.0, 128
    %v2316 = vpop.trf.xlu0
    %v2317 = vpop.trf.xlu0
    %v2318 = vpop.trf.xlu0
    %v2319 = vpop.trf.xlu0
    %v2320 = vpop.trf.xlu0
    %v2321 = vpop.trf.xlu0
    %v2322 = vpop.trf.xlu0
    %v2323 = vpop.trf.xlu0
    %v2324 = vpop.trf.xlu0
    %v2325 = vpop.trf.xlu0
    %v2326 = vpop.trf.xlu0
    %v2327 = vpop.trf.xlu0
    %v2328 = vpop.trf.xlu0
    %v2329 = vpop.trf.xlu0
    %v2330 = vpop.trf.xlu0
    %v2331 = vpop.trf.xlu0
    %2332 = vxpose.xlu0.b32.start [1/16] %v1904, 128
    %2333 = vxpose.xlu0.b32.cont [2/16] %v1905, 128
    %2334 = vxpose.xlu0.b32.cont [3/16] %v1906, 128
    %2335 = vxpose.xlu0.b32.cont [4/16] %v1907, 128
    %2336 = vxpose.xlu0.b32.cont [5/16] 0.0, 128
    %2337 = vxpose.xlu0.b32.cont [6/16] 0.0, 128
    %2338 = vxpose.xlu0.b32.cont [7/16] 0.0, 128
    %2339 = vxpose.xlu0.b32.cont [8/16] 0.0, 128
    %2340 = vxpose.xlu0.b32.cont [9/16] 0.0, 128
    %2341 = vxpose.xlu0.b32.cont [10/16] 0.0, 128
    %2342 = vxpose.xlu0.b32.cont [11/16] 0.0, 128
    %2343 = vxpose.xlu0.b32.cont [12/16] 0.0, 128
    %2344 = vxpose.xlu0.b32.cont [13/16] 0.0, 128
    %2345 = vxpose.xlu0.b32.cont [14/16] 0.0, 128
    %2346 = vxpose.xlu0.b32.cont [15/16] 0.0, 128
    %2347 = vxpose.xlu0.b32.end [16/16] 0.0, 128
    %v2348 = vpop.trf.xlu0
    %v2349 = vpop.trf.xlu0
    %v2350 = vpop.trf.xlu0
    %v2351 = vpop.trf.xlu0
    %v2352 = vpop.trf.xlu0
    %v2353 = vpop.trf.xlu0
    %v2354 = vpop.trf.xlu0
    %v2355 = vpop.trf.xlu0
    %v2356 = vpop.trf.xlu0
    %v2357 = vpop.trf.xlu0
    %v2358 = vpop.trf.xlu0
    %v2359 = vpop.trf.xlu0
    %v2360 = vpop.trf.xlu0
    %v2361 = vpop.trf.xlu0
    %v2362 = vpop.trf.xlu0
    %v2363 = vpop.trf.xlu0
    %2364 = vxpose.xlu0.b32.start [1/16] %v1908, 128
    %2365 = vxpose.xlu0.b32.cont [2/16] %v1909, 128
    %2366 = vxpose.xlu0.b32.cont [3/16] %v1910, 128
    %2367 = vxpose.xlu0.b32.cont [4/16] %v1911, 128
    %2368 = vxpose.xlu0.b32.cont [5/16] 0.0, 128
    %2369 = vxpose.xlu0.b32.cont [6/16] 0.0, 128
    %2370 = vxpose.xlu0.b32.cont [7/16] 0.0, 128
    %2371 = vxpose.xlu0.b32.cont [8/16] 0.0, 128
    %2372 = vxpose.xlu0.b32.cont [9/16] 0.0, 128
    %2373 = vxpose.xlu0.b32.cont [10/16] 0.0, 128
    %2374 = vxpose.xlu0.b32.cont [11/16] 0.0, 128
    %2375 = vxpose.xlu0.b32.cont [12/16] 0.0, 128
    %2376 = vxpose.xlu0.b32.cont [13/16] 0.0, 128
    %2377 = vxpose.xlu0.b32.cont [14/16] 0.0, 128
    %2378 = vxpose.xlu0.b32.cont [15/16] 0.0, 128
    %2379 = vxpose.xlu0.b32.end [16/16] 0.0, 128
    %v2380 = vpop.trf.xlu0
    %v2381 = vpop.trf.xlu0
    %v2382 = vpop.trf.xlu0
    %v2383 = vpop.trf.xlu0
    %v2384 = vpop.trf.xlu0
    %v2385 = vpop.trf.xlu0
    %v2386 = vpop.trf.xlu0
    %v2387 = vpop.trf.xlu0
    %v2388 = vpop.trf.xlu0
    %v2389 = vpop.trf.xlu0
    %v2390 = vpop.trf.xlu0
    %v2391 = vpop.trf.xlu0
    %v2392 = vpop.trf.xlu0
    %v2393 = vpop.trf.xlu0
    %v2394 = vpop.trf.xlu0
    %v2395 = vpop.trf.xlu0
    %2396 = vxpose.xlu0.b32.start [1/16] %v1912, 128
    %2397 = vxpose.xlu0.b32.cont [2/16] %v1913, 128
    %2398 = vxpose.xlu0.b32.cont [3/16] %v1914, 128
    %2399 = vxpose.xlu0.b32.cont [4/16] %v1915, 128
    %2400 = vxpose.xlu0.b32.cont [5/16] 0.0, 128
    %2401 = vxpose.xlu0.b32.cont [6/16] 0.0, 128
    %2402 = vxpose.xlu0.b32.cont [7/16] 0.0, 128
    %2403 = vxpose.xlu0.b32.cont [8/16] 0.0, 128
    %2404 = vxpose.xlu0.b32.cont [9/16] 0.0, 128
    %2405 = vxpose.xlu0.b32.cont [10/16] 0.0, 128
    %2406 = vxpose.xlu0.b32.cont [11/16] 0.0, 128
    %2407 = vxpose.xlu0.b32.cont [12/16] 0.0, 128
    %2408 = vxpose.xlu0.b32.cont [13/16] 0.0, 128
    %2409 = vxpose.xlu0.b32.cont [14/16] 0.0, 128
    %2410 = vxpose.xlu0.b32.cont [15/16] 0.0, 128
    %2411 = vxpose.xlu0.b32.end [16/16] 0.0, 128
    %v2412 = vpop.trf.xlu0
    %v2413 = vpop.trf.xlu0
    %v2414 = vpop.trf.xlu0
    %v2415 = vpop.trf.xlu0
    %v2416 = vpop.trf.xlu0
    %v2417 = vpop.trf.xlu0
    %v2418 = vpop.trf.xlu0
    %v2419 = vpop.trf.xlu0
    %v2420 = vpop.trf.xlu0
    %v2421 = vpop.trf.xlu0
    %v2422 = vpop.trf.xlu0
    %v2423 = vpop.trf.xlu0
    %v2424 = vpop.trf.xlu0
    %v2425 = vpop.trf.xlu0
    %v2426 = vpop.trf.xlu0
    %v2427 = vpop.trf.xlu0
    %vm2428 = vcmask 261120
    %v2429 = vsel %vm2428, %v1932, 0.0
    %2430 = vadd.xlane.f32.xlu0 %v2429
    %v2431 = vpop.xlane.xlu0 %2430
    %v2432 = vsel %vm2428, %v1964, 0.0
    %2433 = vadd.xlane.f32.xlu0 %v2432
    %v2434 = vpop.xlane.xlu0 %2433
    %v2435 = vsel %vm2428, %v1996, 0.0
    %2436 = vadd.xlane.f32.xlu0 %v2435
    %v2437 = vpop.xlane.xlu0 %2436
    %v2438 = vsel %vm2428, %v2028, 0.0
    %2439 = vadd.xlane.f32.xlu0 %v2438
    %v2440 = vpop.xlane.xlu0 %2439
    %v2441 = vsel %vm2428, %v2060, 0.0
    %2442 = vadd.xlane.f32.xlu0 %v2441
    %v2443 = vpop.xlane.xlu0 %2442
    %v2444 = vsel %vm2428, %v2092, 0.0
    %2445 = vadd.xlane.f32.xlu0 %v2444
    %v2446 = vpop.xlane.xlu0 %2445
    %v2447 = vsel %vm2428, %v2124, 0.0
    %2448 = vadd.xlane.f32.xlu0 %v2447
    %v2449 = vpop.xlane.xlu0 %2448
    %v2450 = vsel %vm2428, %v2156, 0.0
    %2451 = vadd.xlane.f32.xlu0 %v2450
    %v2452 = vpop.xlane.xlu0 %2451
    %v2453 = vsel %vm2428, %v2188, 0.0
    %2454 = vadd.xlane.f32.xlu0 %v2453
    %v2455 = vpop.xlane.xlu0 %2454
    %v2456 = vsel %vm2428, %v2220, 0.0
    %2457 = vadd.xlane.f32.xlu0 %v2456
    %v2458 = vpop.xlane.xlu0 %2457
    %v2459 = vsel %vm2428, %v2252, 0.0
    %2460 = vadd.xlane.f32.xlu0 %v2459
    %v2461 = vpop.xlane.xlu0 %2460
    %v2462 = vsel %vm2428, %v2284, 0.0
    %2463 = vadd.xlane.f32.xlu0 %v2462
    %v2464 = vpop.xlane.xlu0 %2463
    %v2465 = vsel %vm2428, %v2316, 0.0
    %2466 = vadd.xlane.f32.xlu0 %v2465
    %v2467 = vpop.xlane.xlu0 %2466
    %v2468 = vsel %vm2428, %v2348, 0.0
    %2469 = vadd.xlane.f32.xlu0 %v2468
    %v2470 = vpop.xlane.xlu0 %2469
    %v2471 = vsel %vm2428, %v2380, 0.0
    %2472 = vadd.xlane.f32.xlu0 %v2471
    %v2473 = vpop.xlane.xlu0 %2472
    %v2474 = vsel %vm2428, %v2412, 0.0
    %2475 = vadd.xlane.f32.xlu0 %v2474
    %v2476 = vpop.xlane.xlu0 %2475
    %v2477 = vmul.f32 %v2431, %v303
    %v2478 = vmul.f32 %v2434, %v303
    %v2479 = vmul.f32 %v2437, %v303
    %v2480 = vmul.f32 %v2440, %v303
    %v2481 = vmul.f32 %v2443, %v303
    %v2482 = vmul.f32 %v2446, %v303
    %v2483 = vmul.f32 %v2449, %v303
    %v2484 = vmul.f32 %v2452, %v303
    %v2485 = vmul.f32 %v2455, %v303
    %v2486 = vmul.f32 %v2458, %v303
    %v2487 = vmul.f32 %v2461, %v303
    %v2488 = vmul.f32 %v2464, %v303
    %v2489 = vmul.f32 %v2467, %v303
    %v2490 = vmul.f32 %v2470, %v303
    %v2491 = vmul.f32 %v2473, %v303
    %v2492 = vmul.f32 %v2476, %v303
    %v2493 = vsub.f32 %v1932, %v2477
    %v2494 = vsub.f32 %v1964, %v2478
    %v2495 = vsub.f32 %v1996, %v2479
    %v2496 = vsub.f32 %v2028, %v2480
    %v2497 = vsub.f32 %v2060, %v2481
    %v2498 = vsub.f32 %v2092, %v2482
    %v2499 = vsub.f32 %v2124, %v2483
    %v2500 = vsub.f32 %v2156, %v2484
    %v2501 = vsub.f32 %v2188, %v2485
    %v2502 = vsub.f32 %v2220, %v2486
    %v2503 = vsub.f32 %v2252, %v2487
    %v2504 = vsub.f32 %v2284, %v2488
    %v2505 = vsub.f32 %v2316, %v2489
    %v2506 = vsub.f32 %v2348, %v2490
    %v2507 = vsub.f32 %v2380, %v2491
    %v2508 = vsub.f32 %v2412, %v2492
    %v2509 = vmul.f32 %v2493, %v2493
    %v2510 = vmul.f32 %v2494, %v2494
    %v2511 = vmul.f32 %v2495, %v2495
    %v2512 = vmul.f32 %v2496, %v2496
    %v2513 = vmul.f32 %v2497, %v2497
    %v2514 = vmul.f32 %v2498, %v2498
    %v2515 = vmul.f32 %v2499, %v2499
    %v2516 = vmul.f32 %v2500, %v2500
    %v2517 = vmul.f32 %v2501, %v2501
    %v2518 = vmul.f32 %v2502, %v2502
    %v2519 = vmul.f32 %v2503, %v2503
    %v2520 = vmul.f32 %v2504, %v2504
    %v2521 = vmul.f32 %v2505, %v2505
    %v2522 = vmul.f32 %v2506, %v2506
    %v2523 = vmul.f32 %v2507, %v2507
    %v2524 = vmul.f32 %v2508, %v2508
    %v2525 = vsel %vm2428, %v2509, 0.0
    %2526 = vadd.xlane.f32.xlu0 %v2525
    %v2527 = vpop.xlane.xlu0 %2526
    %v2528 = vsel %vm2428, %v2510, 0.0
    %2529 = vadd.xlane.f32.xlu0 %v2528
    %v2530 = vpop.xlane.xlu0 %2529
    %v2531 = vsel %vm2428, %v2511, 0.0
    %2532 = vadd.xlane.f32.xlu0 %v2531
    %v2533 = vpop.xlane.xlu0 %2532
    %v2534 = vsel %vm2428, %v2512, 0.0
    %2535 = vadd.xlane.f32.xlu0 %v2534
    %v2536 = vpop.xlane.xlu0 %2535
    %v2537 = vsel %vm2428, %v2513, 0.0
    %2538 = vadd.xlane.f32.xlu0 %v2537
    %v2539 = vpop.xlane.xlu0 %2538
    %v2540 = vsel %vm2428, %v2514, 0.0
    %2541 = vadd.xlane.f32.xlu0 %v2540
    %v2542 = vpop.xlane.xlu0 %2541
    %v2543 = vsel %vm2428, %v2515, 0.0
    %2544 = vadd.xlane.f32.xlu0 %v2543
    %v2545 = vpop.xlane.xlu0 %2544
    %v2546 = vsel %vm2428, %v2516, 0.0
    %2547 = vadd.xlane.f32.xlu0 %v2546
    %v2548 = vpop.xlane.xlu0 %2547
    %v2549 = vsel %vm2428, %v2517, 0.0
    %2550 = vadd.xlane.f32.xlu0 %v2549
    %v2551 = vpop.xlane.xlu0 %2550
    %v2552 = vsel %vm2428, %v2518, 0.0
    %2553 = vadd.xlane.f32.xlu0 %v2552
    %v2554 = vpop.xlane.xlu0 %2553
    %v2555 = vsel %vm2428, %v2519, 0.0
    %2556 = vadd.xlane.f32.xlu0 %v2555
    %v2557 = vpop.xlane.xlu0 %2556
    %v2558 = vsel %vm2428, %v2520, 0.0
    %2559 = vadd.xlane.f32.xlu0 %v2558
    %v2560 = vpop.xlane.xlu0 %2559
    %v2561 = vsel %vm2428, %v2521, 0.0
    %2562 = vadd.xlane.f32.xlu0 %v2561
    %v2563 = vpop.xlane.xlu0 %2562
    %v2564 = vsel %vm2428, %v2522, 0.0
    %2565 = vadd.xlane.f32.xlu0 %v2564
    %v2566 = vpop.xlane.xlu0 %2565
    %v2567 = vsel %vm2428, %v2523, 0.0
    %2568 = vadd.xlane.f32.xlu0 %v2567
    %v2569 = vpop.xlane.xlu0 %2568
    %v2570 = vsel %vm2428, %v2524, 0.0
    %2571 = vadd.xlane.f32.xlu0 %v2570
    %v2572 = vpop.xlane.xlu0 %2571
    %v2573 = vmul.f32 %v2527, %v303
    %v2574 = vmul.f32 %v2530, %v303
    %v2575 = vmul.f32 %v2533, %v303
    %v2576 = vmul.f32 %v2536, %v303
    %v2577 = vmul.f32 %v2539, %v303
    %v2578 = vmul.f32 %v2542, %v303
    %v2579 = vmul.f32 %v2545, %v303
    %v2580 = vmul.f32 %v2548, %v303
    %v2581 = vmul.f32 %v2551, %v303
    %v2582 = vmul.f32 %v2554, %v303
    %v2583 = vmul.f32 %v2557, %v303
    %v2584 = vmul.f32 %v2560, %v303
    %v2585 = vmul.f32 %v2563, %v303
    %v2586 = vmul.f32 %v2566, %v303
    %v2587 = vmul.f32 %v2569, %v303
    %v2588 = vmul.f32 %v2572, %v303
    %v2589 = vadd.f32 %v2573, 1e-05
    %v2590 = vadd.f32 %v2574, 1e-05
    %v2591 = vadd.f32 %v2575, 1e-05
    %v2592 = vadd.f32 %v2576, 1e-05
    %v2593 = vadd.f32 %v2577, 1e-05
    %v2594 = vadd.f32 %v2578, 1e-05
    %v2595 = vadd.f32 %v2579, 1e-05
    %v2596 = vadd.f32 %v2580, 1e-05
    %v2597 = vadd.f32 %v2581, 1e-05
    %v2598 = vadd.f32 %v2582, 1e-05
    %v2599 = vadd.f32 %v2583, 1e-05
    %v2600 = vadd.f32 %v2584, 1e-05
    %v2601 = vadd.f32 %v2585, 1e-05
    %v2602 = vadd.f32 %v2586, 1e-05
    %v2603 = vadd.f32 %v2587, 1e-05
    %v2604 = vadd.f32 %v2588, 1e-05
    %v2605 = vrsqrt.pop %v2589
    %v2606 = vrsqrt.pop %v2590
    %v2607 = vrsqrt.pop %v2591
    %v2608 = vrsqrt.pop %v2592
    %v2609 = vrsqrt.pop %v2593
    %v2610 = vrsqrt.pop %v2594
    %v2611 = vrsqrt.pop %v2595
    %v2612 = vrsqrt.pop %v2596
    %v2613 = vrsqrt.pop %v2597
    %v2614 = vrsqrt.pop %v2598
    %v2615 = vrsqrt.pop %v2599
    %v2616 = vrsqrt.pop %v2600
    %v2617 = vrsqrt.pop %v2601
    %v2618 = vrsqrt.pop %v2602
    %v2619 = vrsqrt.pop %v2603
    %v2620 = vrsqrt.pop %v2604
    %v2621 = vmul.f32 %v2493, %v2605
    %v2622 = vmul.f32 %v2494, %v2606
    %v2623 = vmul.f32 %v2495, %v2607
    %v2624 = vmul.f32 %v2496, %v2608
    %v2625 = vmul.f32 %v2497, %v2609
    %v2626 = vmul.f32 %v2498, %v2610
    %v2627 = vmul.f32 %v2499, %v2611
    %v2628 = vmul.f32 %v2500, %v2612
    %v2629 = vmul.f32 %v2501, %v2613
    %v2630 = vmul.f32 %v2502, %v2614
    %v2631 = vmul.f32 %v2503, %v2615
    %v2632 = vmul.f32 %v2504, %v2616
    %v2633 = vmul.f32 %v2505, %v2617
    %v2634 = vmul.f32 %v2506, %v2618
    %v2635 = vmul.f32 %v2507, %v2619
    %v2636 = vmul.f32 %v2508, %v2620
    %v2637 = vlaneseq
    %v2638 = vshrl.u32 %v2637, 7
    %v2639 = vsub.s32 0, %v2638
    %v2640 = vrot.slane %v89, %v2639
    %v2641 = vmul.f32 %v2621, %v2640
    %v2642 = vmul.f32 %v2622, %v2640
    %v2643 = vmul.f32 %v2623, %v2640
    %v2644 = vmul.f32 %v2624, %v2640
    %v2645 = vmul.f32 %v2625, %v2640
    %v2646 = vmul.f32 %v2626, %v2640
    %v2647 = vmul.f32 %v2627, %v2640
    %v2648 = vmul.f32 %v2628, %v2640
    %v2649 = vmul.f32 %v2629, %v2640
    %v2650 = vmul.f32 %v2630, %v2640
    %v2651 = vmul.f32 %v2631, %v2640
    %v2652 = vmul.f32 %v2632, %v2640
    %v2653 = vmul.f32 %v2633, %v2640
    %v2654 = vmul.f32 %v2634, %v2640
    %v2655 = vmul.f32 %v2635, %v2640
    %v2656 = vmul.f32 %v2636, %v2640
    %v2657 = vlaneseq
    %v2658 = vshrl.u32 %v2657, 7
    %v2659 = vsub.s32 1, %v2658
    %v2660 = vrot.slane %v89, %v2659
    %v2661 = vadd.f32 %v2641, %v2660
    %v2662 = vadd.f32 %v2642, %v2660
    %v2663 = vadd.f32 %v2643, %v2660
    %v2664 = vadd.f32 %v2644, %v2660
    %v2665 = vadd.f32 %v2645, %v2660
    %v2666 = vadd.f32 %v2646, %v2660
    %v2667 = vadd.f32 %v2647, %v2660
    %v2668 = vadd.f32 %v2648, %v2660
    %v2669 = vadd.f32 %v2649, %v2660
    %v2670 = vadd.f32 %v2650, %v2660
    %v2671 = vadd.f32 %v2651, %v2660
    %v2672 = vadd.f32 %v2652, %v2660
    %v2673 = vadd.f32 %v2653, %v2660
    %v2674 = vadd.f32 %v2654, %v2660
    %v2675 = vadd.f32 %v2655, %v2660
    %v2676 = vadd.f32 %v2656, %v2660
    %v2677 = vpack.c.bf16 %v2662, %v2661
    %v2678 = vpack.c.bf16 %v2664, %v2663
    %v2679 = vpack.c.bf16 %v2666, %v2665
    %v2680 = vpack.c.bf16 %v2668, %v2667
    %v2681 = vpack.c.bf16 %v2670, %v2669
    %v2682 = vpack.c.bf16 %v2672, %v2671
    %v2683 = vpack.c.bf16 %v2674, %v2673
    %v2684 = vpack.c.bf16 %v2676, %v2675
    %v2685 = vld [vmem:[%s4] sm:$0xf]
    %v2686 = vld [vmem:[%s4 + $0x4] sm:$0xf]
    %v2687 = vld [vmem:[%s4 + $0x8] sm:$0xf]
    %v2688 = vld [vmem:[%s4 + $0xc] sm:$0xf]
    %v2689 = vlaneseq
    %v2690 = vshrl.u32 %v2689, 7
    %v2691 = vsub.s32 4, %v2690
    %v2692 = vrot.slane %v89, %v2691
    %v2697 = vunpack.c.l.b16 %v2685
    %v2698 = vunpack.c.l.b16 %v2686
    %v2699 = vunpack.c.l.b16 %v2687
    %v2700 = vunpack.c.l.b16 %v2688
    %v2701 = vpack.c.b16 %v2698, %v2697
    %v2702 = vpack.c.b16 %v2700, %v2699
    %v2706 = vsel %vm2428, %v2677, 0
    %v2709 = vsel %vm2428, %v2678, 0
    %v2712 = vsel %vm2428, %v2679, 0
    %v2715 = vsel %vm2428, %v2680, 0
    %v2718 = vsel %vm2428, %v2681, 0
    %v2721 = vsel %vm2428, %v2682, 0
    %v2724 = vsel %vm2428, %v2683, 0
    %v2727 = vsel %vm2428, %v2684, 0
    %2729 = vmatprep.subr.bf16.mxu0 0
    %2730 = vmatpush1.bf16.msra.mxu0 %v2701
    %2731 = vmatprep.subr.bf16.mxu0 0
    %2732 = vmatpush1.bf16.msra.mxu0 %v2702
    %2733 = vmatprep.subr.bf16.mxu0 0
    %2734 = vmatpush1.bf16.msra.mxu0 0
    %2735 = vmatprep.subr.bf16.mxu0 0
    %2736 = vmatpush1.bf16.msra.mxu0 0
    %2737 = vmatprep.subr.bf16.mxu0 0
    %2738 = vmatpush1.bf16.msra.mxu0 0
    %2739 = vmatprep.subr.bf16.mxu0 0
    %2740 = vmatpush1.bf16.msra.mxu0 0
    %2741 = vmatprep.subr.bf16.mxu0 0
    %2742 = vmatpush1.bf16.msra.mxu0 0
    %2743 = vmatprep.subr.bf16.mxu0 0
    %2744 = vmatpush1.bf16.msra.mxu0 0
    %2745 = vmatprep.subr.bf16.mxu0 0
    %2746 = vmatpush1.bf16.msra.mxu0 0
    %2747 = vmatprep.subr.bf16.mxu0 0
    %2748 = vmatpush1.bf16.msra.mxu0 0
    %2749 = vmatprep.subr.bf16.mxu0 0
    %2750 = vmatpush1.bf16.msra.mxu0 0
    %2751 = vmatprep.subr.bf16.mxu0 0
    %2752 = vmatpush1.bf16.msra.mxu0 0
    %2753 = vmatprep.subr.bf16.mxu0 0
    %2754 = vmatpush1.bf16.msra.mxu0 0
    %2755 = vmatprep.subr.bf16.mxu0 0
    %2756 = vmatpush1.bf16.msra.mxu0 0
    %2757 = vmatprep.subr.bf16.mxu0 0
    %2758 = vmatpush1.bf16.msra.mxu0 0
    %2759 = vmatprep.subr.bf16.mxu0 0
    %2760 = vmatpush1.bf16.msra.mxu0 0
    %2761 = vmatprep.mubr.bf16.mxu0 0
    %2762 = vmatmul.mubr.bf16.gmra.mrb[0].mxu0 %v2706
    %v2763 = vpop.f32.mrb[0].mxu0
    %v2764 = vadd.f32 %v2692, %v2763
    %v2765 = vpop.f32.mrb[0].mxu0
    %v2766 = vpop.f32.mrb[0].mxu0
    %v2767 = vadd.f32 %v2692, %v2766
    %v2768 = vpop.f32.mrb[0].mxu0
    %2769 = vmatprep.mubr.bf16.mxu0 0
    %2770 = vmatmul.mubr.bf16.gmra.mrb[0].mxu0 %v2709
    %v2771 = vpop.f32.mrb[0].mxu0
    %v2772 = vadd.f32 %v2692, %v2771
    %v2773 = vpop.f32.mrb[0].mxu0
    %v2774 = vpop.f32.mrb[0].mxu0
    %v2775 = vadd.f32 %v2692, %v2774
    %v2776 = vpop.f32.mrb[0].mxu0
    %2777 = vmatprep.mubr.bf16.mxu0 0
    %2778 = vmatmul.mubr.bf16.gmra.mrb[0].mxu0 %v2712
    %v2779 = vpop.f32.mrb[0].mxu0
    %v2780 = vadd.f32 %v2692, %v2779
    %v2781 = vpop.f32.mrb[0].mxu0
    %v2782 = vpop.f32.mrb[0].mxu0
    %v2783 = vadd.f32 %v2692, %v2782
    %v2784 = vpop.f32.mrb[0].mxu0
    %2785 = vmatprep.mubr.bf16.mxu0 0
    %2786 = vmatmul.mubr.bf16.gmra.mrb[0].mxu0 %v2715
    %v2787 = vpop.f32.mrb[0].mxu0
    %v2788 = vadd.f32 %v2692, %v2787
    %v2789 = vpop.f32.mrb[0].mxu0
    %v2790 = vpop.f32.mrb[0].mxu0
    %v2791 = vadd.f32 %v2692, %v2790
    %v2792 = vpop.f32.mrb[0].mxu0
    %2793 = vmatprep.mubr.bf16.mxu0 0
    %2794 = vmatmul.mubr.bf16.gmra.mrb[0].mxu0 %v2718
    %v2795 = vpop.f32.mrb[0].mxu0
    %v2796 = vadd.f32 %v2692, %v2795
    %v2797 = vpop.f32.mrb[0].mxu0
    %v2798 = vpop.f32.mrb[0].mxu0
    %v2799 = vadd.f32 %v2692, %v2798
    %v2800 = vpop.f32.mrb[0].mxu0
    %2801 = vmatprep.mubr.bf16.mxu0 0
    %2802 = vmatmul.mubr.bf16.gmra.mrb[0].mxu0 %v2721
    %v2803 = vpop.f32.mrb[0].mxu0
    %v2804 = vadd.f32 %v2692, %v2803
    %v2805 = vpop.f32.mrb[0].mxu0
    %v2806 = vpop.f32.mrb[0].mxu0
    %v2807 = vadd.f32 %v2692, %v2806
    %v2808 = vpop.f32.mrb[0].mxu0
    %2809 = vmatprep.mubr.bf16.mxu0 0
    %2810 = vmatmul.mubr.bf16.gmra.mrb[0].mxu0 %v2724
    %v2811 = vpop.f32.mrb[0].mxu0
    %v2812 = vadd.f32 %v2692, %v2811
    %v2813 = vpop.f32.mrb[0].mxu0
    %v2814 = vpop.f32.mrb[0].mxu0
    %v2815 = vadd.f32 %v2692, %v2814
    %v2816 = vpop.f32.mrb[0].mxu0
    %2817 = vmatprep.mubr.bf16.mxu0 0
    %2818 = vmatmul.mubr.bf16.gmra.mrb[0].mxu0 %v2727
    %v2819 = vpop.f32.mrb[0].mxu0
    %v2820 = vadd.f32 %v2692, %v2819
    %v2821 = vpop.f32.mrb[0].mxu0
    %v2822 = vpop.f32.mrb[0].mxu0
    %v2823 = vadd.f32 %v2692, %v2822
    %v2824 = vpop.f32.mrb[0].mxu0
    %2825 = vdwg.mxu0
    %v2826 = vmax.f32 %v2764, 0.0
    %v2827 = vmax.f32 %v2767, 0.0
    %v2828 = vmax.f32 %v2772, 0.0
    %v2829 = vmax.f32 %v2775, 0.0
    %v2830 = vmax.f32 %v2780, 0.0
    %v2831 = vmax.f32 %v2783, 0.0
    %v2832 = vmax.f32 %v2788, 0.0
    %v2833 = vmax.f32 %v2791, 0.0
    %v2834 = vmax.f32 %v2796, 0.0
    %v2835 = vmax.f32 %v2799, 0.0
    %v2836 = vmax.f32 %v2804, 0.0
    %v2837 = vmax.f32 %v2807, 0.0
    %v2838 = vmax.f32 %v2812, 0.0
    %v2839 = vmax.f32 %v2815, 0.0
    %v2840 = vmax.f32 %v2820, 0.0
    %v2841 = vmax.f32 %v2823, 0.0
    %v2842 = vpack.c.bf16 %v2827, %v2826
    %v2843 = vpack.c.bf16 %v2829, %v2828
    %v2844 = vpack.c.bf16 %v2831, %v2830
    %v2845 = vpack.c.bf16 %v2833, %v2832
    %v2846 = vpack.c.bf16 %v2835, %v2834
    %v2847 = vpack.c.bf16 %v2837, %v2836
    %v2848 = vpack.c.bf16 %v2839, %v2838
    %v2849 = vpack.c.bf16 %v2841, %v2840
    %v2850 = vld [vmem:[%s5] sm:$0xf]
    %v2851 = vld [vmem:[%s5 + $0x4] sm:$0xf]
    %v2852 = vld [vmem:[%s5 + $0x8] sm:$0xf]
    %v2853 = vld [vmem:[%s5 + $0xc] sm:$0xf]
    %v2854 = vld [vmem:[%s5 + $0x10] sm:$0xf]
    %v2855 = vld [vmem:[%s5 + $0x14] sm:$0xf]
    %v2856 = vld [vmem:[%s5 + $0x18] sm:$0xf]
    %v2857 = vld [vmem:[%s5 + $0x1c] sm:$0xf]
    %v2858 = vlaneseq
    %v2859 = vshrl.u32 %v2858, 7
    %v2860 = vsub.s32 5, %v2859
    %v2861 = vrot.slane %v89, %v2860
    %v2870 = vunpack.c.l.b16 %v2850
    %v2871 = vunpack.c.l.b16 %v2851
    %v2872 = vunpack.c.l.b16 %v2852
    %v2873 = vunpack.c.l.b16 %v2853
    %v2874 = vunpack.c.l.b16 %v2854
    %v2875 = vunpack.c.l.b16 %v2855
    %v2876 = vunpack.c.l.b16 %v2856
    %v2877 = vunpack.c.l.b16 %v2857
    %v2878 = vpack.c.b16 %v2871, %v2870
    %v2879 = vpack.c.b16 %v2873, %v2872
    %v2880 = vpack.c.b16 %v2875, %v2874
    %v2881 = vpack.c.b16 %v2877, %v2876
    %vm2886 = vcmask 523264
    %v2888 = vsel %vm2886, %v2842, 0
    %v2891 = vsel %vm2886, %v2843, 0
    %v2894 = vsel %vm2886, %v2844, 0
    %v2897 = vsel %vm2886, %v2845, 0
    %v2900 = vsel %vm2886, %v2846, 0
    %v2903 = vsel %vm2886, %v2847, 0
    %v2906 = vsel %vm2886, %v2848, 0
    %v2909 = vsel %vm2886, %v2849, 0
    %2911 = vmatprep.subr.bf16.mxu0 0
    %2912 = vmatpush1.bf16.msra.mxu0 %v2878
    %2913 = vmatprep.subr.bf16.mxu0 0
    %2914 = vmatpush1.bf16.msra.mxu0 %v2879
    %2915 = vmatprep.subr.bf16.mxu0 0
    %2916 = vmatpush1.bf16.msra.mxu0 %v2880
    %2917 = vmatprep.subr.bf16.mxu0 0
    %2918 = vmatpush1.bf16.msra.mxu0 %v2881
    %2919 = vmatprep.subr.bf16.mxu0 0
    %2920 = vmatpush1.bf16.msra.mxu0 0
    %2921 = vmatprep.subr.bf16.mxu0 0
    %2922 = vmatpush1.bf16.msra.mxu0 0
    %2923 = vmatprep.subr.bf16.mxu0 0
    %2924 = vmatpush1.bf16.msra.mxu0 0
    %2925 = vmatprep.subr.bf16.mxu0 0
    %2926 = vmatpush1.bf16.msra.mxu0 0
    %2927 = vmatprep.subr.bf16.mxu0 0
    %2928 = vmatpush1.bf16.msra.mxu0 0
    %2929 = vmatprep.subr.bf16.mxu0 0
    %2930 = vmatpush1.bf16.msra.mxu0 0
    %2931 = vmatprep.subr.bf16.mxu0 0
    %2932 = vmatpush1.bf16.msra.mxu0 0
    %2933 = vmatprep.subr.bf16.mxu0 0
    %2934 = vmatpush1.bf16.msra.mxu0 0
    %2935 = vmatprep.subr.bf16.mxu0 0
    %2936 = vmatpush1.bf16.msra.mxu0 0
    %2937 = vmatprep.subr.bf16.mxu0 0
    %2938 = vmatpush1.bf16.msra.mxu0 0
    %2939 = vmatprep.subr.bf16.mxu0 0
    %2940 = vmatpush1.bf16.msra.mxu0 0
    %2941 = vmatprep.subr.bf16.mxu0 0
    %2942 = vmatpush1.bf16.msra.mxu0 0
    %2943 = vmatprep.mubr.bf16.mxu0 0
    %2944 = vmatmul.mubr.bf16.gmra.mrb[0].mxu0 %v2888
    %v2945 = vpop.f32.mrb[0].mxu0
    %v2946 = vadd.f32 %v2861, %v2945
    %v2947 = vpop.f32.mrb[0].mxu0
    %v2948 = vpop.f32.mrb[0].mxu0
    %v2949 = vadd.f32 %v2861, %v2948
    %v2950 = vpop.f32.mrb[0].mxu0
    %2951 = vmatprep.mubr.bf16.mxu0 0
    %2952 = vmatmul.mubr.bf16.gmra.mrb[0].mxu0 %v2891
    %v2953 = vpop.f32.mrb[0].mxu0
    %v2954 = vadd.f32 %v2861, %v2953
    %v2955 = vpop.f32.mrb[0].mxu0
    %v2956 = vpop.f32.mrb[0].mxu0
    %v2957 = vadd.f32 %v2861, %v2956
    %v2958 = vpop.f32.mrb[0].mxu0
    %2959 = vmatprep.mubr.bf16.mxu0 0
    %2960 = vmatmul.mubr.bf16.gmra.mrb[0].mxu0 %v2894
    %v2961 = vpop.f32.mrb[0].mxu0
    %v2962 = vadd.f32 %v2861, %v2961
    %v2963 = vpop.f32.mrb[0].mxu0
    %v2964 = vpop.f32.mrb[0].mxu0
    %v2965 = vadd.f32 %v2861, %v2964
    %v2966 = vpop.f32.mrb[0].mxu0
    %2967 = vmatprep.mubr.bf16.mxu0 0
    %2968 = vmatmul.mubr.bf16.gmra.mrb[0].mxu0 %v2897
    %v2969 = vpop.f32.mrb[0].mxu0
    %v2970 = vadd.f32 %v2861, %v2969
    %v2971 = vpop.f32.mrb[0].mxu0
    %v2972 = vpop.f32.mrb[0].mxu0
    %v2973 = vadd.f32 %v2861, %v2972
    %v2974 = vpop.f32.mrb[0].mxu0
    %2975 = vmatprep.mubr.bf16.mxu0 0
    %2976 = vmatmul.mubr.bf16.gmra.mrb[0].mxu0 %v2900
    %v2977 = vpop.f32.mrb[0].mxu0
    %v2978 = vadd.f32 %v2861, %v2977
    %v2979 = vpop.f32.mrb[0].mxu0
    %v2980 = vpop.f32.mrb[0].mxu0
    %v2981 = vadd.f32 %v2861, %v2980
    %v2982 = vpop.f32.mrb[0].mxu0
    %2983 = vmatprep.mubr.bf16.mxu0 0
    %2984 = vmatmul.mubr.bf16.gmra.mrb[0].mxu0 %v2903
    %v2985 = vpop.f32.mrb[0].mxu0
    %v2986 = vadd.f32 %v2861, %v2985
    %v2987 = vpop.f32.mrb[0].mxu0
    %v2988 = vpop.f32.mrb[0].mxu0
    %v2989 = vadd.f32 %v2861, %v2988
    %v2990 = vpop.f32.mrb[0].mxu0
    %2991 = vmatprep.mubr.bf16.mxu0 0
    %2992 = vmatmul.mubr.bf16.gmra.mrb[0].mxu0 %v2906
    %v2993 = vpop.f32.mrb[0].mxu0
    %v2994 = vadd.f32 %v2861, %v2993
    %v2995 = vpop.f32.mrb[0].mxu0
    %v2996 = vpop.f32.mrb[0].mxu0
    %v2997 = vadd.f32 %v2861, %v2996
    %v2998 = vpop.f32.mrb[0].mxu0
    %2999 = vmatprep.mubr.bf16.mxu0 0
    %3000 = vmatmul.mubr.bf16.gmra.mrb[0].mxu0 %v2909
    %v3001 = vpop.f32.mrb[0].mxu0
    %v3002 = vadd.f32 %v2861, %v3001
    %v3003 = vpop.f32.mrb[0].mxu0
    %v3004 = vpop.f32.mrb[0].mxu0
    %v3005 = vadd.f32 %v2861, %v3004
    %v3006 = vpop.f32.mrb[0].mxu0
    %3007 = vdwg.mxu0
    %v3008 = vadd.f32 %v2946, %v1932
    %v3009 = vadd.f32 %v2949, %v1964
    %v3010 = vadd.f32 %v2954, %v1996
    %v3011 = vadd.f32 %v2957, %v2028
    %v3012 = vadd.f32 %v2962, %v2060
    %v3013 = vadd.f32 %v2965, %v2092
    %v3014 = vadd.f32 %v2970, %v2124
    %v3015 = vadd.f32 %v2973, %v2156
    %v3016 = vadd.f32 %v2978, %v2188
    %v3017 = vadd.f32 %v2981, %v2220
    %v3018 = vadd.f32 %v2986, %v2252
    %v3019 = vadd.f32 %v2989, %v2284
    %v3020 = vadd.f32 %v2994, %v2316
    %v3021 = vadd.f32 %v2997, %v2348
    %v3022 = vadd.f32 %v3002, %v2380
    %v3023 = vadd.f32 %v3005, %v2412
    %v3024 = vsel %vm2428, %v3008, 0.0
    %v3025 = vrot.slane %v3024, 4
    %v3026 = vadd.f32 %v3024, %v3025
    %v3027 = vrot.slane %v3026, 2
    %v3028 = vadd.f32 %v3026, %v3027
    %v3029 = vrot.slane %v3028, 1
    %v3030 = vadd.f32 %v3028, %v3029
    %v3031 = vsel %vm2428, %v3009, 0.0
    %v3032 = vrot.slane %v3031, 4
    %v3033 = vadd.f32 %v3031, %v3032
    %v3034 = vrot.slane %v3033, 2
    %v3035 = vadd.f32 %v3033, %v3034
    %v3036 = vrot.slane %v3035, 1
    %v3037 = vadd.f32 %v3035, %v3036
    %v3038 = vsel %vm2428, %v3010, 0.0
    %v3039 = vrot.slane %v3038, 4
    %v3040 = vadd.f32 %v3038, %v3039
    %v3041 = vrot.slane %v3040, 2
    %v3042 = vadd.f32 %v3040, %v3041
    %v3043 = vrot.slane %v3042, 1
    %v3044 = vadd.f32 %v3042, %v3043
    %v3045 = vsel %vm2428, %v3011, 0.0
    %v3046 = vrot.slane %v3045, 4
    %v3047 = vadd.f32 %v3045, %v3046
    %v3048 = vrot.slane %v3047, 2
    %v3049 = vadd.f32 %v3047, %v3048
    %v3050 = vrot.slane %v3049, 1
    %v3051 = vadd.f32 %v3049, %v3050
    %v3052 = vsel %vm2428, %v3012, 0.0
    %v3053 = vrot.slane %v3052, 4
    %v3054 = vadd.f32 %v3052, %v3053
    %v3055 = vrot.slane %v3054, 2
    %v3056 = vadd.f32 %v3054, %v3055
    %v3057 = vrot.slane %v3056, 1
    %v3058 = vadd.f32 %v3056, %v3057
    %v3059 = vsel %vm2428, %v3013, 0.0
    %v3060 = vrot.slane %v3059, 4
    %v3061 = vadd.f32 %v3059, %v3060
    %v3062 = vrot.slane %v3061, 2
    %v3063 = vadd.f32 %v3061, %v3062
    %v3064 = vrot.slane %v3063, 1
    %v3065 = vadd.f32 %v3063, %v3064
    %v3066 = vsel %vm2428, %v3014, 0.0
    %v3067 = vrot.slane %v3066, 4
    %v3068 = vadd.f32 %v3066, %v3067
    %v3069 = vrot.slane %v3068, 2
    %v3070 = vadd.f32 %v3068, %v3069
    %v3071 = vrot.slane %v3070, 1
    %v3072 = vadd.f32 %v3070, %v3071
    %v3073 = vsel %vm2428, %v3015, 0.0
    %v3074 = vrot.slane %v3073, 4
    %v3075 = vadd.f32 %v3073, %v3074
    %v3076 = vrot.slane %v3075, 2
    %v3077 = vadd.f32 %v3075, %v3076
    %v3078 = vrot.slane %v3077, 1
    %v3079 = vadd.f32 %v3077, %v3078
    %v3080 = vsel %vm2428, %v3016, 0.0
    %v3081 = vrot.slane %v3080, 4
    %v3082 = vadd.f32 %v3080, %v3081
    %v3083 = vrot.slane %v3082, 2
    %v3084 = vadd.f32 %v3082, %v3083
    %v3085 = vrot.slane %v3084, 1
    %v3086 = vadd.f32 %v3084, %v3085
    %v3087 = vsel %vm2428, %v3017, 0.0
    %v3088 = vrot.slane %v3087, 4
    %v3089 = vadd.f32 %v3087, %v3088
    %v3090 = vrot.slane %v3089, 2
    %v3091 = vadd.f32 %v3089, %v3090
    %v3092 = vrot.slane %v3091, 1
    %v3093 = vadd.f32 %v3091, %v3092
    %v3094 = vsel %vm2428, %v3018, 0.0
    %v3095 = vrot.slane %v3094, 4
    %v3096 = vadd.f32 %v3094, %v3095
    %v3097 = vrot.slane %v3096, 2
    %v3098 = vadd.f32 %v3096, %v3097
    %v3099 = vrot.slane %v3098, 1
    %v3100 = vadd.f32 %v3098, %v3099
    %v3101 = vsel %vm2428, %v3019, 0.0
    %v3102 = vrot.slane %v3101, 4
    %v3103 = vadd.f32 %v3101, %v3102
    %v3104 = vrot.slane %v3103, 2
    %v3105 = vadd.f32 %v3103, %v3104
    %v3106 = vrot.slane %v3105, 1
    %v3107 = vadd.f32 %v3105, %v3106
    %v3108 = vsel %vm2428, %v3020, 0.0
    %v3109 = vrot.slane %v3108, 4
    %v3110 = vadd.f32 %v3108, %v3109
    %v3111 = vrot.slane %v3110, 2
    %v3112 = vadd.f32 %v3110, %v3111
    %v3113 = vrot.slane %v3112, 1
    %v3114 = vadd.f32 %v3112, %v3113
    %v3115 = vsel %vm2428, %v3021, 0.0
    %v3116 = vrot.slane %v3115, 4
    %v3117 = vadd.f32 %v3115, %v3116
    %v3118 = vrot.slane %v3117, 2
    %v3119 = vadd.f32 %v3117, %v3118
    %v3120 = vrot.slane %v3119, 1
    %v3121 = vadd.f32 %v3119, %v3120
    %v3122 = vsel %vm2428, %v3022, 0.0
    %v3123 = vrot.slane %v3122, 4
    %v3124 = vadd.f32 %v3122, %v3123
    %v3125 = vrot.slane %v3124, 2
    %v3126 = vadd.f32 %v3124, %v3125
    %v3127 = vrot.slane %v3126, 1
    %v3128 = vadd.f32 %v3126, %v3127
    %v3129 = vsel %vm2428, %v3023, 0.0
    %v3130 = vrot.slane %v3129, 4
    %v3131 = vadd.f32 %v3129, %v3130
    %v3132 = vrot.slane %v3131, 2
    %v3133 = vadd.f32 %v3131, %v3132
    %v3134 = vrot.slane %v3133, 1
    %v3135 = vadd.f32 %v3133, %v3134
    %v3136 = vrcp.pop 8.0
    %v3137 = vmul.f32 %v3030, %v3136
    %v3138 = vmul.f32 %v3037, %v3136
    %v3139 = vmul.f32 %v3044, %v3136
    %v3140 = vmul.f32 %v3051, %v3136
    %v3141 = vmul.f32 %v3058, %v3136
    %v3142 = vmul.f32 %v3065, %v3136
    %v3143 = vmul.f32 %v3072, %v3136
    %v3144 = vmul.f32 %v3079, %v3136
    %v3145 = vmul.f32 %v3086, %v3136
    %v3146 = vmul.f32 %v3093, %v3136
    %v3147 = vmul.f32 %v3100, %v3136
    %v3148 = vmul.f32 %v3107, %v3136
    %v3149 = vmul.f32 %v3114, %v3136
    %v3150 = vmul.f32 %v3121, %v3136
    %v3151 = vmul.f32 %v3128, %v3136
    %v3152 = vmul.f32 %v3135, %v3136
    %vm3169 = vcmask 1041409
    %v3170 = vsel %vm3169, %v3138, %v3137
    %vm3171 = vcmask 1042434
    %v3172 = vsel %vm3171, %v3139, %v3170
    %vm3173 = vcmask 1043459
    %v3174 = vsel %vm3173, %v3140, %v3172
    %vm3175 = vcmask 1044484
    %v3176 = vsel %vm3175, %v3141, %v3174
    %vm3177 = vcmask 1045509
    %v3178 = vsel %vm3177, %v3142, %v3176
    %vm3179 = vcmask 1046534
    %v3180 = vsel %vm3179, %v3143, %v3178
    %vm3181 = vcmask 1047559
    %v3182 = vsel %vm3181, %v3144, %v3180
    %v3183 = vsel %vm3169, %v3146, %v3145
    %v3184 = vsel %vm3171, %v3147, %v3183
    %v3185 = vsel %vm3173, %v3148, %v3184
    %v3186 = vsel %vm3175, %v3149, %v3185
    %v3187 = vsel %vm3177, %v3150, %v3186
    %v3188 = vsel %vm3179, %v3151, %v3187
    %v3189 = vsel %vm3181, %v3152, %v3188
    %3192 = vst.msk [vmem:[#allocation2] sm:$0xff] %vm2428, %v3182
    %3193 = vst.msk [vmem:[#allocation2 + $0x8] sm:$0xff] %vm2428, %v3189
    // Predicated region
    $region26: #{tpu_custom_call.1} parent=1 // pred_check
      _
    $region27: #{tpu_custom_call.1} parent=1 // pred_check_branch
      %3195 = sbr.rel (0) target = $region29
    $region28: #{tpu_custom_call.1} parent=1 // pred_region
      %s3197 = ssub.s32 256, 256
      %3198 = vsyncadd [#allocation3], %s3197
      %s3199 = sshll.u32 [#allocation2], 4
      %s3200 = int_to_ptr.vmem [resolvable:$true] %s3199
      %3205 = dma.vmem_to_hbm [thread:$0]  %s3200, 256, %s6, [#allocation3], 128, 128, 8
    $region29: #{tpu_custom_call.1} parent=1 // pred_fallthru
      _
    // Predicated region
    $region30: #{tpu_custom_call.1} parent=1 // pred_check
      _
    $region31: #{tpu_custom_call.1} parent=1 // pred_check_branch
      %3207 = sbr.rel (0) target = $region33
    $region32: #{tpu_custom_call.1} parent=1 // pred_region
      %3208 = dma.done [#allocation3], 256
    $region33: #{tpu_custom_call.1} parent=1 // pred_fallthru
      _
    %3209 = vsyncpa [#allocation3], 1

</llo_original>
